<compile_context>
chip_gen: v6e
topology: v6e:2x2x1
jax: 0.10.0
libtpu: 0.0.40
codegen_flags: <defaults>
</compile_context>

<pallas_src>
import functools
import math

import jax
import jax.numpy as jnp
from jax.experimental import pallas as pl
from jax.experimental.pallas import tpu as pltpu


# ----------------------------------------------------------------------------
# Pallas kernel: whole-sequence 2-layer LSTM, single invocation, all in VMEM.
# Inputs:
#   x_ref    : (T*Bp, D)          time-major, batch-padded features (bf16)
#   wih1_ref : (D, 4H)            layer-1 fused input weights (bf16), i|f|g|o
#   b1_ref   : (1, 4H)            layer-1 fused bias (b_ih + b_hh), f32
#   wrec_ref : (H+NP, 4NP + 4H)   fused recurrent RHS (bf16):
#                                   rows [0:H]    = [ wih2_pad | whh1 ]
#                                   rows [H:H+NP] = [ whh2_pad |  0   ]
#   b2_ref   : (1, 4NP)           layer-2 fused bias (padded), f32
# Output:
#   out_ref  : (T, Bp, NP)        layer-2 hidden state per step (real cols 0..N)
# ----------------------------------------------------------------------------
def mann_lstm_kernel(x_ref, wih1_ref, b1_ref, wrec_ref, b2_ref, out_ref,
                     *, T, Bp, H, NP):
    GH1 = 4 * H
    GH2 = 4 * NP

    # Hoisted input projection: one batched MXU matmul over all T*Bp rows
    # (bf16 operands, f32 accumulation) -> lane-dense (T*Bp, 4H) f32 slab.
    xp = jnp.dot(x_ref[...], wih1_ref[...],
                 preferred_element_type=jnp.float32) + b1_ref[...]

    wrec = wrec_ref[...]                                   # (H+NP, GH2+GH1) bf16
    b2 = jnp.broadcast_to(b2_ref[...], (Bp, GH2))          # hoisted broadcast

    def sigmoid(v):
        # EUP-friendly sigmoid: no VPU divide, transcendental on the EUP slot.
        return 0.5 * jnp.tanh(0.5 * v) + 0.5

    def cell(gates, c, width):
        # PyTorch gate order i, f, g, o - static lane slices of the fused slab.
        i_g = sigmoid(gates[:, 0 * width:1 * width])
        f_g = sigmoid(gates[:, 1 * width:2 * width])
        g_g = jnp.tanh(gates[:, 2 * width:3 * width])
        o_g = sigmoid(gates[:, 3 * width:4 * width])
        c_new = f_g * c + i_g * g_g
        h_new = o_g * jnp.tanh(c_new)
        return h_new, c_new

    c1 = jnp.zeros((Bp, H), jnp.float32)
    h2 = jnp.zeros((Bp, NP), jnp.float32)
    c2 = jnp.zeros((Bp, NP), jnp.float32)
    rec1 = jnp.zeros((Bp, GH1), jnp.float32)   # h1(t-1) @ whh1, carried forward

    # Fully-unrolled static recurrence (T is small and compile-time constant).
    # Per step: ONE (Bp, H+NP) x (H+NP, 256) bf16 MXU matmul + gate math.
    for t in range(T):
        # Layer-1 gates: hoisted input projection + carried recurrent term.
        g1 = xp[t * Bp:(t + 1) * Bp, :] + rec1
        h1, c1 = cell(g1, c1, H)

        # Fused 256-lane matmul: [g2_pre(t) | rec1 for step t+1].
        lhs = jnp.concatenate([h1, h2], axis=1).astype(jnp.bfloat16)
        fused = jnp.dot(lhs, wrec, preferred_element_type=jnp.float32)
        g2 = fused[:, :GH2] + b2
        rec1 = fused[:, GH2:]

        h2, c2 = cell(g2, c2, NP)
        out_ref[t] = h2.astype(out_ref.dtype)


# ----------------------------------------------------------------------------
# Wrapper: glue (label zeroing, concat, layout, padding, slicing) in plain
# JAX; the whole recurrence runs in one Pallas kernel invocation.
# ----------------------------------------------------------------------------
def mann_forward(input_images, input_labels, params):
    """input_images: [B, K+1, N, 784], input_labels: [B, K+1, N, N] (float32).
    Returns predictions [B, K+1, N, N]."""
    wih1, b1, wrec, b2 = params
    B, K1, N, _ = input_images.shape
    H = b1.shape[1] // 4
    NP = b2.shape[1] // 4
    Bp = -(-B // 8) * 8                                   # pad batch to sublanes

    # input_labels[:, -1, :, :] = 0 ; concat on the last axis.
    labels = input_labels.at[:, -1, :, :].set(0.0)
    x = jnp.concatenate([input_images, labels], axis=-1)  # [B, K+1, N, D]
    D = x.shape[-1]
    T = K1 * N

    # Time-major layout, then pad the (small) batch axis to Bp with zeros.
    # (Padded rows are sliced off after the kernel; they never mix with real
    # rows since the recurrence is purely per-batch-row.)
    x_tm = x.reshape(B, T, D).transpose(1, 0, 2)           # (T, B, D)
    x_tm = jnp.pad(x_tm, ((0, 0), (0, Bp - B), (0, 0)))    # (T, Bp, D)
    x2d = x_tm.reshape(T * Bp, D).astype(jnp.bfloat16)

    wih1_bf = wih1.astype(jnp.bfloat16)
    wrec_bf = wrec.astype(jnp.bfloat16)

    vmem = pl.BlockSpec(memory_space=pltpu.MemorySpace.VMEM)
    out = pl.pallas_call(
        functools.partial(mann_lstm_kernel, T=T, Bp=Bp, H=H, NP=NP),
        out_shape=jax.ShapeDtypeStruct((T, Bp, NP), jnp.float32),
        in_specs=[vmem] * 5,
        out_specs=vmem,
    )(x2d, wih1_bf, b1, wrec_bf, b2)

    # (T, Bp, NP) -> [B, K+1, N, N] (drop padded batch rows + padded units).
    out = out.transpose(1, 0, 2)[:B].reshape(B, K1, N, NP)
    return out[..., :N]


# ----------------------------------------------------------------------------
# Deterministic parameter init mirroring initialize_weights():
#   W_ih -> xavier_uniform, W_hh -> orthogonal, biases -> zeros.
# PyTorch stores W_* as [4G, F] (gate order i,f,g,o); we transpose to fused
# [F, 4G].  Layer-2's width N is zero-padded to NP (4*NP multiple of 128),
# and the three per-step recurrent operands are packed into ONE fused RHS:
#     wrec = [[ wih2_pad | whh1 ],
#             [ whh2_pad |  0   ]]        shape (H+NP, 4*NP + 4*H)
# Padded hidden units provably stay exactly 0 (zero weights + zero bias +
# zero initial state).  When loading trained PyTorch weights, sum b_ih + b_hh
# into b1/b2 and keep the padded columns/rows exactly zero.
# ----------------------------------------------------------------------------
def init_mann_params(key, num_classes, hidden_dim):
    N, H = num_classes, hidden_dim
    D = 784 + N
    NP = -(-N // 32) * 32                          # pad so 4*NP % 128 == 0
    k1, k2, k3, k4 = jax.random.split(key, 4)

    def xavier_uniform(k, shape):                  # PyTorch layout [fan_out, fan_in]
        fan_out, fan_in = shape
        bound = math.sqrt(6.0 / (fan_in + fan_out))
        return jax.random.uniform(k, shape, jnp.float32, -bound, bound)

    ortho = jax.nn.initializers.orthogonal()

    w_ih1 = xavier_uniform(k1, (4 * H, D))         # layer1.weight_ih_l0
    w_hh1 = ortho(k2, (4 * H, H), jnp.float32)     # layer1.weight_hh_l0
    w_ih2 = xavier_uniform(k3, (4 * N, H))         # layer2.weight_ih_l0
    w_hh2 = ortho(k4, (4 * N, N), jnp.float32)     # layer2.weight_hh_l0

    wih1_f = w_ih1.T                               # (D, 4H), fused gates i|f|g|o
    whh1_f = w_hh1.T                               # (H, 4H)
    b1_f = jnp.zeros((1, 4 * H), jnp.float32)      # b_ih + b_hh (both zero here)

    # Layer 2 fused + zero-padded N -> NP.
    w_ih2_t = w_ih2.T                              # (H, 4N)
    w_hh2_t = w_hh2.T                              # (N, 4N)
    wih2_p = jnp.zeros((H, 4 * NP), jnp.float32)
    whh2_p = jnp.zeros((NP, 4 * NP), jnp.float32)
    for g in range(4):
        wih2_p = wih2_p.at[:, g * NP:g * NP + N].set(w_ih2_t[:, g * N:(g + 1) * N])
        whh2_p = whh2_p.at[:N, g * NP:g * NP + N].set(w_hh2_t[:, g * N:(g + 1) * N])
    b2_f = jnp.zeros((1, 4 * NP), jnp.float32)

    # Fused per-step recurrent RHS (single 256-lane matmul per timestep).
    top = jnp.concatenate([wih2_p, whh1_f], axis=1)                    # (H, 4NP+4H)
    bot = jnp.concatenate([whh2_p, jnp.zeros((NP, 4 * H), jnp.float32)], axis=1)
    wrec_f = jnp.concatenate([top, bot], axis=0)                       # (H+NP, 4NP+4H)

    return (wih1_f, b1_f, wrec_f, b2_f)


if __name__ == "__main__":
    key = jax.random.PRNGKey(0)
    B, K, N, H = 2, 2, 4, 32                       # batch, shots, classes, hidden

    k_img, k_lab, k_par = jax.random.split(key, 3)
    input_images = jax.random.uniform(k_img, (B, K + 1, N, 784), jnp.float32)
    label_idx = jax.random.randint(k_lab, (B, K + 1, N), 0, N)
    input_labels = jax.nn.one_hot(label_idx, N, dtype=jnp.float32)  # [B, K+1, N, N]

    params = init_mann_params(k_par, num_classes=N, hidden_dim=H)

    preds = mann_forward(input_images, input_labels, params)
    preds = jax.block_until_ready(preds)

    assert preds.shape == (B, K + 1, N, N), preds.shape
    assert bool(jnp.all(jnp.isfinite(preds)))
    print("KERNEL_OK")
</pallas_src>

<mosaic_0001>
module attributes {stable_mosaic.version = 11 : i64} {
  func.func @mann_lstm_kernel(%arg0: memref<96x788xbf16, #tpu.memory_space<vmem>>, %arg1: memref<788x128xbf16, #tpu.memory_space<vmem>>, %arg2: memref<1x128xf32, #tpu.memory_space<vmem>>, %arg3: memref<64x256xbf16, #tpu.memory_space<vmem>>, %arg4: memref<1x128xf32, #tpu.memory_space<vmem>>, %arg5: memref<12x8x32xf32, #tpu.memory_space<vmem>>) attributes {dimension_semantics = [], scalar_prefetch = 0 : i64, scratch_operands = 0 : i64, tpu.core_type = #tpu.core_type<tc>} {
    %c0 = arith.constant 0 : index
    %c0_0 = arith.constant 0 : index
    %0 = vector.load %arg0[%c0, %c0_0] : memref<96x788xbf16, #tpu.memory_space<vmem>>, vector<96x788xbf16>
    %c0_1 = arith.constant 0 : index
    %c0_2 = arith.constant 0 : index
    %1 = vector.load %arg1[%c0_1, %c0_2] : memref<788x128xbf16, #tpu.memory_space<vmem>>, vector<788x128xbf16>
    %cst = arith.constant dense<0.000000e+00> : vector<96x128xf32>
    %2 = tpu.matmul %0, %1, %cst {dimension_numbers = #tpu.dot_dimension_numbers<[1], [0], [0], [1], [0, 0, 1, 1], [], []>} : vector<96x788xbf16>, vector<788x128xbf16>, vector<96x128xf32> -> vector<96x128xf32>
    %c0_3 = arith.constant 0 : index
    %c0_4 = arith.constant 0 : index
    %3 = vector.load %arg2[%c0_3, %c0_4] : memref<1x128xf32, #tpu.memory_space<vmem>>, vector<1x128xf32>
    %4 = vector.broadcast %3 : vector<1x128xf32> to vector<96x128xf32>
    %5 = arith.addf %2, %4 : vector<96x128xf32>
    %c0_5 = arith.constant 0 : index
    %c0_6 = arith.constant 0 : index
    %6 = vector.load %arg3[%c0_5, %c0_6] : memref<64x256xbf16, #tpu.memory_space<vmem>>, vector<64x256xbf16>
    %c0_7 = arith.constant 0 : index
    %c0_8 = arith.constant 0 : index
    %7 = vector.load %arg4[%c0_7, %c0_8] : memref<1x128xf32, #tpu.memory_space<vmem>>, vector<1x128xf32>
    %8 = vector.shape_cast %7 : vector<1x128xf32> to vector<1x128xf32>
    %9 = vector.broadcast %8 : vector<1x128xf32> to vector<8x128xf32>
    %cst_9 = arith.constant 0.000000e+00 : f32
    %10 = vector.broadcast %cst_9 : f32 to vector<8x32xf32>
    %cst_10 = arith.constant 0.000000e+00 : f32
    %11 = vector.broadcast %cst_10 : f32 to vector<8x32xf32>
    %cst_11 = arith.constant 0.000000e+00 : f32
    %12 = vector.broadcast %cst_11 : f32 to vector<8x32xf32>
    %cst_12 = arith.constant 0.000000e+00 : f32
    %13 = vector.broadcast %cst_12 : f32 to vector<8x128xf32>
    %14 = vector.extract_strided_slice %5 {offsets = [0, 0], sizes = [8, 128], strides = [1, 1]} : vector<96x128xf32> to vector<8x128xf32>
    %15 = arith.addf %14, %13 : vector<8x128xf32>
    %16 = vector.extract_strided_slice %15 {offsets = [0, 0], sizes = [8, 32], strides = [1, 1]} : vector<8x128xf32> to vector<8x32xf32>
    %cst_13 = arith.constant 5.000000e-01 : f32
    %17 = vector.broadcast %cst_13 : f32 to vector<8x32xf32>
    %18 = arith.mulf %17, %16 : vector<8x32xf32>
    %19 = math.tanh %18 : vector<8x32xf32>
    %cst_14 = arith.constant 5.000000e-01 : f32
    %20 = vector.broadcast %cst_14 : f32 to vector<8x32xf32>
    %21 = arith.mulf %20, %19 : vector<8x32xf32>
    %cst_15 = arith.constant 5.000000e-01 : f32
    %22 = vector.broadcast %cst_15 : f32 to vector<8x32xf32>
    %23 = arith.addf %21, %22 : vector<8x32xf32>
    %24 = vector.extract_strided_slice %15 {offsets = [0, 32], sizes = [8, 32], strides = [1, 1]} : vector<8x128xf32> to vector<8x32xf32>
    %cst_16 = arith.constant 5.000000e-01 : f32
    %25 = vector.broadcast %cst_16 : f32 to vector<8x32xf32>
    %26 = arith.mulf %25, %24 : vector<8x32xf32>
    %27 = math.tanh %26 : vector<8x32xf32>
    %cst_17 = arith.constant 5.000000e-01 : f32
    %28 = vector.broadcast %cst_17 : f32 to vector<8x32xf32>
    %29 = arith.mulf %28, %27 : vector<8x32xf32>
    %cst_18 = arith.constant 5.000000e-01 : f32
    %30 = vector.broadcast %cst_18 : f32 to vector<8x32xf32>
    %31 = arith.addf %29, %30 : vector<8x32xf32>
    %32 = vector.extract_strided_slice %15 {offsets = [0, 64], sizes = [8, 32], strides = [1, 1]} : vector<8x128xf32> to vector<8x32xf32>
    %33 = math.tanh %32 : vector<8x32xf32>
    %34 = vector.extract_strided_slice %15 {offsets = [0, 96], sizes = [8, 32], strides = [1, 1]} : vector<8x128xf32> to vector<8x32xf32>
    %cst_19 = arith.constant 5.000000e-01 : f32
    %35 = vector.broadcast %cst_19 : f32 to vector<8x32xf32>
    %36 = arith.mulf %35, %34 : vector<8x32xf32>
    %37 = math.tanh %36 : vector<8x32xf32>
    %cst_20 = arith.constant 5.000000e-01 : f32
    %38 = vector.broadcast %cst_20 : f32 to vector<8x32xf32>
    %39 = arith.mulf %38, %37 : vector<8x32xf32>
    %cst_21 = arith.constant 5.000000e-01 : f32
    %40 = vector.broadcast %cst_21 : f32 to vector<8x32xf32>
    %41 = arith.addf %39, %40 : vector<8x32xf32>
    %42 = arith.mulf %31, %10 : vector<8x32xf32>
    %43 = arith.mulf %23, %33 : vector<8x32xf32>
    %44 = arith.addf %42, %43 : vector<8x32xf32>
    %45 = math.tanh %44 : vector<8x32xf32>
    %46 = arith.mulf %41, %45 : vector<8x32xf32>
    %47 = tpu.concatenate %46, %11 in 1 : vector<8x32xf32>, vector<8x32xf32> -> vector<8x64xf32>
    %48 = arith.truncf %47 : vector<8x64xf32> to vector<8x64xbf16>
    %cst_22 = arith.constant dense<0.000000e+00> : vector<8x256xf32>
    %49 = tpu.matmul %48, %6, %cst_22 {dimension_numbers = #tpu.dot_dimension_numbers<[1], [0], [0], [1], [0, 0, 1, 1], [], []>} : vector<8x64xbf16>, vector<64x256xbf16>, vector<8x256xf32> -> vector<8x256xf32>
    %50 = vector.extract_strided_slice %49 {offsets = [0, 0], sizes = [8, 128], strides = [1, 1]} : vector<8x256xf32> to vector<8x128xf32>
    %51 = arith.addf %50, %9 : vector<8x128xf32>
    %52 = vector.extract_strided_slice %49 {offsets = [0, 128], sizes = [8, 128], strides = [1, 1]} : vector<8x256xf32> to vector<8x128xf32>
    %53 = vector.extract_strided_slice %51 {offsets = [0, 0], sizes = [8, 32], strides = [1, 1]} : vector<8x128xf32> to vector<8x32xf32>
    %cst_23 = arith.constant 5.000000e-01 : f32
    %54 = vector.broadcast %cst_23 : f32 to vector<8x32xf32>
    %55 = arith.mulf %54, %53 : vector<8x32xf32>
    %56 = math.tanh %55 : vector<8x32xf32>
    %cst_24 = arith.constant 5.000000e-01 : f32
    %57 = vector.broadcast %cst_24 : f32 to vector<8x32xf32>
    %58 = arith.mulf %57, %56 : vector<8x32xf32>
    %cst_25 = arith.constant 5.000000e-01 : f32
    %59 = vector.broadcast %cst_25 : f32 to vector<8x32xf32>
    %60 = arith.addf %58, %59 : vector<8x32xf32>
    %61 = vector.extract_strided_slice %51 {offsets = [0, 32], sizes = [8, 32], strides = [1, 1]} : vector<8x128xf32> to vector<8x32xf32>
    %cst_26 = arith.constant 5.000000e-01 : f32
    %62 = vector.broadcast %cst_26 : f32 to vector<8x32xf32>
    %63 = arith.mulf %62, %61 : vector<8x32xf32>
    %64 = math.tanh %63 : vector<8x32xf32>
    %cst_27 = arith.constant 5.000000e-01 : f32
    %65 = vector.broadcast %cst_27 : f32 to vector<8x32xf32>
    %66 = arith.mulf %65, %64 : vector<8x32xf32>
    %cst_28 = arith.constant 5.000000e-01 : f32
    %67 = vector.broadcast %cst_28 : f32 to vector<8x32xf32>
    %68 = arith.addf %66, %67 : vector<8x32xf32>
    %69 = vector.extract_strided_slice %51 {offsets = [0, 64], sizes = [8, 32], strides = [1, 1]} : vector<8x128xf32> to vector<8x32xf32>
    %70 = math.tanh %69 : vector<8x32xf32>
    %71 = vector.extract_strided_slice %51 {offsets = [0, 96], sizes = [8, 32], strides = [1, 1]} : vector<8x128xf32> to vector<8x32xf32>
    %cst_29 = arith.constant 5.000000e-01 : f32
    %72 = vector.broadcast %cst_29 : f32 to vector<8x32xf32>
    %73 = arith.mulf %72, %71 : vector<8x32xf32>
    %74 = math.tanh %73 : vector<8x32xf32>
    %cst_30 = arith.constant 5.000000e-01 : f32
    %75 = vector.broadcast %cst_30 : f32 to vector<8x32xf32>
    %76 = arith.mulf %75, %74 : vector<8x32xf32>
    %cst_31 = arith.constant 5.000000e-01 : f32
    %77 = vector.broadcast %cst_31 : f32 to vector<8x32xf32>
    %78 = arith.addf %76, %77 : vector<8x32xf32>
    %79 = arith.mulf %68, %12 : vector<8x32xf32>
    %80 = arith.mulf %60, %70 : vector<8x32xf32>
    %81 = arith.addf %79, %80 : vector<8x32xf32>
    %82 = math.tanh %81 : vector<8x32xf32>
    %83 = arith.mulf %78, %82 : vector<8x32xf32>
    %c0_32 = arith.constant 0 : index
    %c0_33 = arith.constant 0 : index
    %c0_34 = arith.constant 0 : index
    %84 = vector.load %arg5[%c0_32, %c0_33, %c0_34] : memref<12x8x32xf32, #tpu.memory_space<vmem>>, vector<1x8x32xf32>
    %85 = vector.shape_cast %84 : vector<1x8x32xf32> to vector<8x32xf32>
    %86 = vector.shape_cast %83 : vector<8x32xf32> to vector<1x8x32xf32>
    tpu.vector_store %arg5[%c0_32, %c0_33, %c0_34], %86 {strides = array<i32>} : memref<12x8x32xf32, #tpu.memory_space<vmem>>, vector<1x8x32xf32>,
    %87 = vector.extract_strided_slice %5 {offsets = [8, 0], sizes = [8, 128], strides = [1, 1]} : vector<96x128xf32> to vector<8x128xf32>
    %88 = arith.addf %87, %52 : vector<8x128xf32>
    %89 = vector.extract_strided_slice %88 {offsets = [0, 0], sizes = [8, 32], strides = [1, 1]} : vector<8x128xf32> to vector<8x32xf32>
    %cst_35 = arith.constant 5.000000e-01 : f32
    %90 = vector.broadcast %cst_35 : f32 to vector<8x32xf32>
    %91 = arith.mulf %90, %89 : vector<8x32xf32>
    %92 = math.tanh %91 : vector<8x32xf32>
    %cst_36 = arith.constant 5.000000e-01 : f32
    %93 = vector.broadcast %cst_36 : f32 to vector<8x32xf32>
    %94 = arith.mulf %93, %92 : vector<8x32xf32>
    %cst_37 = arith.constant 5.000000e-01 : f32
    %95 = vector.broadcast %cst_37 : f32 to vector<8x32xf32>
    %96 = arith.addf %94, %95 : vector<8x32xf32>
    %97 = vector.extract_strided_slice %88 {offsets = [0, 32], sizes = [8, 32], strides = [1, 1]} : vector<8x128xf32> to vector<8x32xf32>
    %cst_38 = arith.constant 5.000000e-01 : f32
    %98 = vector.broadcast %cst_38 : f32 to vector<8x32xf32>
    %99 = arith.mulf %98, %97 : vector<8x32xf32>
    %100 = math.tanh %99 : vector<8x32xf32>
    %cst_39 = arith.constant 5.000000e-01 : f32
    %101 = vector.broadcast %cst_39 : f32 to vector<8x32xf32>
    %102 = arith.mulf %101, %100 : vector<8x32xf32>
    %cst_40 = arith.constant 5.000000e-01 : f32
    %103 = vector.broadcast %cst_40 : f32 to vector<8x32xf32>
    %104 = arith.addf %102, %103 : vector<8x32xf32>
    %105 = vector.extract_strided_slice %88 {offsets = [0, 64], sizes = [8, 32], strides = [1, 1]} : vector<8x128xf32> to vector<8x32xf32>
    %106 = math.tanh %105 : vector<8x32xf32>
    %107 = vector.extract_strided_slice %88 {offsets = [0, 96], sizes = [8, 32], strides = [1, 1]} : vector<8x128xf32> to vector<8x32xf32>
    %cst_41 = arith.constant 5.000000e-01 : f32
    %108 = vector.broadcast %cst_41 : f32 to vector<8x32xf32>
    %109 = arith.mulf %108, %107 : vector<8x32xf32>
    %110 = math.tanh %109 : vector<8x32xf32>
    %cst_42 = arith.constant 5.000000e-01 : f32
    %111 = vector.broadcast %cst_42 : f32 to vector<8x32xf32>
    %112 = arith.mulf %111, %110 : vector<8x32xf32>
    %cst_43 = arith.constant 5.000000e-01 : f32
    %113 = vector.broadcast %cst_43 : f32 to vector<8x32xf32>
    %114 = arith.addf %112, %113 : vector<8x32xf32>
    %115 = arith.mulf %104, %44 : vector<8x32xf32>
    %116 = arith.mulf %96, %106 : vector<8x32xf32>
    %117 = arith.addf %115, %116 : vector<8x32xf32>
    %118 = math.tanh %117 : vector<8x32xf32>
    %119 = arith.mulf %114, %118 : vector<8x32xf32>
    %120 = tpu.concatenate %119, %83 in 1 : vector<8x32xf32>, vector<8x32xf32> -> vector<8x64xf32>
    %121 = arith.truncf %120 : vector<8x64xf32> to vector<8x64xbf16>
    %cst_44 = arith.constant dense<0.000000e+00> : vector<8x256xf32>
    %122 = tpu.matmul %121, %6, %cst_44 {dimension_numbers = #tpu.dot_dimension_numbers<[1], [0], [0], [1], [0, 0, 1, 1], [], []>} : vector<8x64xbf16>, vector<64x256xbf16>, vector<8x256xf32> -> vector<8x256xf32>
    %123 = vector.extract_strided_slice %122 {offsets = [0, 0], sizes = [8, 128], strides = [1, 1]} : vector<8x256xf32> to vector<8x128xf32>
    %124 = arith.addf %123, %9 : vector<8x128xf32>
    %125 = vector.extract_strided_slice %122 {offsets = [0, 128], sizes = [8, 128], strides = [1, 1]} : vector<8x256xf32> to vector<8x128xf32>
    %126 = vector.extract_strided_slice %124 {offsets = [0, 0], sizes = [8, 32], strides = [1, 1]} : vector<8x128xf32> to vector<8x32xf32>
    %cst_45 = arith.constant 5.000000e-01 : f32
    %127 = vector.broadcast %cst_45 : f32 to vector<8x32xf32>
    %128 = arith.mulf %127, %126 : vector<8x32xf32>
    %129 = math.tanh %128 : vector<8x32xf32>
    %cst_46 = arith.constant 5.000000e-01 : f32
    %130 = vector.broadcast %cst_46 : f32 to vector<8x32xf32>
    %131 = arith.mulf %130, %129 : vector<8x32xf32>
    %cst_47 = arith.constant 5.000000e-01 : f32
    %132 = vector.broadcast %cst_47 : f32 to vector<8x32xf32>
    %133 = arith.addf %131, %132 : vector<8x32xf32>
    %134 = vector.extract_strided_slice %124 {offsets = [0, 32], sizes = [8, 32], strides = [1, 1]} : vector<8x128xf32> to vector<8x32xf32>
    %cst_48 = arith.constant 5.000000e-01 : f32
    %135 = vector.broadcast %cst_48 : f32 to vector<8x32xf32>
    %136 = arith.mulf %135, %134 : vector<8x32xf32>
    %137 = math.tanh %136 : vector<8x32xf32>
    %cst_49 = arith.constant 5.000000e-01 : f32
    %138 = vector.broadcast %cst_49 : f32 to vector<8x32xf32>
    %139 = arith.mulf %138, %137 : vector<8x32xf32>
    %cst_50 = arith.constant 5.000000e-01 : f32
    %140 = vector.broadcast %cst_50 : f32 to vector<8x32xf32>
    %141 = arith.addf %139, %140 : vector<8x32xf32>
    %142 = vector.extract_strided_slice %124 {offsets = [0, 64], sizes = [8, 32], strides = [1, 1]} : vector<8x128xf32> to vector<8x32xf32>
    %143 = math.tanh %142 : vector<8x32xf32>
    %144 = vector.extract_strided_slice %124 {offsets = [0, 96], sizes = [8, 32], strides = [1, 1]} : vector<8x128xf32> to vector<8x32xf32>
    %cst_51 = arith.constant 5.000000e-01 : f32
    %145 = vector.broadcast %cst_51 : f32 to vector<8x32xf32>
    %146 = arith.mulf %145, %144 : vector<8x32xf32>
    %147 = math.tanh %146 : vector<8x32xf32>
    %cst_52 = arith.constant 5.000000e-01 : f32
    %148 = vector.broadcast %cst_52 : f32 to vector<8x32xf32>
    %149 = arith.mulf %148, %147 : vector<8x32xf32>
    %cst_53 = arith.constant 5.000000e-01 : f32
    %150 = vector.broadcast %cst_53 : f32 to vector<8x32xf32>
    %151 = arith.addf %149, %150 : vector<8x32xf32>
    %152 = arith.mulf %141, %81 : vector<8x32xf32>
    %153 = arith.mulf %133, %143 : vector<8x32xf32>
    %154 = arith.addf %152, %153 : vector<8x32xf32>
    %155 = math.tanh %154 : vector<8x32xf32>
    %156 = arith.mulf %151, %155 : vector<8x32xf32>
    %c1 = arith.constant 1 : index
    %c0_54 = arith.constant 0 : index
    %c0_55 = arith.constant 0 : index
    %157 = vector.load %arg5[%c1, %c0_54, %c0_55] : memref<12x8x32xf32, #tpu.memory_space<vmem>>, vector<1x8x32xf32>
    %158 = vector.shape_cast %157 : vector<1x8x32xf32> to vector<8x32xf32>
    %159 = vector.shape_cast %156 : vector<8x32xf32> to vector<1x8x32xf32>
    tpu.vector_store %arg5[%c1, %c0_54, %c0_55], %159 {strides = array<i32>} : memref<12x8x32xf32, #tpu.memory_space<vmem>>, vector<1x8x32xf32>,
    %160 = vector.extract_strided_slice %5 {offsets = [16, 0], sizes = [8, 128], strides = [1, 1]} : vector<96x128xf32> to vector<8x128xf32>
    %161 = arith.addf %160, %125 : vector<8x128xf32>
    %162 = vector.extract_strided_slice %161 {offsets = [0, 0], sizes = [8, 32], strides = [1, 1]} : vector<8x128xf32> to vector<8x32xf32>
    %cst_56 = arith.constant 5.000000e-01 : f32
    %163 = vector.broadcast %cst_56 : f32 to vector<8x32xf32>
    %164 = arith.mulf %163, %162 : vector<8x32xf32>
    %165 = math.tanh %164 : vector<8x32xf32>
    %cst_57 = arith.constant 5.000000e-01 : f32
    %166 = vector.broadcast %cst_57 : f32 to vector<8x32xf32>
    %167 = arith.mulf %166, %165 : vector<8x32xf32>
    %cst_58 = arith.constant 5.000000e-01 : f32
    %168 = vector.broadcast %cst_58 : f32 to vector<8x32xf32>
    %169 = arith.addf %167, %168 : vector<8x32xf32>
    %170 = vector.extract_strided_slice %161 {offsets = [0, 32], sizes = [8, 32], strides = [1, 1]} : vector<8x128xf32> to vector<8x32xf32>
    %cst_59 = arith.constant 5.000000e-01 : f32
    %171 = vector.broadcast %cst_59 : f32 to vector<8x32xf32>
    %172 = arith.mulf %171, %170 : vector<8x32xf32>
    %173 = math.tanh %172 : vector<8x32xf32>
    %cst_60 = arith.constant 5.000000e-01 : f32
    %174 = vector.broadcast %cst_60 : f32 to vector<8x32xf32>
    %175 = arith.mulf %174, %173 : vector<8x32xf32>
    %cst_61 = arith.constant 5.000000e-01 : f32
    %176 = vector.broadcast %cst_61 : f32 to vector<8x32xf32>
    %177 = arith.addf %175, %176 : vector<8x32xf32>
    %178 = vector.extract_strided_slice %161 {offsets = [0, 64], sizes = [8, 32], strides = [1, 1]} : vector<8x128xf32> to vector<8x32xf32>
    %179 = math.tanh %178 : vector<8x32xf32>
    %180 = vector.extract_strided_slice %161 {offsets = [0, 96], sizes = [8, 32], strides = [1, 1]} : vector<8x128xf32> to vector<8x32xf32>
    %cst_62 = arith.constant 5.000000e-01 : f32
    %181 = vector.broadcast %cst_62 : f32 to vector<8x32xf32>
    %182 = arith.mulf %181, %180 : vector<8x32xf32>
    %183 = math.tanh %182 : vector<8x32xf32>
    %cst_63 = arith.constant 5.000000e-01 : f32
    %184 = vector.broadcast %cst_63 : f32 to vector<8x32xf32>
    %185 = arith.mulf %184, %183 : vector<8x32xf32>
    %cst_64 = arith.constant 5.000000e-01 : f32
    %186 = vector.broadcast %cst_64 : f32 to vector<8x32xf32>
    %187 = arith.addf %185, %186 : vector<8x32xf32>
    %188 = arith.mulf %177, %117 : vector<8x32xf32>
    %189 = arith.mulf %169, %179 : vector<8x32xf32>
    %190 = arith.addf %188, %189 : vector<8x32xf32>
    %191 = math.tanh %190 : vector<8x32xf32>
    %192 = arith.mulf %187, %191 : vector<8x32xf32>
    %193 = tpu.concatenate %192, %156 in 1 : vector<8x32xf32>, vector<8x32xf32> -> vector<8x64xf32>
    %194 = arith.truncf %193 : vector<8x64xf32> to vector<8x64xbf16>
    %cst_65 = arith.constant dense<0.000000e+00> : vector<8x256xf32>
    %195 = tpu.matmul %194, %6, %cst_65 {dimension_numbers = #tpu.dot_dimension_numbers<[1], [0], [0], [1], [0, 0, 1, 1], [], []>} : vector<8x64xbf16>, vector<64x256xbf16>, vector<8x256xf32> -> vector<8x256xf32>
    %196 = vector.extract_strided_slice %195 {offsets = [0, 0], sizes = [8, 128], strides = [1, 1]} : vector<8x256xf32> to vector<8x128xf32>
    %197 = arith.addf %196, %9 : vector<8x128xf32>
    %198 = vector.extract_strided_slice %195 {offsets = [0, 128], sizes = [8, 128], strides = [1, 1]} : vector<8x256xf32> to vector<8x128xf32>
    %199 = vector.extract_strided_slice %197 {offsets = [0, 0], sizes = [8, 32], strides = [1, 1]} : vector<8x128xf32> to vector<8x32xf32>
    %cst_66 = arith.constant 5.000000e-01 : f32
    %200 = vector.broadcast %cst_66 : f32 to vector<8x32xf32>
    %201 = arith.mulf %200, %199 : vector<8x32xf32>
    %202 = math.tanh %201 : vector<8x32xf32>
    %cst_67 = arith.constant 5.000000e-01 : f32
    %203 = vector.broadcast %cst_67 : f32 to vector<8x32xf32>
    %204 = arith.mulf %203, %202 : vector<8x32xf32>
    %cst_68 = arith.constant 5.000000e-01 : f32
    %205 = vector.broadcast %cst_68 : f32 to vector<8x32xf32>
    %206 = arith.addf %204, %205 : vector<8x32xf32>
    %207 = vector.extract_strided_slice %197 {offsets = [0, 32], sizes = [8, 32], strides = [1, 1]} : vector<8x128xf32> to vector<8x32xf32>
    %cst_69 = arith.constant 5.000000e-01 : f32
    %208 = vector.broadcast %cst_69 : f32 to vector<8x32xf32>
    %209 = arith.mulf %208, %207 : vector<8x32xf32>
    %210 = math.tanh %209 : vector<8x32xf32>
    %cst_70 = arith.constant 5.000000e-01 : f32
    %211 = vector.broadcast %cst_70 : f32 to vector<8x32xf32>
    %212 = arith.mulf %211, %210 : vector<8x32xf32>
    %cst_71 = arith.constant 5.000000e-01 : f32
    %213 = vector.broadcast %cst_71 : f32 to vector<8x32xf32>
    %214 = arith.addf %212, %213 : vector<8x32xf32>
    %215 = vector.extract_strided_slice %197 {offsets = [0, 64], sizes = [8, 32], strides = [1, 1]} : vector<8x128xf32> to vector<8x32xf32>
    %216 = math.tanh %215 : vector<8x32xf32>
    %217 = vector.extract_strided_slice %197 {offsets = [0, 96], sizes = [8, 32], strides = [1, 1]} : vector<8x128xf32> to vector<8x32xf32>
    %cst_72 = arith.constant 5.000000e-01 : f32
    %218 = vector.broadcast %cst_72 : f32 to vector<8x32xf32>
    %219 = arith.mulf %218, %217 : vector<8x32xf32>
    %220 = math.tanh %219 : vector<8x32xf32>
    %cst_73 = arith.constant 5.000000e-01 : f32
    %221 = vector.broadcast %cst_73 : f32 to vector<8x32xf32>
    %222 = arith.mulf %221, %220 : vector<8x32xf32>
    %cst_74 = arith.constant 5.000000e-01 : f32
    %223 = vector.broadcast %cst_74 : f32 to vector<8x32xf32>
    %224 = arith.addf %222, %223 : vector<8x32xf32>
    %225 = arith.mulf %214, %154 : vector<8x32xf32>
    %226 = arith.mulf %206, %216 : vector<8x32xf32>
    %227 = arith.addf %225, %226 : vector<8x32xf32>
    %228 = math.tanh %227 : vector<8x32xf32>
    %229 = arith.mulf %224, %228 : vector<8x32xf32>
    %c2 = arith.constant 2 : index
    %c0_75 = arith.constant 0 : index
    %c0_76 = arith.constant 0 : index
    %230 = vector.load %arg5[%c2, %c0_75, %c0_76] : memref<12x8x32xf32, #tpu.memory_space<vmem>>, vector<1x8x32xf32>
    %231 = vector.shape_cast %230 : vector<1x8x32xf32> to vector<8x32xf32>
    %232 = vector.shape_cast %229 : vector<8x32xf32> to vector<1x8x32xf32>
    tpu.vector_store %arg5[%c2, %c0_75, %c0_76], %232 {strides = array<i32>} : memref<12x8x32xf32, #tpu.memory_space<vmem>>, vector<1x8x32xf32>,
    %233 = vector.extract_strided_slice %5 {offsets = [24, 0], sizes = [8, 128], strides = [1, 1]} : vector<96x128xf32> to vector<8x128xf32>
    %234 = arith.addf %233, %198 : vector<8x128xf32>
    %235 = vector.extract_strided_slice %234 {offsets = [0, 0], sizes = [8, 32], strides = [1, 1]} : vector<8x128xf32> to vector<8x32xf32>
    %cst_77 = arith.constant 5.000000e-01 : f32
    %236 = vector.broadcast %cst_77 : f32 to vector<8x32xf32>
    %237 = arith.mulf %236, %235 : vector<8x32xf32>
    %238 = math.tanh %237 : vector<8x32xf32>
    %cst_78 = arith.constant 5.000000e-01 : f32
    %239 = vector.broadcast %cst_78 : f32 to vector<8x32xf32>
    %240 = arith.mulf %239, %238 : vector<8x32xf32>
    %cst_79 = arith.constant 5.000000e-01 : f32
    %241 = vector.broadcast %cst_79 : f32 to vector<8x32xf32>
    %242 = arith.addf %240, %241 : vector<8x32xf32>
    %243 = vector.extract_strided_slice %234 {offsets = [0, 32], sizes = [8, 32], strides = [1, 1]} : vector<8x128xf32> to vector<8x32xf32>
    %cst_80 = arith.constant 5.000000e-01 : f32
    %244 = vector.broadcast %cst_80 : f32 to vector<8x32xf32>
    %245 = arith.mulf %244, %243 : vector<8x32xf32>
    %246 = math.tanh %245 : vector<8x32xf32>
    %cst_81 = arith.constant 5.000000e-01 : f32
    %247 = vector.broadcast %cst_81 : f32 to vector<8x32xf32>
    %248 = arith.mulf %247, %246 : vector<8x32xf32>
    %cst_82 = arith.constant 5.000000e-01 : f32
    %249 = vector.broadcast %cst_82 : f32 to vector<8x32xf32>
    %250 = arith.addf %248, %249 : vector<8x32xf32>
    %251 = vector.extract_strided_slice %234 {offsets = [0, 64], sizes = [8, 32], strides = [1, 1]} : vector<8x128xf32> to vector<8x32xf32>
    %252 = math.tanh %251 : vector<8x32xf32>
    %253 = vector.extract_strided_slice %234 {offsets = [0, 96], sizes = [8, 32], strides = [1, 1]} : vector<8x128xf32> to vector<8x32xf32>
    %cst_83 = arith.constant 5.000000e-01 : f32
    %254 = vector.broadcast %cst_83 : f32 to vector<8x32xf32>
    %255 = arith.mulf %254, %253 : vector<8x32xf32>
    %256 = math.tanh %255 : vector<8x32xf32>
    %cst_84 = arith.constant 5.000000e-01 : f32
    %257 = vector.broadcast %cst_84 : f32 to vector<8x32xf32>
    %258 = arith.mulf %257, %256 : vector<8x32xf32>
    %cst_85 = arith.constant 5.000000e-01 : f32
    %259 = vector.broadcast %cst_85 : f32 to vector<8x32xf32>
    %260 = arith.addf %258, %259 : vector<8x32xf32>
    %261 = arith.mulf %250, %190 : vector<8x32xf32>
    %262 = arith.mulf %242, %252 : vector<8x32xf32>
    %263 = arith.addf %261, %262 : vector<8x32xf32>
    %264 = math.tanh %263 : vector<8x32xf32>
    %265 = arith.mulf %260, %264 : vector<8x32xf32>
    %266 = tpu.concatenate %265, %229 in 1 : vector<8x32xf32>, vector<8x32xf32> -> vector<8x64xf32>
    %267 = arith.truncf %266 : vector<8x64xf32> to vector<8x64xbf16>
    %cst_86 = arith.constant dense<0.000000e+00> : vector<8x256xf32>
    %268 = tpu.matmul %267, %6, %cst_86 {dimension_numbers = #tpu.dot_dimension_numbers<[1], [0], [0], [1], [0, 0, 1, 1], [], []>} : vector<8x64xbf16>, vector<64x256xbf16>, vector<8x256xf32> -> vector<8x256xf32>
    %269 = vector.extract_strided_slice %268 {offsets = [0, 0], sizes = [8, 128], strides = [1, 1]} : vector<8x256xf32> to vector<8x128xf32>
    %270 = arith.addf %269, %9 : vector<8x128xf32>
    %271 = vector.extract_strided_slice %268 {offsets = [0, 128], sizes = [8, 128], strides = [1, 1]} : vector<8x256xf32> to vector<8x128xf32>
    %272 = vector.extract_strided_slice %270 {offsets = [0, 0], sizes = [8, 32], strides = [1, 1]} : vector<8x128xf32> to vector<8x32xf32>
    %cst_87 = arith.constant 5.000000e-01 : f32
    %273 = vector.broadcast %cst_87 : f32 to vector<8x32xf32>
    %274 = arith.mulf %273, %272 : vector<8x32xf32>
    %275 = math.tanh %274 : vector<8x32xf32>
    %cst_88 = arith.constant 5.000000e-01 : f32
    %276 = vector.broadcast %cst_88 : f32 to vector<8x32xf32>
    %277 = arith.mulf %276, %275 : vector<8x32xf32>
    %cst_89 = arith.constant 5.000000e-01 : f32
    %278 = vector.broadcast %cst_89 : f32 to vector<8x32xf32>
    %279 = arith.addf %277, %278 : vector<8x32xf32>
    %280 = vector.extract_strided_slice %270 {offsets = [0, 32], sizes = [8, 32], strides = [1, 1]} : vector<8x128xf32> to vector<8x32xf32>
    %cst_90 = arith.constant 5.000000e-01 : f32
    %281 = vector.broadcast %cst_90 : f32 to vector<8x32xf32>
    %282 = arith.mulf %281, %280 : vector<8x32xf32>
    %283 = math.tanh %282 : vector<8x32xf32>
    %cst_91 = arith.constant 5.000000e-01 : f32
    %284 = vector.broadcast %cst_91 : f32 to vector<8x32xf32>
    %285 = arith.mulf %284, %283 : vector<8x32xf32>
    %cst_92 = arith.constant 5.000000e-01 : f32
    %286 = vector.broadcast %cst_92 : f32 to vector<8x32xf32>
    %287 = arith.addf %285, %286 : vector<8x32xf32>
    %288 = vector.extract_strided_slice %270 {offsets = [0, 64], sizes = [8, 32], strides = [1, 1]} : vector<8x128xf32> to vector<8x32xf32>
    %289 = math.tanh %288 : vector<8x32xf32>
    %290 = vector.extract_strided_slice %270 {offsets = [0, 96], sizes = [8, 32], strides = [1, 1]} : vector<8x128xf32> to vector<8x32xf32>
    %cst_93 = arith.constant 5.000000e-01 : f32
    %291 = vector.broadcast %cst_93 : f32 to vector<8x32xf32>
    %292 = arith.mulf %291, %290 : vector<8x32xf32>
    %293 = math.tanh %292 : vector<8x32xf32>
    %cst_94 = arith.constant 5.000000e-01 : f32
    %294 = vector.broadcast %cst_94 : f32 to vector<8x32xf32>
    %295 = arith.mulf %294, %293 : vector<8x32xf32>
    %cst_95 = arith.constant 5.000000e-01 : f32
    %296 = vector.broadcast %cst_95 : f32 to vector<8x32xf32>
    %297 = arith.addf %295, %296 : vector<8x32xf32>
    %298 = arith.mulf %287, %227 : vector<8x32xf32>
    %299 = arith.mulf %279, %289 : vector<8x32xf32>
    %300 = arith.addf %298, %299 : vector<8x32xf32>
    %301 = math.tanh %300 : vector<8x32xf32>
    %302 = arith.mulf %297, %301 : vector<8x32xf32>
    %c3 = arith.constant 3 : index
    %c0_96 = arith.constant 0 : index
    %c0_97 = arith.constant 0 : index
    %303 = vector.load %arg5[%c3, %c0_96, %c0_97] : memref<12x8x32xf32, #tpu.memory_space<vmem>>, vector<1x8x32xf32>
    %304 = vector.shape_cast %303 : vector<1x8x32xf32> to vector<8x32xf32>
    %305 = vector.shape_cast %302 : vector<8x32xf32> to vector<1x8x32xf32>
    tpu.vector_store %arg5[%c3, %c0_96, %c0_97], %305 {strides = array<i32>} : memref<12x8x32xf32, #tpu.memory_space<vmem>>, vector<1x8x32xf32>,
    %306 = vector.extract_strided_slice %5 {offsets = [32, 0], sizes = [8, 128], strides = [1, 1]} : vector<96x128xf32> to vector<8x128xf32>
    %307 = arith.addf %306, %271 : vector<8x128xf32>
    %308 = vector.extract_strided_slice %307 {offsets = [0, 0], sizes = [8, 32], strides = [1, 1]} : vector<8x128xf32> to vector<8x32xf32>
    %cst_98 = arith.constant 5.000000e-01 : f32
    %309 = vector.broadcast %cst_98 : f32 to vector<8x32xf32>
    %310 = arith.mulf %309, %308 : vector<8x32xf32>
    %311 = math.tanh %310 : vector<8x32xf32>
    %cst_99 = arith.constant 5.000000e-01 : f32
    %312 = vector.broadcast %cst_99 : f32 to vector<8x32xf32>
    %313 = arith.mulf %312, %311 : vector<8x32xf32>
    %cst_100 = arith.constant 5.000000e-01 : f32
    %314 = vector.broadcast %cst_100 : f32 to vector<8x32xf32>
    %315 = arith.addf %313, %314 : vector<8x32xf32>
    %316 = vector.extract_strided_slice %307 {offsets = [0, 32], sizes = [8, 32], strides = [1, 1]} : vector<8x128xf32> to vector<8x32xf32>
    %cst_101 = arith.constant 5.000000e-01 : f32
    %317 = vector.broadcast %cst_101 : f32 to vector<8x32xf32>
    %318 = arith.mulf %317, %316 : vector<8x32xf32>
    %319 = math.tanh %318 : vector<8x32xf32>
    %cst_102 = arith.constant 5.000000e-01 : f32
    %320 = vector.broadcast %cst_102 : f32 to vector<8x32xf32>
    %321 = arith.mulf %320, %319 : vector<8x32xf32>
    %cst_103 = arith.constant 5.000000e-01 : f32
    %322 = vector.broadcast %cst_103 : f32 to vector<8x32xf32>
    %323 = arith.addf %321, %322 : vector<8x32xf32>
    %324 = vector.extract_strided_slice %307 {offsets = [0, 64], sizes = [8, 32], strides = [1, 1]} : vector<8x128xf32> to vector<8x32xf32>
    %325 = math.tanh %324 : vector<8x32xf32>
    %326 = vector.extract_strided_slice %307 {offsets = [0, 96], sizes = [8, 32], strides = [1, 1]} : vector<8x128xf32> to vector<8x32xf32>
    %cst_104 = arith.constant 5.000000e-01 : f32
    %327 = vector.broadcast %cst_104 : f32 to vector<8x32xf32>
    %328 = arith.mulf %327, %326 : vector<8x32xf32>
    %329 = math.tanh %328 : vector<8x32xf32>
    %cst_105 = arith.constant 5.000000e-01 : f32
    %330 = vector.broadcast %cst_105 : f32 to vector<8x32xf32>
    %331 = arith.mulf %330, %329 : vector<8x32xf32>
    %cst_106 = arith.constant 5.000000e-01 : f32
    %332 = vector.broadcast %cst_106 : f32 to vector<8x32xf32>
    %333 = arith.addf %331, %332 : vector<8x32xf32>
    %334 = arith.mulf %323, %263 : vector<8x32xf32>
    %335 = arith.mulf %315, %325 : vector<8x32xf32>
    %336 = arith.addf %334, %335 : vector<8x32xf32>
    %337 = math.tanh %336 : vector<8x32xf32>
    %338 = arith.mulf %333, %337 : vector<8x32xf32>
    %339 = tpu.concatenate %338, %302 in 1 : vector<8x32xf32>, vector<8x32xf32> -> vector<8x64xf32>
    %340 = arith.truncf %339 : vector<8x64xf32> to vector<8x64xbf16>
    %cst_107 = arith.constant dense<0.000000e+00> : vector<8x256xf32>
    %341 = tpu.matmul %340, %6, %cst_107 {dimension_numbers = #tpu.dot_dimension_numbers<[1], [0], [0], [1], [0, 0, 1, 1], [], []>} : vector<8x64xbf16>, vector<64x256xbf16>, vector<8x256xf32> -> vector<8x256xf32>
    %342 = vector.extract_strided_slice %341 {offsets = [0, 0], sizes = [8, 128], strides = [1, 1]} : vector<8x256xf32> to vector<8x128xf32>
    %343 = arith.addf %342, %9 : vector<8x128xf32>
    %344 = vector.extract_strided_slice %341 {offsets = [0, 128], sizes = [8, 128], strides = [1, 1]} : vector<8x256xf32> to vector<8x128xf32>
    %345 = vector.extract_strided_slice %343 {offsets = [0, 0], sizes = [8, 32], strides = [1, 1]} : vector<8x128xf32> to vector<8x32xf32>
    %cst_108 = arith.constant 5.000000e-01 : f32
    %346 = vector.broadcast %cst_108 : f32 to vector<8x32xf32>
    %347 = arith.mulf %346, %345 : vector<8x32xf32>
    %348 = math.tanh %347 : vector<8x32xf32>
    %cst_109 = arith.constant 5.000000e-01 : f32
    %349 = vector.broadcast %cst_109 : f32 to vector<8x32xf32>
    %350 = arith.mulf %349, %348 : vector<8x32xf32>
    %cst_110 = arith.constant 5.000000e-01 : f32
    %351 = vector.broadcast %cst_110 : f32 to vector<8x32xf32>
    %352 = arith.addf %350, %351 : vector<8x32xf32>
    %353 = vector.extract_strided_slice %343 {offsets = [0, 32], sizes = [8, 32], strides = [1, 1]} : vector<8x128xf32> to vector<8x32xf32>
    %cst_111 = arith.constant 5.000000e-01 : f32
    %354 = vector.broadcast %cst_111 : f32 to vector<8x32xf32>
    %355 = arith.mulf %354, %353 : vector<8x32xf32>
    %356 = math.tanh %355 : vector<8x32xf32>
    %cst_112 = arith.constant 5.000000e-01 : f32
    %357 = vector.broadcast %cst_112 : f32 to vector<8x32xf32>
    %358 = arith.mulf %357, %356 : vector<8x32xf32>
    %cst_113 = arith.constant 5.000000e-01 : f32
    %359 = vector.broadcast %cst_113 : f32 to vector<8x32xf32>
    %360 = arith.addf %358, %359 : vector<8x32xf32>
    %361 = vector.extract_strided_slice %343 {offsets = [0, 64], sizes = [8, 32], strides = [1, 1]} : vector<8x128xf32> to vector<8x32xf32>
    %362 = math.tanh %361 : vector<8x32xf32>
    %363 = vector.extract_strided_slice %343 {offsets = [0, 96], sizes = [8, 32], strides = [1, 1]} : vector<8x128xf32> to vector<8x32xf32>
    %cst_114 = arith.constant 5.000000e-01 : f32
    %364 = vector.broadcast %cst_114 : f32 to vector<8x32xf32>
    %365 = arith.mulf %364, %363 : vector<8x32xf32>
    %366 = math.tanh %365 : vector<8x32xf32>
    %cst_115 = arith.constant 5.000000e-01 : f32
    %367 = vector.broadcast %cst_115 : f32 to vector<8x32xf32>
    %368 = arith.mulf %367, %366 : vector<8x32xf32>
    %cst_116 = arith.constant 5.000000e-01 : f32
    %369 = vector.broadcast %cst_116 : f32 to vector<8x32xf32>
    %370 = arith.addf %368, %369 : vector<8x32xf32>
    %371 = arith.mulf %360, %300 : vector<8x32xf32>
    %372 = arith.mulf %352, %362 : vector<8x32xf32>
    %373 = arith.addf %371, %372 : vector<8x32xf32>
    %374 = math.tanh %373 : vector<8x32xf32>
    %375 = arith.mulf %370, %374 : vector<8x32xf32>
    %c4 = arith.constant 4 : index
    %c0_117 = arith.constant 0 : index
    %c0_118 = arith.constant 0 : index
    %376 = vector.load %arg5[%c4, %c0_117, %c0_118] : memref<12x8x32xf32, #tpu.memory_space<vmem>>, vector<1x8x32xf32>
    %377 = vector.shape_cast %376 : vector<1x8x32xf32> to vector<8x32xf32>
    %378 = vector.shape_cast %375 : vector<8x32xf32> to vector<1x8x32xf32>
    tpu.vector_store %arg5[%c4, %c0_117, %c0_118], %378 {strides = array<i32>} : memref<12x8x32xf32, #tpu.memory_space<vmem>>, vector<1x8x32xf32>,
    %379 = vector.extract_strided_slice %5 {offsets = [40, 0], sizes = [8, 128], strides = [1, 1]} : vector<96x128xf32> to vector<8x128xf32>
    %380 = arith.addf %379, %344 : vector<8x128xf32>
    %381 = vector.extract_strided_slice %380 {offsets = [0, 0], sizes = [8, 32], strides = [1, 1]} : vector<8x128xf32> to vector<8x32xf32>
    %cst_119 = arith.constant 5.000000e-01 : f32
    %382 = vector.broadcast %cst_119 : f32 to vector<8x32xf32>
    %383 = arith.mulf %382, %381 : vector<8x32xf32>
    %384 = math.tanh %383 : vector<8x32xf32>
    %cst_120 = arith.constant 5.000000e-01 : f32
    %385 = vector.broadcast %cst_120 : f32 to vector<8x32xf32>
    %386 = arith.mulf %385, %384 : vector<8x32xf32>
    %cst_121 = arith.constant 5.000000e-01 : f32
    %387 = vector.broadcast %cst_121 : f32 to vector<8x32xf32>
    %388 = arith.addf %386, %387 : vector<8x32xf32>
    %389 = vector.extract_strided_slice %380 {offsets = [0, 32], sizes = [8, 32], strides = [1, 1]} : vector<8x128xf32> to vector<8x32xf32>
    %cst_122 = arith.constant 5.000000e-01 : f32
    %390 = vector.broadcast %cst_122 : f32 to vector<8x32xf32>
    %391 = arith.mulf %390, %389 : vector<8x32xf32>
    %392 = math.tanh %391 : vector<8x32xf32>
    %cst_123 = arith.constant 5.000000e-01 : f32
    %393 = vector.broadcast %cst_123 : f32 to vector<8x32xf32>
    %394 = arith.mulf %393, %392 : vector<8x32xf32>
    %cst_124 = arith.constant 5.000000e-01 : f32
    %395 = vector.broadcast %cst_124 : f32 to vector<8x32xf32>
    %396 = arith.addf %394, %395 : vector<8x32xf32>
    %397 = vector.extract_strided_slice %380 {offsets = [0, 64], sizes = [8, 32], strides = [1, 1]} : vector<8x128xf32> to vector<8x32xf32>
    %398 = math.tanh %397 : vector<8x32xf32>
    %399 = vector.extract_strided_slice %380 {offsets = [0, 96], sizes = [8, 32], strides = [1, 1]} : vector<8x128xf32> to vector<8x32xf32>
    %cst_125 = arith.constant 5.000000e-01 : f32
    %400 = vector.broadcast %cst_125 : f32 to vector<8x32xf32>
    %401 = arith.mulf %400, %399 : vector<8x32xf32>
    %402 = math.tanh %401 : vector<8x32xf32>
    %cst_126 = arith.constant 5.000000e-01 : f32
    %403 = vector.broadcast %cst_126 : f32 to vector<8x32xf32>
    %404 = arith.mulf %403, %402 : vector<8x32xf32>
    %cst_127 = arith.constant 5.000000e-01 : f32
    %405 = vector.broadcast %cst_127 : f32 to vector<8x32xf32>
    %406 = arith.addf %404, %405 : vector<8x32xf32>
    %407 = arith.mulf %396, %336 : vector<8x32xf32>
    %408 = arith.mulf %388, %398 : vector<8x32xf32>
    %409 = arith.addf %407, %408 : vector<8x32xf32>
    %410 = math.tanh %409 : vector<8x32xf32>
    %411 = arith.mulf %406, %410 : vector<8x32xf32>
    %412 = tpu.concatenate %411, %375 in 1 : vector<8x32xf32>, vector<8x32xf32> -> vector<8x64xf32>
    %413 = arith.truncf %412 : vector<8x64xf32> to vector<8x64xbf16>
    %cst_128 = arith.constant dense<0.000000e+00> : vector<8x256xf32>
    %414 = tpu.matmul %413, %6, %cst_128 {dimension_numbers = #tpu.dot_dimension_numbers<[1], [0], [0], [1], [0, 0, 1, 1], [], []>} : vector<8x64xbf16>, vector<64x256xbf16>, vector<8x256xf32> -> vector<8x256xf32>
    %415 = vector.extract_strided_slice %414 {offsets = [0, 0], sizes = [8, 128], strides = [1, 1]} : vector<8x256xf32> to vector<8x128xf32>
    %416 = arith.addf %415, %9 : vector<8x128xf32>
    %417 = vector.extract_strided_slice %414 {offsets = [0, 128], sizes = [8, 128], strides = [1, 1]} : vector<8x256xf32> to vector<8x128xf32>
    %418 = vector.extract_strided_slice %416 {offsets = [0, 0], sizes = [8, 32], strides = [1, 1]} : vector<8x128xf32> to vector<8x32xf32>
    %cst_129 = arith.constant 5.000000e-01 : f32
    %419 = vector.broadcast %cst_129 : f32 to vector<8x32xf32>
    %420 = arith.mulf %419, %418 : vector<8x32xf32>
    %421 = math.tanh %420 : vector<8x32xf32>
    %cst_130 = arith.constant 5.000000e-01 : f32
    %422 = vector.broadcast %cst_130 : f32 to vector<8x32xf32>
    %423 = arith.mulf %422, %421 : vector<8x32xf32>
    %cst_131 = arith.constant 5.000000e-01 : f32
    %424 = vector.broadcast %cst_131 : f32 to vector<8x32xf32>
    %425 = arith.addf %423, %424 : vector<8x32xf32>
    %426 = vector.extract_strided_slice %416 {offsets = [0, 32], sizes = [8, 32], strides = [1, 1]} : vector<8x128xf32> to vector<8x32xf32>
    %cst_132 = arith.constant 5.000000e-01 : f32
    %427 = vector.broadcast %cst_132 : f32 to vector<8x32xf32>
    %428 = arith.mulf %427, %426 : vector<8x32xf32>
    %429 = math.tanh %428 : vector<8x32xf32>
    %cst_133 = arith.constant 5.000000e-01 : f32
    %430 = vector.broadcast %cst_133 : f32 to vector<8x32xf32>
    %431 = arith.mulf %430, %429 : vector<8x32xf32>
    %cst_134 = arith.constant 5.000000e-01 : f32
    %432 = vector.broadcast %cst_134 : f32 to vector<8x32xf32>
    %433 = arith.addf %431, %432 : vector<8x32xf32>
    %434 = vector.extract_strided_slice %416 {offsets = [0, 64], sizes = [8, 32], strides = [1, 1]} : vector<8x128xf32> to vector<8x32xf32>
    %435 = math.tanh %434 : vector<8x32xf32>
    %436 = vector.extract_strided_slice %416 {offsets = [0, 96], sizes = [8, 32], strides = [1, 1]} : vector<8x128xf32> to vector<8x32xf32>
    %cst_135 = arith.constant 5.000000e-01 : f32
    %437 = vector.broadcast %cst_135 : f32 to vector<8x32xf32>
    %438 = arith.mulf %437, %436 : vector<8x32xf32>
    %439 = math.tanh %438 : vector<8x32xf32>
    %cst_136 = arith.constant 5.000000e-01 : f32
    %440 = vector.broadcast %cst_136 : f32 to vector<8x32xf32>
    %441 = arith.mulf %440, %439 : vector<8x32xf32>
    %cst_137 = arith.constant 5.000000e-01 : f32
    %442 = vector.broadcast %cst_137 : f32 to vector<8x32xf32>
    %443 = arith.addf %441, %442 : vector<8x32xf32>
    %444 = arith.mulf %433, %373 : vector<8x32xf32>
    %445 = arith.mulf %425, %435 : vector<8x32xf32>
    %446 = arith.addf %444, %445 : vector<8x32xf32>
    %447 = math.tanh %446 : vector<8x32xf32>
    %448 = arith.mulf %443, %447 : vector<8x32xf32>
    %c5 = arith.constant 5 : index
    %c0_138 = arith.constant 0 : index
    %c0_139 = arith.constant 0 : index
    %449 = vector.load %arg5[%c5, %c0_138, %c0_139] : memref<12x8x32xf32, #tpu.memory_space<vmem>>, vector<1x8x32xf32>
    %450 = vector.shape_cast %449 : vector<1x8x32xf32> to vector<8x32xf32>
    %451 = vector.shape_cast %448 : vector<8x32xf32> to vector<1x8x32xf32>
    tpu.vector_store %arg5[%c5, %c0_138, %c0_139], %451 {strides = array<i32>} : memref<12x8x32xf32, #tpu.memory_space<vmem>>, vector<1x8x32xf32>,
    %452 = vector.extract_strided_slice %5 {offsets = [48, 0], sizes = [8, 128], strides = [1, 1]} : vector<96x128xf32> to vector<8x128xf32>
    %453 = arith.addf %452, %417 : vector<8x128xf32>
    %454 = vector.extract_strided_slice %453 {offsets = [0, 0], sizes = [8, 32], strides = [1, 1]} : vector<8x128xf32> to vector<8x32xf32>
    %cst_140 = arith.constant 5.000000e-01 : f32
    %455 = vector.broadcast %cst_140 : f32 to vector<8x32xf32>
    %456 = arith.mulf %455, %454 : vector<8x32xf32>
    %457 = math.tanh %456 : vector<8x32xf32>
    %cst_141 = arith.constant 5.000000e-01 : f32
    %458 = vector.broadcast %cst_141 : f32 to vector<8x32xf32>
    %459 = arith.mulf %458, %457 : vector<8x32xf32>
    %cst_142 = arith.constant 5.000000e-01 : f32
    %460 = vector.broadcast %cst_142 : f32 to vector<8x32xf32>
    %461 = arith.addf %459, %460 : vector<8x32xf32>
    %462 = vector.extract_strided_slice %453 {offsets = [0, 32], sizes = [8, 32], strides = [1, 1]} : vector<8x128xf32> to vector<8x32xf32>
    %cst_143 = arith.constant 5.000000e-01 : f32
    %463 = vector.broadcast %cst_143 : f32 to vector<8x32xf32>
    %464 = arith.mulf %463, %462 : vector<8x32xf32>
    %465 = math.tanh %464 : vector<8x32xf32>
    %cst_144 = arith.constant 5.000000e-01 : f32
    %466 = vector.broadcast %cst_144 : f32 to vector<8x32xf32>
    %467 = arith.mulf %466, %465 : vector<8x32xf32>
    %cst_145 = arith.constant 5.000000e-01 : f32
    %468 = vector.broadcast %cst_145 : f32 to vector<8x32xf32>
    %469 = arith.addf %467, %468 : vector<8x32xf32>
    %470 = vector.extract_strided_slice %453 {offsets = [0, 64], sizes = [8, 32], strides = [1, 1]} : vector<8x128xf32> to vector<8x32xf32>
    %471 = math.tanh %470 : vector<8x32xf32>
    %472 = vector.extract_strided_slice %453 {offsets = [0, 96], sizes = [8, 32], strides = [1, 1]} : vector<8x128xf32> to vector<8x32xf32>
    %cst_146 = arith.constant 5.000000e-01 : f32
    %473 = vector.broadcast %cst_146 : f32 to vector<8x32xf32>
    %474 = arith.mulf %473, %472 : vector<8x32xf32>
    %475 = math.tanh %474 : vector<8x32xf32>
    %cst_147 = arith.constant 5.000000e-01 : f32
    %476 = vector.broadcast %cst_147 : f32 to vector<8x32xf32>
    %477 = arith.mulf %476, %475 : vector<8x32xf32>
    %cst_148 = arith.constant 5.000000e-01 : f32
    %478 = vector.broadcast %cst_148 : f32 to vector<8x32xf32>
    %479 = arith.addf %477, %478 : vector<8x32xf32>
    %480 = arith.mulf %469, %409 : vector<8x32xf32>
    %481 = arith.mulf %461, %471 : vector<8x32xf32>
    %482 = arith.addf %480, %481 : vector<8x32xf32>
    %483 = math.tanh %482 : vector<8x32xf32>
    %484 = arith.mulf %479, %483 : vector<8x32xf32>
    %485 = tpu.concatenate %484, %448 in 1 : vector<8x32xf32>, vector<8x32xf32> -> vector<8x64xf32>
    %486 = arith.truncf %485 : vector<8x64xf32> to vector<8x64xbf16>
    %cst_149 = arith.constant dense<0.000000e+00> : vector<8x256xf32>
    %487 = tpu.matmul %486, %6, %cst_149 {dimension_numbers = #tpu.dot_dimension_numbers<[1], [0], [0], [1], [0, 0, 1, 1], [], []>} : vector<8x64xbf16>, vector<64x256xbf16>, vector<8x256xf32> -> vector<8x256xf32>
    %488 = vector.extract_strided_slice %487 {offsets = [0, 0], sizes = [8, 128], strides = [1, 1]} : vector<8x256xf32> to vector<8x128xf32>
    %489 = arith.addf %488, %9 : vector<8x128xf32>
    %490 = vector.extract_strided_slice %487 {offsets = [0, 128], sizes = [8, 128], strides = [1, 1]} : vector<8x256xf32> to vector<8x128xf32>
    %491 = vector.extract_strided_slice %489 {offsets = [0, 0], sizes = [8, 32], strides = [1, 1]} : vector<8x128xf32> to vector<8x32xf32>
    %cst_150 = arith.constant 5.000000e-01 : f32
    %492 = vector.broadcast %cst_150 : f32 to vector<8x32xf32>
    %493 = arith.mulf %492, %491 : vector<8x32xf32>
    %494 = math.tanh %493 : vector<8x32xf32>
    %cst_151 = arith.constant 5.000000e-01 : f32
    %495 = vector.broadcast %cst_151 : f32 to vector<8x32xf32>
    %496 = arith.mulf %495, %494 : vector<8x32xf32>
    %cst_152 = arith.constant 5.000000e-01 : f32
    %497 = vector.broadcast %cst_152 : f32 to vector<8x32xf32>
    %498 = arith.addf %496, %497 : vector<8x32xf32>
    %499 = vector.extract_strided_slice %489 {offsets = [0, 32], sizes = [8, 32], strides = [1, 1]} : vector<8x128xf32> to vector<8x32xf32>
    %cst_153 = arith.constant 5.000000e-01 : f32
    %500 = vector.broadcast %cst_153 : f32 to vector<8x32xf32>
    %501 = arith.mulf %500, %499 : vector<8x32xf32>
    %502 = math.tanh %501 : vector<8x32xf32>
    %cst_154 = arith.constant 5.000000e-01 : f32
    %503 = vector.broadcast %cst_154 : f32 to vector<8x32xf32>
    %504 = arith.mulf %503, %502 : vector<8x32xf32>
    %cst_155 = arith.constant 5.000000e-01 : f32
    %505 = vector.broadcast %cst_155 : f32 to vector<8x32xf32>
    %506 = arith.addf %504, %505 : vector<8x32xf32>
    %507 = vector.extract_strided_slice %489 {offsets = [0, 64], sizes = [8, 32], strides = [1, 1]} : vector<8x128xf32> to vector<8x32xf32>
    %508 = math.tanh %507 : vector<8x32xf32>
    %509 = vector.extract_strided_slice %489 {offsets = [0, 96], sizes = [8, 32], strides = [1, 1]} : vector<8x128xf32> to vector<8x32xf32>
    %cst_156 = arith.constant 5.000000e-01 : f32
    %510 = vector.broadcast %cst_156 : f32 to vector<8x32xf32>
    %511 = arith.mulf %510, %509 : vector<8x32xf32>
    %512 = math.tanh %511 : vector<8x32xf32>
    %cst_157 = arith.constant 5.000000e-01 : f32
    %513 = vector.broadcast %cst_157 : f32 to vector<8x32xf32>
    %514 = arith.mulf %513, %512 : vector<8x32xf32>
    %cst_158 = arith.constant 5.000000e-01 : f32
    %515 = vector.broadcast %cst_158 : f32 to vector<8x32xf32>
    %516 = arith.addf %514, %515 : vector<8x32xf32>
    %517 = arith.mulf %506, %446 : vector<8x32xf32>
    %518 = arith.mulf %498, %508 : vector<8x32xf32>
    %519 = arith.addf %517, %518 : vector<8x32xf32>
    %520 = math.tanh %519 : vector<8x32xf32>
    %521 = arith.mulf %516, %520 : vector<8x32xf32>
    %c6 = arith.constant 6 : index
    %c0_159 = arith.constant 0 : index
    %c0_160 = arith.constant 0 : index
    %522 = vector.load %arg5[%c6, %c0_159, %c0_160] : memref<12x8x32xf32, #tpu.memory_space<vmem>>, vector<1x8x32xf32>
    %523 = vector.shape_cast %522 : vector<1x8x32xf32> to vector<8x32xf32>
    %524 = vector.shape_cast %521 : vector<8x32xf32> to vector<1x8x32xf32>
    tpu.vector_store %arg5[%c6, %c0_159, %c0_160], %524 {strides = array<i32>} : memref<12x8x32xf32, #tpu.memory_space<vmem>>, vector<1x8x32xf32>,
    %525 = vector.extract_strided_slice %5 {offsets = [56, 0], sizes = [8, 128], strides = [1, 1]} : vector<96x128xf32> to vector<8x128xf32>
    %526 = arith.addf %525, %490 : vector<8x128xf32>
    %527 = vector.extract_strided_slice %526 {offsets = [0, 0], sizes = [8, 32], strides = [1, 1]} : vector<8x128xf32> to vector<8x32xf32>
    %cst_161 = arith.constant 5.000000e-01 : f32
    %528 = vector.broadcast %cst_161 : f32 to vector<8x32xf32>
    %529 = arith.mulf %528, %527 : vector<8x32xf32>
    %530 = math.tanh %529 : vector<8x32xf32>
    %cst_162 = arith.constant 5.000000e-01 : f32
    %531 = vector.broadcast %cst_162 : f32 to vector<8x32xf32>
    %532 = arith.mulf %531, %530 : vector<8x32xf32>
    %cst_163 = arith.constant 5.000000e-01 : f32
    %533 = vector.broadcast %cst_163 : f32 to vector<8x32xf32>
    %534 = arith.addf %532, %533 : vector<8x32xf32>
    %535 = vector.extract_strided_slice %526 {offsets = [0, 32], sizes = [8, 32], strides = [1, 1]} : vector<8x128xf32> to vector<8x32xf32>
    %cst_164 = arith.constant 5.000000e-01 : f32
    %536 = vector.broadcast %cst_164 : f32 to vector<8x32xf32>
    %537 = arith.mulf %536, %535 : vector<8x32xf32>
    %538 = math.tanh %537 : vector<8x32xf32>
    %cst_165 = arith.constant 5.000000e-01 : f32
    %539 = vector.broadcast %cst_165 : f32 to vector<8x32xf32>
    %540 = arith.mulf %539, %538 : vector<8x32xf32>
    %cst_166 = arith.constant 5.000000e-01 : f32
    %541 = vector.broadcast %cst_166 : f32 to vector<8x32xf32>
    %542 = arith.addf %540, %541 : vector<8x32xf32>
    %543 = vector.extract_strided_slice %526 {offsets = [0, 64], sizes = [8, 32], strides = [1, 1]} : vector<8x128xf32> to vector<8x32xf32>
    %544 = math.tanh %543 : vector<8x32xf32>
    %545 = vector.extract_strided_slice %526 {offsets = [0, 96], sizes = [8, 32], strides = [1, 1]} : vector<8x128xf32> to vector<8x32xf32>
    %cst_167 = arith.constant 5.000000e-01 : f32
    %546 = vector.broadcast %cst_167 : f32 to vector<8x32xf32>
    %547 = arith.mulf %546, %545 : vector<8x32xf32>
    %548 = math.tanh %547 : vector<8x32xf32>
    %cst_168 = arith.constant 5.000000e-01 : f32
    %549 = vector.broadcast %cst_168 : f32 to vector<8x32xf32>
    %550 = arith.mulf %549, %548 : vector<8x32xf32>
    %cst_169 = arith.constant 5.000000e-01 : f32
    %551 = vector.broadcast %cst_169 : f32 to vector<8x32xf32>
    %552 = arith.addf %550, %551 : vector<8x32xf32>
    %553 = arith.mulf %542, %482 : vector<8x32xf32>
    %554 = arith.mulf %534, %544 : vector<8x32xf32>
    %555 = arith.addf %553, %554 : vector<8x32xf32>
    %556 = math.tanh %555 : vector<8x32xf32>
    %557 = arith.mulf %552, %556 : vector<8x32xf32>
    %558 = tpu.concatenate %557, %521 in 1 : vector<8x32xf32>, vector<8x32xf32> -> vector<8x64xf32>
    %559 = arith.truncf %558 : vector<8x64xf32> to vector<8x64xbf16>
    %cst_170 = arith.constant dense<0.000000e+00> : vector<8x256xf32>
    %560 = tpu.matmul %559, %6, %cst_170 {dimension_numbers = #tpu.dot_dimension_numbers<[1], [0], [0], [1], [0, 0, 1, 1], [], []>} : vector<8x64xbf16>, vector<64x256xbf16>, vector<8x256xf32> -> vector<8x256xf32>
    %561 = vector.extract_strided_slice %560 {offsets = [0, 0], sizes = [8, 128], strides = [1, 1]} : vector<8x256xf32> to vector<8x128xf32>
    %562 = arith.addf %561, %9 : vector<8x128xf32>
    %563 = vector.extract_strided_slice %560 {offsets = [0, 128], sizes = [8, 128], strides = [1, 1]} : vector<8x256xf32> to vector<8x128xf32>
    %564 = vector.extract_strided_slice %562 {offsets = [0, 0], sizes = [8, 32], strides = [1, 1]} : vector<8x128xf32> to vector<8x32xf32>
    %cst_171 = arith.constant 5.000000e-01 : f32
    %565 = vector.broadcast %cst_171 : f32 to vector<8x32xf32>
    %566 = arith.mulf %565, %564 : vector<8x32xf32>
    %567 = math.tanh %566 : vector<8x32xf32>
    %cst_172 = arith.constant 5.000000e-01 : f32
    %568 = vector.broadcast %cst_172 : f32 to vector<8x32xf32>
    %569 = arith.mulf %568, %567 : vector<8x32xf32>
    %cst_173 = arith.constant 5.000000e-01 : f32
    %570 = vector.broadcast %cst_173 : f32 to vector<8x32xf32>
    %571 = arith.addf %569, %570 : vector<8x32xf32>
    %572 = vector.extract_strided_slice %562 {offsets = [0, 32], sizes = [8, 32], strides = [1, 1]} : vector<8x128xf32> to vector<8x32xf32>
    %cst_174 = arith.constant 5.000000e-01 : f32
    %573 = vector.broadcast %cst_174 : f32 to vector<8x32xf32>
    %574 = arith.mulf %573, %572 : vector<8x32xf32>
    %575 = math.tanh %574 : vector<8x32xf32>
    %cst_175 = arith.constant 5.000000e-01 : f32
    %576 = vector.broadcast %cst_175 : f32 to vector<8x32xf32>
    %577 = arith.mulf %576, %575 : vector<8x32xf32>
    %cst_176 = arith.constant 5.000000e-01 : f32
    %578 = vector.broadcast %cst_176 : f32 to vector<8x32xf32>
    %579 = arith.addf %577, %578 : vector<8x32xf32>
    %580 = vector.extract_strided_slice %562 {offsets = [0, 64], sizes = [8, 32], strides = [1, 1]} : vector<8x128xf32> to vector<8x32xf32>
    %581 = math.tanh %580 : vector<8x32xf32>
    %582 = vector.extract_strided_slice %562 {offsets = [0, 96], sizes = [8, 32], strides = [1, 1]} : vector<8x128xf32> to vector<8x32xf32>
    %cst_177 = arith.constant 5.000000e-01 : f32
    %583 = vector.broadcast %cst_177 : f32 to vector<8x32xf32>
    %584 = arith.mulf %583, %582 : vector<8x32xf32>
    %585 = math.tanh %584 : vector<8x32xf32>
    %cst_178 = arith.constant 5.000000e-01 : f32
    %586 = vector.broadcast %cst_178 : f32 to vector<8x32xf32>
    %587 = arith.mulf %586, %585 : vector<8x32xf32>
    %cst_179 = arith.constant 5.000000e-01 : f32
    %588 = vector.broadcast %cst_179 : f32 to vector<8x32xf32>
    %589 = arith.addf %587, %588 : vector<8x32xf32>
    %590 = arith.mulf %579, %519 : vector<8x32xf32>
    %591 = arith.mulf %571, %581 : vector<8x32xf32>
    %592 = arith.addf %590, %591 : vector<8x32xf32>
    %593 = math.tanh %592 : vector<8x32xf32>
    %594 = arith.mulf %589, %593 : vector<8x32xf32>
    %c7 = arith.constant 7 : index
    %c0_180 = arith.constant 0 : index
    %c0_181 = arith.constant 0 : index
    %595 = vector.load %arg5[%c7, %c0_180, %c0_181] : memref<12x8x32xf32, #tpu.memory_space<vmem>>, vector<1x8x32xf32>
    %596 = vector.shape_cast %595 : vector<1x8x32xf32> to vector<8x32xf32>
    %597 = vector.shape_cast %594 : vector<8x32xf32> to vector<1x8x32xf32>
    tpu.vector_store %arg5[%c7, %c0_180, %c0_181], %597 {strides = array<i32>} : memref<12x8x32xf32, #tpu.memory_space<vmem>>, vector<1x8x32xf32>,
    %598 = vector.extract_strided_slice %5 {offsets = [64, 0], sizes = [8, 128], strides = [1, 1]} : vector<96x128xf32> to vector<8x128xf32>
    %599 = arith.addf %598, %563 : vector<8x128xf32>
    %600 = vector.extract_strided_slice %599 {offsets = [0, 0], sizes = [8, 32], strides = [1, 1]} : vector<8x128xf32> to vector<8x32xf32>
    %cst_182 = arith.constant 5.000000e-01 : f32
    %601 = vector.broadcast %cst_182 : f32 to vector<8x32xf32>
    %602 = arith.mulf %601, %600 : vector<8x32xf32>
    %603 = math.tanh %602 : vector<8x32xf32>
    %cst_183 = arith.constant 5.000000e-01 : f32
    %604 = vector.broadcast %cst_183 : f32 to vector<8x32xf32>
    %605 = arith.mulf %604, %603 : vector<8x32xf32>
    %cst_184 = arith.constant 5.000000e-01 : f32
    %606 = vector.broadcast %cst_184 : f32 to vector<8x32xf32>
    %607 = arith.addf %605, %606 : vector<8x32xf32>
    %608 = vector.extract_strided_slice %599 {offsets = [0, 32], sizes = [8, 32], strides = [1, 1]} : vector<8x128xf32> to vector<8x32xf32>
    %cst_185 = arith.constant 5.000000e-01 : f32
    %609 = vector.broadcast %cst_185 : f32 to vector<8x32xf32>
    %610 = arith.mulf %609, %608 : vector<8x32xf32>
    %611 = math.tanh %610 : vector<8x32xf32>
    %cst_186 = arith.constant 5.000000e-01 : f32
    %612 = vector.broadcast %cst_186 : f32 to vector<8x32xf32>
    %613 = arith.mulf %612, %611 : vector<8x32xf32>
    %cst_187 = arith.constant 5.000000e-01 : f32
    %614 = vector.broadcast %cst_187 : f32 to vector<8x32xf32>
    %615 = arith.addf %613, %614 : vector<8x32xf32>
    %616 = vector.extract_strided_slice %599 {offsets = [0, 64], sizes = [8, 32], strides = [1, 1]} : vector<8x128xf32> to vector<8x32xf32>
    %617 = math.tanh %616 : vector<8x32xf32>
    %618 = vector.extract_strided_slice %599 {offsets = [0, 96], sizes = [8, 32], strides = [1, 1]} : vector<8x128xf32> to vector<8x32xf32>
    %cst_188 = arith.constant 5.000000e-01 : f32
    %619 = vector.broadcast %cst_188 : f32 to vector<8x32xf32>
    %620 = arith.mulf %619, %618 : vector<8x32xf32>
    %621 = math.tanh %620 : vector<8x32xf32>
    %cst_189 = arith.constant 5.000000e-01 : f32
    %622 = vector.broadcast %cst_189 : f32 to vector<8x32xf32>
    %623 = arith.mulf %622, %621 : vector<8x32xf32>
    %cst_190 = arith.constant 5.000000e-01 : f32
    %624 = vector.broadcast %cst_190 : f32 to vector<8x32xf32>
    %625 = arith.addf %623, %624 : vector<8x32xf32>
    %626 = arith.mulf %615, %555 : vector<8x32xf32>
    %627 = arith.mulf %607, %617 : vector<8x32xf32>
    %628 = arith.addf %626, %627 : vector<8x32xf32>
    %629 = math.tanh %628 : vector<8x32xf32>
    %630 = arith.mulf %625, %629 : vector<8x32xf32>
    %631 = tpu.concatenate %630, %594 in 1 : vector<8x32xf32>, vector<8x32xf32> -> vector<8x64xf32>
    %632 = arith.truncf %631 : vector<8x64xf32> to vector<8x64xbf16>
    %cst_191 = arith.constant dense<0.000000e+00> : vector<8x256xf32>
    %633 = tpu.matmul %632, %6, %cst_191 {dimension_numbers = #tpu.dot_dimension_numbers<[1], [0], [0], [1], [0, 0, 1, 1], [], []>} : vector<8x64xbf16>, vector<64x256xbf16>, vector<8x256xf32> -> vector<8x256xf32>
    %634 = vector.extract_strided_slice %633 {offsets = [0, 0], sizes = [8, 128], strides = [1, 1]} : vector<8x256xf32> to vector<8x128xf32>
    %635 = arith.addf %634, %9 : vector<8x128xf32>
    %636 = vector.extract_strided_slice %633 {offsets = [0, 128], sizes = [8, 128], strides = [1, 1]} : vector<8x256xf32> to vector<8x128xf32>
    %637 = vector.extract_strided_slice %635 {offsets = [0, 0], sizes = [8, 32], strides = [1, 1]} : vector<8x128xf32> to vector<8x32xf32>
    %cst_192 = arith.constant 5.000000e-01 : f32
    %638 = vector.broadcast %cst_192 : f32 to vector<8x32xf32>
    %639 = arith.mulf %638, %637 : vector<8x32xf32>
    %640 = math.tanh %639 : vector<8x32xf32>
    %cst_193 = arith.constant 5.000000e-01 : f32
    %641 = vector.broadcast %cst_193 : f32 to vector<8x32xf32>
    %642 = arith.mulf %641, %640 : vector<8x32xf32>
    %cst_194 = arith.constant 5.000000e-01 : f32
    %643 = vector.broadcast %cst_194 : f32 to vector<8x32xf32>
    %644 = arith.addf %642, %643 : vector<8x32xf32>
    %645 = vector.extract_strided_slice %635 {offsets = [0, 32], sizes = [8, 32], strides = [1, 1]} : vector<8x128xf32> to vector<8x32xf32>
    %cst_195 = arith.constant 5.000000e-01 : f32
    %646 = vector.broadcast %cst_195 : f32 to vector<8x32xf32>
    %647 = arith.mulf %646, %645 : vector<8x32xf32>
    %648 = math.tanh %647 : vector<8x32xf32>
    %cst_196 = arith.constant 5.000000e-01 : f32
    %649 = vector.broadcast %cst_196 : f32 to vector<8x32xf32>
    %650 = arith.mulf %649, %648 : vector<8x32xf32>
    %cst_197 = arith.constant 5.000000e-01 : f32
    %651 = vector.broadcast %cst_197 : f32 to vector<8x32xf32>
    %652 = arith.addf %650, %651 : vector<8x32xf32>
    %653 = vector.extract_strided_slice %635 {offsets = [0, 64], sizes = [8, 32], strides = [1, 1]} : vector<8x128xf32> to vector<8x32xf32>
    %654 = math.tanh %653 : vector<8x32xf32>
    %655 = vector.extract_strided_slice %635 {offsets = [0, 96], sizes = [8, 32], strides = [1, 1]} : vector<8x128xf32> to vector<8x32xf32>
    %cst_198 = arith.constant 5.000000e-01 : f32
    %656 = vector.broadcast %cst_198 : f32 to vector<8x32xf32>
    %657 = arith.mulf %656, %655 : vector<8x32xf32>
    %658 = math.tanh %657 : vector<8x32xf32>
    %cst_199 = arith.constant 5.000000e-01 : f32
    %659 = vector.broadcast %cst_199 : f32 to vector<8x32xf32>
    %660 = arith.mulf %659, %658 : vector<8x32xf32>
    %cst_200 = arith.constant 5.000000e-01 : f32
    %661 = vector.broadcast %cst_200 : f32 to vector<8x32xf32>
    %662 = arith.addf %660, %661 : vector<8x32xf32>
    %663 = arith.mulf %652, %592 : vector<8x32xf32>
    %664 = arith.mulf %644, %654 : vector<8x32xf32>
    %665 = arith.addf %663, %664 : vector<8x32xf32>
    %666 = math.tanh %665 : vector<8x32xf32>
    %667 = arith.mulf %662, %666 : vector<8x32xf32>
    %c8 = arith.constant 8 : index
    %c0_201 = arith.constant 0 : index
    %c0_202 = arith.constant 0 : index
    %668 = vector.load %arg5[%c8, %c0_201, %c0_202] : memref<12x8x32xf32, #tpu.memory_space<vmem>>, vector<1x8x32xf32>
    %669 = vector.shape_cast %668 : vector<1x8x32xf32> to vector<8x32xf32>
    %670 = vector.shape_cast %667 : vector<8x32xf32> to vector<1x8x32xf32>
    tpu.vector_store %arg5[%c8, %c0_201, %c0_202], %670 {strides = array<i32>} : memref<12x8x32xf32, #tpu.memory_space<vmem>>, vector<1x8x32xf32>,
    %671 = vector.extract_strided_slice %5 {offsets = [72, 0], sizes = [8, 128], strides = [1, 1]} : vector<96x128xf32> to vector<8x128xf32>
    %672 = arith.addf %671, %636 : vector<8x128xf32>
    %673 = vector.extract_strided_slice %672 {offsets = [0, 0], sizes = [8, 32], strides = [1, 1]} : vector<8x128xf32> to vector<8x32xf32>
    %cst_203 = arith.constant 5.000000e-01 : f32
    %674 = vector.broadcast %cst_203 : f32 to vector<8x32xf32>
    %675 = arith.mulf %674, %673 : vector<8x32xf32>
    %676 = math.tanh %675 : vector<8x32xf32>
    %cst_204 = arith.constant 5.000000e-01 : f32
    %677 = vector.broadcast %cst_204 : f32 to vector<8x32xf32>
    %678 = arith.mulf %677, %676 : vector<8x32xf32>
    %cst_205 = arith.constant 5.000000e-01 : f32
    %679 = vector.broadcast %cst_205 : f32 to vector<8x32xf32>
    %680 = arith.addf %678, %679 : vector<8x32xf32>
    %681 = vector.extract_strided_slice %672 {offsets = [0, 32], sizes = [8, 32], strides = [1, 1]} : vector<8x128xf32> to vector<8x32xf32>
    %cst_206 = arith.constant 5.000000e-01 : f32
    %682 = vector.broadcast %cst_206 : f32 to vector<8x32xf32>
    %683 = arith.mulf %682, %681 : vector<8x32xf32>
    %684 = math.tanh %683 : vector<8x32xf32>
    %cst_207 = arith.constant 5.000000e-01 : f32
    %685 = vector.broadcast %cst_207 : f32 to vector<8x32xf32>
    %686 = arith.mulf %685, %684 : vector<8x32xf32>
    %cst_208 = arith.constant 5.000000e-01 : f32
    %687 = vector.broadcast %cst_208 : f32 to vector<8x32xf32>
    %688 = arith.addf %686, %687 : vector<8x32xf32>
    %689 = vector.extract_strided_slice %672 {offsets = [0, 64], sizes = [8, 32], strides = [1, 1]} : vector<8x128xf32> to vector<8x32xf32>
    %690 = math.tanh %689 : vector<8x32xf32>
    %691 = vector.extract_strided_slice %672 {offsets = [0, 96], sizes = [8, 32], strides = [1, 1]} : vector<8x128xf32> to vector<8x32xf32>
    %cst_209 = arith.constant 5.000000e-01 : f32
    %692 = vector.broadcast %cst_209 : f32 to vector<8x32xf32>
    %693 = arith.mulf %692, %691 : vector<8x32xf32>
    %694 = math.tanh %693 : vector<8x32xf32>
    %cst_210 = arith.constant 5.000000e-01 : f32
    %695 = vector.broadcast %cst_210 : f32 to vector<8x32xf32>
    %696 = arith.mulf %695, %694 : vector<8x32xf32>
    %cst_211 = arith.constant 5.000000e-01 : f32
    %697 = vector.broadcast %cst_211 : f32 to vector<8x32xf32>
    %698 = arith.addf %696, %697 : vector<8x32xf32>
    %699 = arith.mulf %688, %628 : vector<8x32xf32>
    %700 = arith.mulf %680, %690 : vector<8x32xf32>
    %701 = arith.addf %699, %700 : vector<8x32xf32>
    %702 = math.tanh %701 : vector<8x32xf32>
    %703 = arith.mulf %698, %702 : vector<8x32xf32>
    %704 = tpu.concatenate %703, %667 in 1 : vector<8x32xf32>, vector<8x32xf32> -> vector<8x64xf32>
    %705 = arith.truncf %704 : vector<8x64xf32> to vector<8x64xbf16>
    %cst_212 = arith.constant dense<0.000000e+00> : vector<8x256xf32>
    %706 = tpu.matmul %705, %6, %cst_212 {dimension_numbers = #tpu.dot_dimension_numbers<[1], [0], [0], [1], [0, 0, 1, 1], [], []>} : vector<8x64xbf16>, vector<64x256xbf16>, vector<8x256xf32> -> vector<8x256xf32>
    %707 = vector.extract_strided_slice %706 {offsets = [0, 0], sizes = [8, 128], strides = [1, 1]} : vector<8x256xf32> to vector<8x128xf32>
    %708 = arith.addf %707, %9 : vector<8x128xf32>
    %709 = vector.extract_strided_slice %706 {offsets = [0, 128], sizes = [8, 128], strides = [1, 1]} : vector<8x256xf32> to vector<8x128xf32>
    %710 = vector.extract_strided_slice %708 {offsets = [0, 0], sizes = [8, 32], strides = [1, 1]} : vector<8x128xf32> to vector<8x32xf32>
    %cst_213 = arith.constant 5.000000e-01 : f32
    %711 = vector.broadcast %cst_213 : f32 to vector<8x32xf32>
    %712 = arith.mulf %711, %710 : vector<8x32xf32>
    %713 = math.tanh %712 : vector<8x32xf32>
    %cst_214 = arith.constant 5.000000e-01 : f32
    %714 = vector.broadcast %cst_214 : f32 to vector<8x32xf32>
    %715 = arith.mulf %714, %713 : vector<8x32xf32>
    %cst_215 = arith.constant 5.000000e-01 : f32
    %716 = vector.broadcast %cst_215 : f32 to vector<8x32xf32>
    %717 = arith.addf %715, %716 : vector<8x32xf32>
    %718 = vector.extract_strided_slice %708 {offsets = [0, 32], sizes = [8, 32], strides = [1, 1]} : vector<8x128xf32> to vector<8x32xf32>
    %cst_216 = arith.constant 5.000000e-01 : f32
    %719 = vector.broadcast %cst_216 : f32 to vector<8x32xf32>
    %720 = arith.mulf %719, %718 : vector<8x32xf32>
    %721 = math.tanh %720 : vector<8x32xf32>
    %cst_217 = arith.constant 5.000000e-01 : f32
    %722 = vector.broadcast %cst_217 : f32 to vector<8x32xf32>
    %723 = arith.mulf %722, %721 : vector<8x32xf32>
    %cst_218 = arith.constant 5.000000e-01 : f32
    %724 = vector.broadcast %cst_218 : f32 to vector<8x32xf32>
    %725 = arith.addf %723, %724 : vector<8x32xf32>
    %726 = vector.extract_strided_slice %708 {offsets = [0, 64], sizes = [8, 32], strides = [1, 1]} : vector<8x128xf32> to vector<8x32xf32>
    %727 = math.tanh %726 : vector<8x32xf32>
    %728 = vector.extract_strided_slice %708 {offsets = [0, 96], sizes = [8, 32], strides = [1, 1]} : vector<8x128xf32> to vector<8x32xf32>
    %cst_219 = arith.constant 5.000000e-01 : f32
    %729 = vector.broadcast %cst_219 : f32 to vector<8x32xf32>
    %730 = arith.mulf %729, %728 : vector<8x32xf32>
    %731 = math.tanh %730 : vector<8x32xf32>
    %cst_220 = arith.constant 5.000000e-01 : f32
    %732 = vector.broadcast %cst_220 : f32 to vector<8x32xf32>
    %733 = arith.mulf %732, %731 : vector<8x32xf32>
    %cst_221 = arith.constant 5.000000e-01 : f32
    %734 = vector.broadcast %cst_221 : f32 to vector<8x32xf32>
    %735 = arith.addf %733, %734 : vector<8x32xf32>
    %736 = arith.mulf %725, %665 : vector<8x32xf32>
    %737 = arith.mulf %717, %727 : vector<8x32xf32>
    %738 = arith.addf %736, %737 : vector<8x32xf32>
    %739 = math.tanh %738 : vector<8x32xf32>
    %740 = arith.mulf %735, %739 : vector<8x32xf32>
    %c9 = arith.constant 9 : index
    %c0_222 = arith.constant 0 : index
    %c0_223 = arith.constant 0 : index
    %741 = vector.load %arg5[%c9, %c0_222, %c0_223] : memref<12x8x32xf32, #tpu.memory_space<vmem>>, vector<1x8x32xf32>
    %742 = vector.shape_cast %741 : vector<1x8x32xf32> to vector<8x32xf32>
    %743 = vector.shape_cast %740 : vector<8x32xf32> to vector<1x8x32xf32>
    tpu.vector_store %arg5[%c9, %c0_222, %c0_223], %743 {strides = array<i32>} : memref<12x8x32xf32, #tpu.memory_space<vmem>>, vector<1x8x32xf32>,
    %744 = vector.extract_strided_slice %5 {offsets = [80, 0], sizes = [8, 128], strides = [1, 1]} : vector<96x128xf32> to vector<8x128xf32>
    %745 = arith.addf %744, %709 : vector<8x128xf32>
    %746 = vector.extract_strided_slice %745 {offsets = [0, 0], sizes = [8, 32], strides = [1, 1]} : vector<8x128xf32> to vector<8x32xf32>
    %cst_224 = arith.constant 5.000000e-01 : f32
    %747 = vector.broadcast %cst_224 : f32 to vector<8x32xf32>
    %748 = arith.mulf %747, %746 : vector<8x32xf32>
    %749 = math.tanh %748 : vector<8x32xf32>
    %cst_225 = arith.constant 5.000000e-01 : f32
    %750 = vector.broadcast %cst_225 : f32 to vector<8x32xf32>
    %751 = arith.mulf %750, %749 : vector<8x32xf32>
    %cst_226 = arith.constant 5.000000e-01 : f32
    %752 = vector.broadcast %cst_226 : f32 to vector<8x32xf32>
    %753 = arith.addf %751, %752 : vector<8x32xf32>
    %754 = vector.extract_strided_slice %745 {offsets = [0, 32], sizes = [8, 32], strides = [1, 1]} : vector<8x128xf32> to vector<8x32xf32>
    %cst_227 = arith.constant 5.000000e-01 : f32
    %755 = vector.broadcast %cst_227 : f32 to vector<8x32xf32>
    %756 = arith.mulf %755, %754 : vector<8x32xf32>
    %757 = math.tanh %756 : vector<8x32xf32>
    %cst_228 = arith.constant 5.000000e-01 : f32
    %758 = vector.broadcast %cst_228 : f32 to vector<8x32xf32>
    %759 = arith.mulf %758, %757 : vector<8x32xf32>
    %cst_229 = arith.constant 5.000000e-01 : f32
    %760 = vector.broadcast %cst_229 : f32 to vector<8x32xf32>
    %761 = arith.addf %759, %760 : vector<8x32xf32>
    %762 = vector.extract_strided_slice %745 {offsets = [0, 64], sizes = [8, 32], strides = [1, 1]} : vector<8x128xf32> to vector<8x32xf32>
    %763 = math.tanh %762 : vector<8x32xf32>
    %764 = vector.extract_strided_slice %745 {offsets = [0, 96], sizes = [8, 32], strides = [1, 1]} : vector<8x128xf32> to vector<8x32xf32>
    %cst_230 = arith.constant 5.000000e-01 : f32
    %765 = vector.broadcast %cst_230 : f32 to vector<8x32xf32>
    %766 = arith.mulf %765, %764 : vector<8x32xf32>
    %767 = math.tanh %766 : vector<8x32xf32>
    %cst_231 = arith.constant 5.000000e-01 : f32
    %768 = vector.broadcast %cst_231 : f32 to vector<8x32xf32>
    %769 = arith.mulf %768, %767 : vector<8x32xf32>
    %cst_232 = arith.constant 5.000000e-01 : f32
    %770 = vector.broadcast %cst_232 : f32 to vector<8x32xf32>
    %771 = arith.addf %769, %770 : vector<8x32xf32>
    %772 = arith.mulf %761, %701 : vector<8x32xf32>
    %773 = arith.mulf %753, %763 : vector<8x32xf32>
    %774 = arith.addf %772, %773 : vector<8x32xf32>
    %775 = math.tanh %774 : vector<8x32xf32>
    %776 = arith.mulf %771, %775 : vector<8x32xf32>
    %777 = tpu.concatenate %776, %740 in 1 : vector<8x32xf32>, vector<8x32xf32> -> vector<8x64xf32>
    %778 = arith.truncf %777 : vector<8x64xf32> to vector<8x64xbf16>
    %cst_233 = arith.constant dense<0.000000e+00> : vector<8x256xf32>
    %779 = tpu.matmul %778, %6, %cst_233 {dimension_numbers = #tpu.dot_dimension_numbers<[1], [0], [0], [1], [0, 0, 1, 1], [], []>} : vector<8x64xbf16>, vector<64x256xbf16>, vector<8x256xf32> -> vector<8x256xf32>
    %780 = vector.extract_strided_slice %779 {offsets = [0, 0], sizes = [8, 128], strides = [1, 1]} : vector<8x256xf32> to vector<8x128xf32>
    %781 = arith.addf %780, %9 : vector<8x128xf32>
    %782 = vector.extract_strided_slice %779 {offsets = [0, 128], sizes = [8, 128], strides = [1, 1]} : vector<8x256xf32> to vector<8x128xf32>
    %783 = vector.extract_strided_slice %781 {offsets = [0, 0], sizes = [8, 32], strides = [1, 1]} : vector<8x128xf32> to vector<8x32xf32>
    %cst_234 = arith.constant 5.000000e-01 : f32
    %784 = vector.broadcast %cst_234 : f32 to vector<8x32xf32>
    %785 = arith.mulf %784, %783 : vector<8x32xf32>
    %786 = math.tanh %785 : vector<8x32xf32>
    %cst_235 = arith.constant 5.000000e-01 : f32
    %787 = vector.broadcast %cst_235 : f32 to vector<8x32xf32>
    %788 = arith.mulf %787, %786 : vector<8x32xf32>
    %cst_236 = arith.constant 5.000000e-01 : f32
    %789 = vector.broadcast %cst_236 : f32 to vector<8x32xf32>
    %790 = arith.addf %788, %789 : vector<8x32xf32>
    %791 = vector.extract_strided_slice %781 {offsets = [0, 32], sizes = [8, 32], strides = [1, 1]} : vector<8x128xf32> to vector<8x32xf32>
    %cst_237 = arith.constant 5.000000e-01 : f32
    %792 = vector.broadcast %cst_237 : f32 to vector<8x32xf32>
    %793 = arith.mulf %792, %791 : vector<8x32xf32>
    %794 = math.tanh %793 : vector<8x32xf32>
    %cst_238 = arith.constant 5.000000e-01 : f32
    %795 = vector.broadcast %cst_238 : f32 to vector<8x32xf32>
    %796 = arith.mulf %795, %794 : vector<8x32xf32>
    %cst_239 = arith.constant 5.000000e-01 : f32
    %797 = vector.broadcast %cst_239 : f32 to vector<8x32xf32>
    %798 = arith.addf %796, %797 : vector<8x32xf32>
    %799 = vector.extract_strided_slice %781 {offsets = [0, 64], sizes = [8, 32], strides = [1, 1]} : vector<8x128xf32> to vector<8x32xf32>
    %800 = math.tanh %799 : vector<8x32xf32>
    %801 = vector.extract_strided_slice %781 {offsets = [0, 96], sizes = [8, 32], strides = [1, 1]} : vector<8x128xf32> to vector<8x32xf32>
    %cst_240 = arith.constant 5.000000e-01 : f32
    %802 = vector.broadcast %cst_240 : f32 to vector<8x32xf32>
    %803 = arith.mulf %802, %801 : vector<8x32xf32>
    %804 = math.tanh %803 : vector<8x32xf32>
    %cst_241 = arith.constant 5.000000e-01 : f32
    %805 = vector.broadcast %cst_241 : f32 to vector<8x32xf32>
    %806 = arith.mulf %805, %804 : vector<8x32xf32>
    %cst_242 = arith.constant 5.000000e-01 : f32
    %807 = vector.broadcast %cst_242 : f32 to vector<8x32xf32>
    %808 = arith.addf %806, %807 : vector<8x32xf32>
    %809 = arith.mulf %798, %738 : vector<8x32xf32>
    %810 = arith.mulf %790, %800 : vector<8x32xf32>
    %811 = arith.addf %809, %810 : vector<8x32xf32>
    %812 = math.tanh %811 : vector<8x32xf32>
    %813 = arith.mulf %808, %812 : vector<8x32xf32>
    %c10 = arith.constant 10 : index
    %c0_243 = arith.constant 0 : index
    %c0_244 = arith.constant 0 : index
    %814 = vector.load %arg5[%c10, %c0_243, %c0_244] : memref<12x8x32xf32, #tpu.memory_space<vmem>>, vector<1x8x32xf32>
    %815 = vector.shape_cast %814 : vector<1x8x32xf32> to vector<8x32xf32>
    %816 = vector.shape_cast %813 : vector<8x32xf32> to vector<1x8x32xf32>
    tpu.vector_store %arg5[%c10, %c0_243, %c0_244], %816 {strides = array<i32>} : memref<12x8x32xf32, #tpu.memory_space<vmem>>, vector<1x8x32xf32>,
    %817 = vector.extract_strided_slice %5 {offsets = [88, 0], sizes = [8, 128], strides = [1, 1]} : vector<96x128xf32> to vector<8x128xf32>
    %818 = arith.addf %817, %782 : vector<8x128xf32>
    %819 = vector.extract_strided_slice %818 {offsets = [0, 0], sizes = [8, 32], strides = [1, 1]} : vector<8x128xf32> to vector<8x32xf32>
    %cst_245 = arith.constant 5.000000e-01 : f32
    %820 = vector.broadcast %cst_245 : f32 to vector<8x32xf32>
    %821 = arith.mulf %820, %819 : vector<8x32xf32>
    %822 = math.tanh %821 : vector<8x32xf32>
    %cst_246 = arith.constant 5.000000e-01 : f32
    %823 = vector.broadcast %cst_246 : f32 to vector<8x32xf32>
    %824 = arith.mulf %823, %822 : vector<8x32xf32>
    %cst_247 = arith.constant 5.000000e-01 : f32
    %825 = vector.broadcast %cst_247 : f32 to vector<8x32xf32>
    %826 = arith.addf %824, %825 : vector<8x32xf32>
    %827 = vector.extract_strided_slice %818 {offsets = [0, 32], sizes = [8, 32], strides = [1, 1]} : vector<8x128xf32> to vector<8x32xf32>
    %cst_248 = arith.constant 5.000000e-01 : f32
    %828 = vector.broadcast %cst_248 : f32 to vector<8x32xf32>
    %829 = arith.mulf %828, %827 : vector<8x32xf32>
    %830 = math.tanh %829 : vector<8x32xf32>
    %cst_249 = arith.constant 5.000000e-01 : f32
    %831 = vector.broadcast %cst_249 : f32 to vector<8x32xf32>
    %832 = arith.mulf %831, %830 : vector<8x32xf32>
    %cst_250 = arith.constant 5.000000e-01 : f32
    %833 = vector.broadcast %cst_250 : f32 to vector<8x32xf32>
    %834 = arith.addf %832, %833 : vector<8x32xf32>
    %835 = vector.extract_strided_slice %818 {offsets = [0, 64], sizes = [8, 32], strides = [1, 1]} : vector<8x128xf32> to vector<8x32xf32>
    %836 = math.tanh %835 : vector<8x32xf32>
    %837 = vector.extract_strided_slice %818 {offsets = [0, 96], sizes = [8, 32], strides = [1, 1]} : vector<8x128xf32> to vector<8x32xf32>
    %cst_251 = arith.constant 5.000000e-01 : f32
    %838 = vector.broadcast %cst_251 : f32 to vector<8x32xf32>
    %839 = arith.mulf %838, %837 : vector<8x32xf32>
    %840 = math.tanh %839 : vector<8x32xf32>
    %cst_252 = arith.constant 5.000000e-01 : f32
    %841 = vector.broadcast %cst_252 : f32 to vector<8x32xf32>
    %842 = arith.mulf %841, %840 : vector<8x32xf32>
    %cst_253 = arith.constant 5.000000e-01 : f32
    %843 = vector.broadcast %cst_253 : f32 to vector<8x32xf32>
    %844 = arith.addf %842, %843 : vector<8x32xf32>
    %845 = arith.mulf %834, %774 : vector<8x32xf32>
    %846 = arith.mulf %826, %836 : vector<8x32xf32>
    %847 = arith.addf %845, %846 : vector<8x32xf32>
    %848 = math.tanh %847 : vector<8x32xf32>
    %849 = arith.mulf %844, %848 : vector<8x32xf32>
    %850 = tpu.concatenate %849, %813 in 1 : vector<8x32xf32>, vector<8x32xf32> -> vector<8x64xf32>
    %851 = arith.truncf %850 : vector<8x64xf32> to vector<8x64xbf16>
    %cst_254 = arith.constant dense<0.000000e+00> : vector<8x256xf32>
    %852 = tpu.matmul %851, %6, %cst_254 {dimension_numbers = #tpu.dot_dimension_numbers<[1], [0], [0], [1], [0, 0, 1, 1], [], []>} : vector<8x64xbf16>, vector<64x256xbf16>, vector<8x256xf32> -> vector<8x256xf32>
    %853 = vector.extract_strided_slice %852 {offsets = [0, 0], sizes = [8, 128], strides = [1, 1]} : vector<8x256xf32> to vector<8x128xf32>
    %854 = arith.addf %853, %9 : vector<8x128xf32>
    %855 = vector.extract_strided_slice %854 {offsets = [0, 0], sizes = [8, 32], strides = [1, 1]} : vector<8x128xf32> to vector<8x32xf32>
    %cst_255 = arith.constant 5.000000e-01 : f32
    %856 = vector.broadcast %cst_255 : f32 to vector<8x32xf32>
    %857 = arith.mulf %856, %855 : vector<8x32xf32>
    %858 = math.tanh %857 : vector<8x32xf32>
    %cst_256 = arith.constant 5.000000e-01 : f32
    %859 = vector.broadcast %cst_256 : f32 to vector<8x32xf32>
    %860 = arith.mulf %859, %858 : vector<8x32xf32>
    %cst_257 = arith.constant 5.000000e-01 : f32
    %861 = vector.broadcast %cst_257 : f32 to vector<8x32xf32>
    %862 = arith.addf %860, %861 : vector<8x32xf32>
    %863 = vector.extract_strided_slice %854 {offsets = [0, 32], sizes = [8, 32], strides = [1, 1]} : vector<8x128xf32> to vector<8x32xf32>
    %cst_258 = arith.constant 5.000000e-01 : f32
    %864 = vector.broadcast %cst_258 : f32 to vector<8x32xf32>
    %865 = arith.mulf %864, %863 : vector<8x32xf32>
    %866 = math.tanh %865 : vector<8x32xf32>
    %cst_259 = arith.constant 5.000000e-01 : f32
    %867 = vector.broadcast %cst_259 : f32 to vector<8x32xf32>
    %868 = arith.mulf %867, %866 : vector<8x32xf32>
    %cst_260 = arith.constant 5.000000e-01 : f32
    %869 = vector.broadcast %cst_260 : f32 to vector<8x32xf32>
    %870 = arith.addf %868, %869 : vector<8x32xf32>
    %871 = vector.extract_strided_slice %854 {offsets = [0, 64], sizes = [8, 32], strides = [1, 1]} : vector<8x128xf32> to vector<8x32xf32>
    %872 = math.tanh %871 : vector<8x32xf32>
    %873 = vector.extract_strided_slice %854 {offsets = [0, 96], sizes = [8, 32], strides = [1, 1]} : vector<8x128xf32> to vector<8x32xf32>
    %cst_261 = arith.constant 5.000000e-01 : f32
    %874 = vector.broadcast %cst_261 : f32 to vector<8x32xf32>
    %875 = arith.mulf %874, %873 : vector<8x32xf32>
    %876 = math.tanh %875 : vector<8x32xf32>
    %cst_262 = arith.constant 5.000000e-01 : f32
    %877 = vector.broadcast %cst_262 : f32 to vector<8x32xf32>
    %878 = arith.mulf %877, %876 : vector<8x32xf32>
    %cst_263 = arith.constant 5.000000e-01 : f32
    %879 = vector.broadcast %cst_263 : f32 to vector<8x32xf32>
    %880 = arith.addf %878, %879 : vector<8x32xf32>
    %881 = arith.mulf %870, %811 : vector<8x32xf32>
    %882 = arith.mulf %862, %872 : vector<8x32xf32>
    %883 = arith.addf %881, %882 : vector<8x32xf32>
    %884 = math.tanh %883 : vector<8x32xf32>
    %885 = arith.mulf %880, %884 : vector<8x32xf32>
    %c11 = arith.constant 11 : index
    %c0_264 = arith.constant 0 : index
    %c0_265 = arith.constant 0 : index
    %886 = vector.load %arg5[%c11, %c0_264, %c0_265] : memref<12x8x32xf32, #tpu.memory_space<vmem>>, vector<1x8x32xf32>
    %887 = vector.shape_cast %886 : vector<1x8x32xf32> to vector<8x32xf32>
    %888 = vector.shape_cast %885 : vector<8x32xf32> to vector<1x8x32xf32>
    tpu.vector_store %arg5[%c11, %c0_264, %c0_265], %888 {strides = array<i32>} : memref<12x8x32xf32, #tpu.memory_space<vmem>>, vector<1x8x32xf32>,
    return
  }
}

</mosaic_0001>

<llo_original>
// kernel: tpu_custom_call.1
$region0: #{tpu_custom_call.1}
  #allocation0 [shape = 'u32[]', space=smem, size = 0x4, offset = 0x4, fixed_abs, tag = 'smem constant byte address 0x4 - core index']
  #allocation1 [shape = 'u32[144,128]{1,0:T(1,128)}', space=vmem, size = 0x12000, scoped, tag = 'internal scratch']
  %s0 = inlined_call_operand.hbm [shape: bf16[96,788], index: 0, kind: input, shape index: {}]
  %s1 = inlined_call_operand.hbm [shape: bf16[788,128], index: 1, kind: input, shape index: {}]
  %s2 = inlined_call_operand.vmem [shape: f32[1,128], index: 2, kind: input, shape index: {}]
  %s3 = inlined_call_operand.hbm [shape: bf16[64,256], index: 3, kind: input, shape index: {}]
  %s4 = inlined_call_operand.vmem [shape: f32[1,128], index: 4, kind: input, shape index: {}]
  %s5 = inlined_call_operand.hbm [shape: f32[12,8,32], index: 5, kind: output, shape index: {}]
  %s6 = sld [smem:[#allocation0]]
  $region42: #{tpu_custom_call.1} parent=0
    _
  %s8 = ssub.s32 1, %s6
  %s9 = scalar_select 0, %s8, %s6
  $region1: #{tpu_custom_call.1} parent=0
    #allocation2 [shape = 'u8[172032]{0}', space=vmem, size = 0x2a000, scoped, tag = 'input window, operand 0, single buffered']
    #allocation3 [shape = 's32[1]{0}', space=sflag, size = 0x4, scoped, tag = 'scoped memory for tpu_custom_call.1']
    #allocation4 [shape = 's32[1]{0}', space=sflag, size = 0x4, scoped, tag = 'scoped memory for tpu_custom_call.1']
    #allocation5 [shape = 'u8[202752]{0}', space=vmem, size = 0x31800, scoped, tag = 'input window, operand 1, single buffered']
    #allocation6 [shape = 's32[1]{0}', space=sflag, size = 0x4, scoped, tag = 'scoped memory for tpu_custom_call.1']
    #allocation7 [shape = 'u8[32768]{0}', space=vmem, size = 0x8000, scoped, tag = 'input window, operand 3, single buffered']
    #allocation8 [shape = 'u8[49152]{0}', space=vmem, size = 0xc000, scoped, tag = 'output window, operand 0, single buffered']
    %10 = vsyncpa [#allocation3], 0
    %11 = vsyncpa [#allocation6], 0
    %12 = vsyncpa [#allocation4], 0
    // Predicated region
    $region2: #{tpu_custom_call.1} parent=1 // pred_check
      _
    $region3: #{tpu_custom_call.1} parent=1 // pred_check_branch
      %14 = sbr.rel (0) target = $region5
    $region4: #{tpu_custom_call.1} parent=1 // pred_region
      %s16 = ssub.s32 5376, 5376
      %17 = vsyncadd [#allocation3], %s16
      %s18 = sshll.u32 [#allocation2], 4
      %s19 = int_to_ptr.vmem [resolvable:$true] %s18
      %24 = dma.hbm_to_vmem [thread:$0]  %s0, 5376, %s19, [#allocation3], 448, 448, 28
    $region5: #{tpu_custom_call.1} parent=1 // pred_fallthru
      _
    // Predicated region
    $region6: #{tpu_custom_call.1} parent=1 // pred_check
      _
    $region7: #{tpu_custom_call.1} parent=1 // pred_check_branch
      %26 = sbr.rel (0) target = $region9
    $region8: #{tpu_custom_call.1} parent=1 // pred_region
      %s28 = ssub.s32 6336, 6336
      %29 = vsyncadd [#allocation6], %s28
      %s30 = sshll.u32 [#allocation5], 4
      %s31 = int_to_ptr.vmem [resolvable:$true] %s30
      %36 = dma.hbm_to_vmem [thread:$0]  %s1, 6336, %s31, [#allocation6], 64, 64, 4
    $region9: #{tpu_custom_call.1} parent=1 // pred_fallthru
      _
    // Predicated region
    $region10: #{tpu_custom_call.1} parent=1 // pred_check
      _
    $region11: #{tpu_custom_call.1} parent=1 // pred_check_branch
      %38 = sbr.rel (0) target = $region13
    $region12: #{tpu_custom_call.1} parent=1 // pred_region
      _
    $region13: #{tpu_custom_call.1} parent=1 // pred_fallthru
      _
    // Predicated region
    $region14: #{tpu_custom_call.1} parent=1 // pred_check
      _
    $region15: #{tpu_custom_call.1} parent=1 // pred_check_branch
      %40 = sbr.rel (0) target = $region17
    $region16: #{tpu_custom_call.1} parent=1 // pred_region
      %s42 = ssub.s32 1024, 1024
      %43 = vsyncadd [#allocation6], %s42
      %s44 = sshll.u32 [#allocation7], 4
      %s45 = int_to_ptr.vmem [resolvable:$true] %s44
      %50 = dma.hbm_to_vmem [thread:$0]  %s3, 1024, %s45, [#allocation6], 128, 128, 8
    $region17: #{tpu_custom_call.1} parent=1 // pred_fallthru
      _
    // Predicated region
    $region18: #{tpu_custom_call.1} parent=1 // pred_check
      _
    $region19: #{tpu_custom_call.1} parent=1 // pred_check_branch
      %52 = sbr.rel (0) target = $region21
    $region20: #{tpu_custom_call.1} parent=1 // pred_region
      _
    $region21: #{tpu_custom_call.1} parent=1 // pred_fallthru
      _
    // Predicated region
    $region22: #{tpu_custom_call.1} parent=1 // pred_check
      _
    $region23: #{tpu_custom_call.1} parent=1 // pred_check_branch
      %54 = sbr.rel (0) target = $region25
    $region24: #{tpu_custom_call.1} parent=1 // pred_region
      %55 = dma.done [#allocation3], 5376
    $region25: #{tpu_custom_call.1} parent=1 // pred_fallthru
      _
    // Predicated region
    $region26: #{tpu_custom_call.1} parent=1 // pred_check
      _
    $region27: #{tpu_custom_call.1} parent=1 // pred_check_branch
      %57 = sbr.rel (0) target = $region29
    $region28: #{tpu_custom_call.1} parent=1 // pred_region
      %58 = dma.done [#allocation6], 6336
    $region29: #{tpu_custom_call.1} parent=1 // pred_fallthru
      _
    // Predicated region
    $region30: #{tpu_custom_call.1} parent=1 // pred_check
      _
    $region31: #{tpu_custom_call.1} parent=1 // pred_check_branch
      %60 = sbr.rel (0) target = $region33
    $region32: #{tpu_custom_call.1} parent=1 // pred_region
      %61 = dma.done [#allocation6], 1024
    $region33: #{tpu_custom_call.1} parent=1 // pred_fallthru
      _
    %v63 = vld [vmem:[#allocation2] sm:$0xff]
    %v64 = vld [vmem:[#allocation2 + $0x8] sm:$0xff]
    %v65 = vld [vmem:[#allocation2 + $0x10] sm:$0xff]
    %v66 = vld [vmem:[#allocation2 + $0x18] sm:$0xf]
    %v67 = vld [vmem:[#allocation2 + $0x1c] sm:$0xff]
    %v68 = vld [vmem:[#allocation2 + $0x24] sm:$0xff]
    %v69 = vld [vmem:[#allocation2 + $0x2c] sm:$0xff]
    %v70 = vld [vmem:[#allocation2 + $0x34] sm:$0xf]
    %v71 = vld [vmem:[#allocation2 + $0x38] sm:$0xff]
    %v72 = vld [vmem:[#allocation2 + $0x40] sm:$0xff]
    %v73 = vld [vmem:[#allocation2 + $0x48] sm:$0xff]
    %v74 = vld [vmem:[#allocation2 + $0x50] sm:$0xf]
    %v75 = vld [vmem:[#allocation2 + $0x54] sm:$0xff]
    %v76 = vld [vmem:[#allocation2 + $0x5c] sm:$0xff]
    %v77 = vld [vmem:[#allocation2 + $0x64] sm:$0xff]
    %v78 = vld [vmem:[#allocation2 + $0x6c] sm:$0xf]
    %v79 = vld [vmem:[#allocation2 + $0x70] sm:$0xff]
    %v80 = vld [vmem:[#allocation2 + $0x78] sm:$0xff]
    %v81 = vld [vmem:[#allocation2 + $0x80] sm:$0xff]
    %v82 = vld [vmem:[#allocation2 + $0x88] sm:$0xf]
    %v83 = vld [vmem:[#allocation2 + $0x8c] sm:$0xff]
    %v84 = vld [vmem:[#allocation2 + $0x94] sm:$0xff]
    %v85 = vld [vmem:[#allocation2 + $0x9c] sm:$0xff]
    %v86 = vld [vmem:[#allocation2 + $0xa4] sm:$0xf]
    %v87 = vld [vmem:[#allocation2 + $0xa8] sm:$0xff]
    %v88 = vld [vmem:[#allocation2 + $0xb0] sm:$0xff]
    %v89 = vld [vmem:[#allocation2 + $0xb8] sm:$0xff]
    %v90 = vld [vmem:[#allocation2 + $0xc0] sm:$0xf]
    %v91 = vld [vmem:[#allocation2 + $0xc4] sm:$0xff]
    %v92 = vld [vmem:[#allocation2 + $0xcc] sm:$0xff]
    %v93 = vld [vmem:[#allocation2 + $0xd4] sm:$0xff]
    %v94 = vld [vmem:[#allocation2 + $0xdc] sm:$0xf]
    %v95 = vld [vmem:[#allocation2 + $0xe0] sm:$0xff]
    %v96 = vld [vmem:[#allocation2 + $0xe8] sm:$0xff]
    %v97 = vld [vmem:[#allocation2 + $0xf0] sm:$0xff]
    %v98 = vld [vmem:[#allocation2 + $0xf8] sm:$0xf]
    %v99 = vld [vmem:[#allocation2 + $0xfc] sm:$0xff]
    %v100 = vld [vmem:[#allocation2 + $0x104] sm:$0xff]
    %v101 = vld [vmem:[#allocation2 + $0x10c] sm:$0xff]
    %v102 = vld [vmem:[#allocation2 + $0x114] sm:$0xf]
    %v103 = vld [vmem:[#allocation2 + $0x118] sm:$0xff]
    %v104 = vld [vmem:[#allocation2 + $0x120] sm:$0xff]
    %v105 = vld [vmem:[#allocation2 + $0x128] sm:$0xff]
    %v106 = vld [vmem:[#allocation2 + $0x130] sm:$0xf]
    %v107 = vld [vmem:[#allocation2 + $0x134] sm:$0xff]
    %v108 = vld [vmem:[#allocation2 + $0x13c] sm:$0xff]
    %v109 = vld [vmem:[#allocation2 + $0x144] sm:$0xff]
    %v110 = vld [vmem:[#allocation2 + $0x14c] sm:$0xf]
    %v111 = vld [vmem:[#allocation5] sm:$0xf]
    %v112 = vld [vmem:[#allocation5 + $0x4] sm:$0xf]
    %v113 = vld [vmem:[#allocation5 + $0x8] sm:$0xf]
    %v114 = vld [vmem:[#allocation5 + $0xc] sm:$0xf]
    %v115 = vld [vmem:[#allocation5 + $0x10] sm:$0xf]
    %v116 = vld [vmem:[#allocation5 + $0x14] sm:$0xf]
    %v117 = vld [vmem:[#allocation5 + $0x18] sm:$0xf]
    %v118 = vld [vmem:[#allocation5 + $0x1c] sm:$0xf]
    %v119 = vld [vmem:[#allocation5 + $0x20] sm:$0xf]
    %v120 = vld [vmem:[#allocation5 + $0x24] sm:$0xf]
    %v121 = vld [vmem:[#allocation5 + $0x28] sm:$0xf]
    %v122 = vld [vmem:[#allocation5 + $0x2c] sm:$0xf]
    %v123 = vld [vmem:[#allocation5 + $0x30] sm:$0xf]
    %v124 = vld [vmem:[#allocation5 + $0x34] sm:$0xf]
    %v125 = vld [vmem:[#allocation5 + $0x38] sm:$0xf]
    %v126 = vld [vmem:[#allocation5 + $0x3c] sm:$0xf]
    %v127 = vld [vmem:[#allocation5 + $0x40] sm:$0xf]
    %v128 = vld [vmem:[#allocation5 + $0x44] sm:$0xf]
    %v129 = vld [vmem:[#allocation5 + $0x48] sm:$0xf]
    %v130 = vld [vmem:[#allocation5 + $0x4c] sm:$0xf]
    %v131 = vld [vmem:[#allocation5 + $0x50] sm:$0xf]
    %v132 = vld [vmem:[#allocation5 + $0x54] sm:$0xf]
    %v133 = vld [vmem:[#allocation5 + $0x58] sm:$0xf]
    %v134 = vld [vmem:[#allocation5 + $0x5c] sm:$0xf]
    %v135 = vld [vmem:[#allocation5 + $0x60] sm:$0xf]
    %v136 = vld [vmem:[#allocation5 + $0x64] sm:$0xf]
    %v137 = vld [vmem:[#allocation5 + $0x68] sm:$0xf]
    %v138 = vld [vmem:[#allocation5 + $0x6c] sm:$0xf]
    %v139 = vld [vmem:[#allocation5 + $0x70] sm:$0xf]
    %v140 = vld [vmem:[#allocation5 + $0x74] sm:$0xf]
    %v141 = vld [vmem:[#allocation5 + $0x78] sm:$0xf]
    %v142 = vld [vmem:[#allocation5 + $0x7c] sm:$0xf]
    %v143 = vld [vmem:[#allocation5 + $0x80] sm:$0xf]
    %v144 = vld [vmem:[#allocation5 + $0x84] sm:$0xf]
    %v145 = vld [vmem:[#allocation5 + $0x88] sm:$0xf]
    %v146 = vld [vmem:[#allocation5 + $0x8c] sm:$0xf]
    %v147 = vld [vmem:[#allocation5 + $0x90] sm:$0xf]
    %v148 = vld [vmem:[#allocation5 + $0x94] sm:$0xf]
    %v149 = vld [vmem:[#allocation5 + $0x98] sm:$0xf]
    %v150 = vld [vmem:[#allocation5 + $0x9c] sm:$0xf]
    %v151 = vld [vmem:[#allocation5 + $0xa0] sm:$0xf]
    %v152 = vld [vmem:[#allocation5 + $0xa4] sm:$0xf]
    %v153 = vld [vmem:[#allocation5 + $0xa8] sm:$0xf]
    %v154 = vld [vmem:[#allocation5 + $0xac] sm:$0xf]
    %v155 = vld [vmem:[#allocation5 + $0xb0] sm:$0xf]
    %v156 = vld [vmem:[#allocation5 + $0xb4] sm:$0xf]
    %v157 = vld [vmem:[#allocation5 + $0xb8] sm:$0xf]
    %v158 = vld [vmem:[#allocation5 + $0xbc] sm:$0xf]
    %v159 = vld [vmem:[#allocation5 + $0xc0] sm:$0xf]
    %v160 = vld [vmem:[#allocation5 + $0xc4] sm:$0xf]
    %v161 = vld [vmem:[#allocation5 + $0xc8] sm:$0xf]
    %v162 = vld [vmem:[#allocation5 + $0xcc] sm:$0xf]
    %v163 = vld [vmem:[#allocation5 + $0xd0] sm:$0xf]
    %v164 = vld [vmem:[#allocation5 + $0xd4] sm:$0xf]
    %v165 = vld [vmem:[#allocation5 + $0xd8] sm:$0xf]
    %v166 = vld [vmem:[#allocation5 + $0xdc] sm:$0xf]
    %v167 = vld [vmem:[#allocation5 + $0xe0] sm:$0xf]
    %v168 = vld [vmem:[#allocation5 + $0xe4] sm:$0xf]
    %v169 = vld [vmem:[#allocation5 + $0xe8] sm:$0xf]
    %v170 = vld [vmem:[#allocation5 + $0xec] sm:$0xf]
    %v171 = vld [vmem:[#allocation5 + $0xf0] sm:$0xf]
    %v172 = vld [vmem:[#allocation5 + $0xf4] sm:$0xf]
    %v173 = vld [vmem:[#allocation5 + $0xf8] sm:$0xf]
    %v174 = vld [vmem:[#allocation5 + $0xfc] sm:$0xf]
    %v175 = vld [vmem:[#allocation5 + $0x100] sm:$0xf]
    %v176 = vld [vmem:[#allocation5 + $0x104] sm:$0xf]
    %v177 = vld [vmem:[#allocation5 + $0x108] sm:$0xf]
    %v178 = vld [vmem:[#allocation5 + $0x10c] sm:$0xf]
    %v179 = vld [vmem:[#allocation5 + $0x110] sm:$0xf]
    %v180 = vld [vmem:[#allocation5 + $0x114] sm:$0xf]
    %v181 = vld [vmem:[#allocation5 + $0x118] sm:$0xf]
    %v182 = vld [vmem:[#allocation5 + $0x11c] sm:$0xf]
    %v183 = vld [vmem:[#allocation5 + $0x120] sm:$0xf]
    %v184 = vld [vmem:[#allocation5 + $0x124] sm:$0xf]
    %v185 = vld [vmem:[#allocation5 + $0x128] sm:$0xf]
    %v186 = vld [vmem:[#allocation5 + $0x12c] sm:$0xf]
    %v187 = vld [vmem:[#allocation5 + $0x130] sm:$0xf]
    %v188 = vld [vmem:[#allocation5 + $0x134] sm:$0xf]
    %v189 = vld [vmem:[#allocation5 + $0x138] sm:$0xf]
    %v190 = vld [vmem:[#allocation5 + $0x13c] sm:$0xf]
    %v191 = vld [vmem:[#allocation5 + $0x140] sm:$0xf]
    %v192 = vld [vmem:[#allocation5 + $0x144] sm:$0xf]
    %v193 = vld [vmem:[#allocation5 + $0x148] sm:$0xf]
    %v194 = vld [vmem:[#allocation5 + $0x14c] sm:$0xf]
    %v195 = vld [vmem:[#allocation5 + $0x150] sm:$0xf]
    %v196 = vld [vmem:[#allocation5 + $0x154] sm:$0xf]
    %v197 = vld [vmem:[#allocation5 + $0x158] sm:$0xf]
    %v198 = vld [vmem:[#allocation5 + $0x15c] sm:$0xf]
    %v199 = vld [vmem:[#allocation5 + $0x160] sm:$0xf]
    %v200 = vld [vmem:[#allocation5 + $0x164] sm:$0xf]
    %v201 = vld [vmem:[#allocation5 + $0x168] sm:$0xf]
    %v202 = vld [vmem:[#allocation5 + $0x16c] sm:$0xf]
    %v203 = vld [vmem:[#allocation5 + $0x170] sm:$0xf]
    %v204 = vld [vmem:[#allocation5 + $0x174] sm:$0xf]
    %v205 = vld [vmem:[#allocation5 + $0x178] sm:$0xf]
    %v206 = vld [vmem:[#allocation5 + $0x17c] sm:$0xf]
    %v207 = vld [vmem:[#allocation5 + $0x180] sm:$0xf]
    %v208 = vld [vmem:[#allocation5 + $0x184] sm:$0xf]
    %v209 = vld [vmem:[#allocation5 + $0x188] sm:$0x3]
    %v210 = vld [vmem:[%s2] sm:$0x1]
    %v212 = vlaneseq
    %v213 = vshrl.u32 %v212, 7
    %v214 = vsub.s32 0, %v213
    %v215 = vrot.slane %v210, %v214
    %v265 = vunpack.c.l.b16 %v63
    %v266 = vunpack.c.h.b16 %v63
    %v267 = vunpack.c.l.b16 %v64
    %v268 = vunpack.c.h.b16 %v64
    %v269 = vunpack.c.l.b16 %v65
    %v270 = vunpack.c.h.b16 %v65
    %v271 = vunpack.c.l.b16 %v66
    %v272 = vunpack.c.l.b16 %v67
    %v273 = vunpack.c.h.b16 %v67
    %v274 = vunpack.c.l.b16 %v68
    %v275 = vunpack.c.h.b16 %v68
    %v276 = vunpack.c.l.b16 %v69
    %v277 = vunpack.c.h.b16 %v69
    %v278 = vunpack.c.l.b16 %v70
    %v279 = vunpack.c.l.b16 %v71
    %v280 = vunpack.c.h.b16 %v71
    %v281 = vunpack.c.l.b16 %v72
    %v282 = vunpack.c.h.b16 %v72
    %v283 = vunpack.c.l.b16 %v73
    %v284 = vunpack.c.h.b16 %v73
    %v285 = vunpack.c.l.b16 %v74
    %v286 = vunpack.c.l.b16 %v75
    %v287 = vunpack.c.h.b16 %v75
    %v288 = vunpack.c.l.b16 %v76
    %v289 = vunpack.c.h.b16 %v76
    %v290 = vunpack.c.l.b16 %v77
    %v291 = vunpack.c.h.b16 %v77
    %v292 = vunpack.c.l.b16 %v78
    %v293 = vunpack.c.l.b16 %v79
    %v294 = vunpack.c.h.b16 %v79
    %v295 = vunpack.c.l.b16 %v80
    %v296 = vunpack.c.h.b16 %v80
    %v297 = vunpack.c.l.b16 %v81
    %v298 = vunpack.c.h.b16 %v81
    %v299 = vunpack.c.l.b16 %v82
    %v300 = vunpack.c.l.b16 %v83
    %v301 = vunpack.c.h.b16 %v83
    %v302 = vunpack.c.l.b16 %v84
    %v303 = vunpack.c.h.b16 %v84
    %v304 = vunpack.c.l.b16 %v85
    %v305 = vunpack.c.h.b16 %v85
    %v306 = vunpack.c.l.b16 %v86
    %v307 = vunpack.c.l.b16 %v87
    %v308 = vunpack.c.h.b16 %v87
    %v309 = vunpack.c.l.b16 %v88
    %v310 = vunpack.c.h.b16 %v88
    %v311 = vunpack.c.l.b16 %v89
    %v312 = vunpack.c.h.b16 %v89
    %v313 = vunpack.c.l.b16 %v90
    %v314 = vunpack.c.l.b16 %v91
    %v315 = vunpack.c.h.b16 %v91
    %v316 = vunpack.c.l.b16 %v92
    %v317 = vunpack.c.h.b16 %v92
    %v318 = vunpack.c.l.b16 %v93
    %v319 = vunpack.c.h.b16 %v93
    %v320 = vunpack.c.l.b16 %v94
    %v321 = vunpack.c.l.b16 %v95
    %v322 = vunpack.c.h.b16 %v95
    %v323 = vunpack.c.l.b16 %v96
    %v324 = vunpack.c.h.b16 %v96
    %v325 = vunpack.c.l.b16 %v97
    %v326 = vunpack.c.h.b16 %v97
    %v327 = vunpack.c.l.b16 %v98
    %v328 = vunpack.c.l.b16 %v99
    %v329 = vunpack.c.h.b16 %v99
    %v330 = vunpack.c.l.b16 %v100
    %v331 = vunpack.c.h.b16 %v100
    %v332 = vunpack.c.l.b16 %v101
    %v333 = vunpack.c.h.b16 %v101
    %v334 = vunpack.c.l.b16 %v102
    %v335 = vunpack.c.l.b16 %v103
    %v336 = vunpack.c.h.b16 %v103
    %v337 = vunpack.c.l.b16 %v104
    %v338 = vunpack.c.h.b16 %v104
    %v339 = vunpack.c.l.b16 %v105
    %v340 = vunpack.c.h.b16 %v105
    %v341 = vunpack.c.l.b16 %v106
    %v342 = vunpack.c.l.b16 %v107
    %v343 = vunpack.c.h.b16 %v107
    %v344 = vunpack.c.l.b16 %v108
    %v345 = vunpack.c.h.b16 %v108
    %v346 = vunpack.c.l.b16 %v109
    %v347 = vunpack.c.h.b16 %v109
    %v348 = vunpack.c.l.b16 %v110
    %v349 = vpack.c.b16 %v272, %v265
    %v350 = vpack.c.b16 %v273, %v266
    %v351 = vpack.c.b16 %v274, %v267
    %v352 = vpack.c.b16 %v275, %v268
    %v353 = vpack.c.b16 %v276, %v269
    %v354 = vpack.c.b16 %v277, %v270
    %v355 = vpack.c.b16 %v278, %v271
    %v356 = vpack.c.b16 %v286, %v279
    %v357 = vpack.c.b16 %v287, %v280
    %v358 = vpack.c.b16 %v288, %v281
    %v359 = vpack.c.b16 %v289, %v282
    %v360 = vpack.c.b16 %v290, %v283
    %v361 = vpack.c.b16 %v291, %v284
    %v362 = vpack.c.b16 %v292, %v285
    %v363 = vpack.c.b16 %v300, %v293
    %v364 = vpack.c.b16 %v301, %v294
    %v365 = vpack.c.b16 %v302, %v295
    %v366 = vpack.c.b16 %v303, %v296
    %v367 = vpack.c.b16 %v304, %v297
    %v368 = vpack.c.b16 %v305, %v298
    %v369 = vpack.c.b16 %v306, %v299
    %v370 = vpack.c.b16 %v314, %v307
    %v371 = vpack.c.b16 %v315, %v308
    %v372 = vpack.c.b16 %v316, %v309
    %v373 = vpack.c.b16 %v317, %v310
    %v374 = vpack.c.b16 %v318, %v311
    %v375 = vpack.c.b16 %v319, %v312
    %v376 = vpack.c.b16 %v320, %v313
    %v377 = vpack.c.b16 %v328, %v321
    %v378 = vpack.c.b16 %v329, %v322
    %v379 = vpack.c.b16 %v330, %v323
    %v380 = vpack.c.b16 %v331, %v324
    %v381 = vpack.c.b16 %v332, %v325
    %v382 = vpack.c.b16 %v333, %v326
    %v383 = vpack.c.b16 %v334, %v327
    %v384 = vpack.c.b16 %v342, %v335
    %v385 = vpack.c.b16 %v343, %v336
    %v386 = vpack.c.b16 %v344, %v337
    %v387 = vpack.c.b16 %v345, %v338
    %v388 = vpack.c.b16 %v346, %v339
    %v389 = vpack.c.b16 %v347, %v340
    %v390 = vpack.c.b16 %v348, %v341
    %v526 = vunpack.c.l.b16 %v111
    %v527 = vunpack.c.l.b16 %v112
    %v528 = vunpack.c.l.b16 %v113
    %v529 = vunpack.c.l.b16 %v114
    %v530 = vunpack.c.l.b16 %v115
    %v531 = vunpack.c.l.b16 %v116
    %v532 = vunpack.c.l.b16 %v117
    %v533 = vunpack.c.l.b16 %v118
    %v534 = vunpack.c.l.b16 %v119
    %v535 = vunpack.c.l.b16 %v120
    %v536 = vunpack.c.l.b16 %v121
    %v537 = vunpack.c.l.b16 %v122
    %v538 = vunpack.c.l.b16 %v123
    %v539 = vunpack.c.l.b16 %v124
    %v540 = vunpack.c.l.b16 %v125
    %v541 = vunpack.c.l.b16 %v126
    %v542 = vunpack.c.l.b16 %v127
    %v543 = vunpack.c.l.b16 %v128
    %v544 = vunpack.c.l.b16 %v129
    %v545 = vunpack.c.l.b16 %v130
    %v546 = vunpack.c.l.b16 %v131
    %v547 = vunpack.c.l.b16 %v132
    %v548 = vunpack.c.l.b16 %v133
    %v549 = vunpack.c.l.b16 %v134
    %v550 = vunpack.c.l.b16 %v135
    %v551 = vunpack.c.l.b16 %v136
    %v552 = vunpack.c.l.b16 %v137
    %v553 = vunpack.c.l.b16 %v138
    %v554 = vunpack.c.l.b16 %v139
    %v555 = vunpack.c.l.b16 %v140
    %v556 = vunpack.c.l.b16 %v141
    %v557 = vunpack.c.l.b16 %v142
    %v558 = vunpack.c.l.b16 %v143
    %v559 = vunpack.c.l.b16 %v144
    %v560 = vunpack.c.l.b16 %v145
    %v561 = vunpack.c.l.b16 %v146
    %v562 = vunpack.c.l.b16 %v147
    %v563 = vunpack.c.l.b16 %v148
    %v564 = vunpack.c.l.b16 %v149
    %v565 = vunpack.c.l.b16 %v150
    %v566 = vunpack.c.l.b16 %v151
    %v567 = vunpack.c.l.b16 %v152
    %v568 = vunpack.c.l.b16 %v153
    %v569 = vunpack.c.l.b16 %v154
    %v570 = vunpack.c.l.b16 %v155
    %v571 = vunpack.c.l.b16 %v156
    %v572 = vunpack.c.l.b16 %v157
    %v573 = vunpack.c.l.b16 %v158
    %v574 = vunpack.c.l.b16 %v159
    %v575 = vunpack.c.l.b16 %v160
    %v576 = vunpack.c.l.b16 %v161
    %v577 = vunpack.c.l.b16 %v162
    %v578 = vunpack.c.l.b16 %v163
    %v579 = vunpack.c.l.b16 %v164
    %v580 = vunpack.c.l.b16 %v165
    %v581 = vunpack.c.l.b16 %v166
    %v582 = vunpack.c.l.b16 %v167
    %v583 = vunpack.c.l.b16 %v168
    %v584 = vunpack.c.l.b16 %v169
    %v585 = vunpack.c.l.b16 %v170
    %v586 = vunpack.c.l.b16 %v171
    %v587 = vunpack.c.l.b16 %v172
    %v588 = vunpack.c.l.b16 %v173
    %v589 = vunpack.c.l.b16 %v174
    %v590 = vunpack.c.l.b16 %v175
    %v591 = vunpack.c.l.b16 %v176
    %v592 = vunpack.c.l.b16 %v177
    %v593 = vunpack.c.l.b16 %v178
    %v594 = vunpack.c.l.b16 %v179
    %v595 = vunpack.c.l.b16 %v180
    %v596 = vunpack.c.l.b16 %v181
    %v597 = vunpack.c.l.b16 %v182
    %v598 = vunpack.c.l.b16 %v183
    %v599 = vunpack.c.l.b16 %v184
    %v600 = vunpack.c.l.b16 %v185
    %v601 = vunpack.c.l.b16 %v186
    %v602 = vunpack.c.l.b16 %v187
    %v603 = vunpack.c.l.b16 %v188
    %v604 = vunpack.c.l.b16 %v189
    %v605 = vunpack.c.l.b16 %v190
    %v606 = vunpack.c.l.b16 %v191
    %v607 = vunpack.c.l.b16 %v192
    %v608 = vunpack.c.l.b16 %v193
    %v609 = vunpack.c.l.b16 %v194
    %v610 = vunpack.c.l.b16 %v195
    %v611 = vunpack.c.l.b16 %v196
    %v612 = vunpack.c.l.b16 %v197
    %v613 = vunpack.c.l.b16 %v198
    %v614 = vunpack.c.l.b16 %v199
    %v615 = vunpack.c.l.b16 %v200
    %v616 = vunpack.c.l.b16 %v201
    %v617 = vunpack.c.l.b16 %v202
    %v618 = vunpack.c.l.b16 %v203
    %v619 = vunpack.c.l.b16 %v204
    %v620 = vunpack.c.l.b16 %v205
    %v621 = vunpack.c.l.b16 %v206
    %v622 = vunpack.c.l.b16 %v207
    %v623 = vunpack.c.l.b16 %v208
    %v624 = vunpack.c.l.b16 %v209
    %v625 = vpack.c.b16 %v527, %v526
    %v626 = vpack.c.b16 %v529, %v528
    %v627 = vpack.c.b16 %v531, %v530
    %v628 = vpack.c.b16 %v533, %v532
    %v629 = vpack.c.b16 %v535, %v534
    %v630 = vpack.c.b16 %v537, %v536
    %v631 = vpack.c.b16 %v539, %v538
    %v632 = vpack.c.b16 %v541, %v540
    %v633 = vpack.c.b16 %v543, %v542
    %v634 = vpack.c.b16 %v545, %v544
    %v635 = vpack.c.b16 %v547, %v546
    %v636 = vpack.c.b16 %v549, %v548
    %v637 = vpack.c.b16 %v551, %v550
    %v638 = vpack.c.b16 %v553, %v552
    %v639 = vpack.c.b16 %v555, %v554
    %v640 = vpack.c.b16 %v557, %v556
    %v641 = vpack.c.b16 %v559, %v558
    %v642 = vpack.c.b16 %v561, %v560
    %v643 = vpack.c.b16 %v563, %v562
    %v644 = vpack.c.b16 %v565, %v564
    %v645 = vpack.c.b16 %v567, %v566
    %v646 = vpack.c.b16 %v569, %v568
    %v647 = vpack.c.b16 %v571, %v570
    %v648 = vpack.c.b16 %v573, %v572
    %v649 = vpack.c.b16 %v575, %v574
    %v650 = vpack.c.b16 %v577, %v576
    %v651 = vpack.c.b16 %v579, %v578
    %v652 = vpack.c.b16 %v581, %v580
    %v653 = vpack.c.b16 %v583, %v582
    %v654 = vpack.c.b16 %v585, %v584
    %v655 = vpack.c.b16 %v587, %v586
    %v656 = vpack.c.b16 %v589, %v588
    %v657 = vpack.c.b16 %v591, %v590
    %v658 = vpack.c.b16 %v593, %v592
    %v659 = vpack.c.b16 %v595, %v594
    %v660 = vpack.c.b16 %v597, %v596
    %v661 = vpack.c.b16 %v599, %v598
    %v662 = vpack.c.b16 %v601, %v600
    %v663 = vpack.c.b16 %v603, %v602
    %v664 = vpack.c.b16 %v605, %v604
    %v665 = vpack.c.b16 %v607, %v606
    %v666 = vpack.c.b16 %v609, %v608
    %v667 = vpack.c.b16 %v611, %v610
    %v668 = vpack.c.b16 %v613, %v612
    %v669 = vpack.c.b16 %v615, %v614
    %v670 = vpack.c.b16 %v617, %v616
    %v671 = vpack.c.b16 %v619, %v618
    %v672 = vpack.c.b16 %v621, %v620
    %v673 = vpack.c.b16 %v623, %v622
    %v674 = vpack.c.b16 %v624, %v624
    %vm724 = vcmask 162816
    %v726 = vsel %vm724, %v355, 0
    %v729 = vsel %vm724, %v362, 0
    %v732 = vsel %vm724, %v369, 0
    %v735 = vsel %vm724, %v376, 0
    %v738 = vsel %vm724, %v383, 0
    %v741 = vsel %vm724, %v390, 0
    %vm743 = vcmask 1041408
    %v745 = vsel %vm743, %v674, 0
    %747 = vmatprep.subr.bf16.mxu0 0
    %748 = vmatpush1.bf16.msra.mxu0 %v632
    %749 = vmatprep.subr.bf16.mxu0 0
    %750 = vmatpush1.bf16.msra.mxu0 %v631
    %751 = vmatprep.subr.bf16.mxu0 0
    %752 = vmatpush1.bf16.msra.mxu0 %v630
    %753 = vmatprep.subr.bf16.mxu0 0
    %754 = vmatpush1.bf16.msra.mxu0 %v629
    %755 = vmatprep.subr.bf16.mxu0 0
    %756 = vmatpush1.bf16.msra.mxu0 %v628
    %757 = vmatprep.subr.bf16.mxu0 0
    %758 = vmatpush1.bf16.msra.mxu0 %v627
    %759 = vmatprep.subr.bf16.mxu0 0
    %760 = vmatpush1.bf16.msra.mxu0 %v626
    %761 = vmatprep.subr.bf16.mxu0 0
    %762 = vmatpush1.bf16.msra.mxu0 %v625
    %763 = vmatprep.subr.bf16.mxu0 0
    %764 = vmatpush2.bf16.msra.mxu0 %v640
    %765 = vmatprep.subr.bf16.mxu0 0
    %766 = vmatpush2.bf16.msra.mxu0 %v639
    %767 = vmatprep.subr.bf16.mxu0 0
    %768 = vmatpush2.bf16.msra.mxu0 %v638
    %769 = vmatprep.subr.bf16.mxu0 0
    %770 = vmatpush2.bf16.msra.mxu0 %v637
    %771 = vmatprep.subr.bf16.mxu0 0
    %772 = vmatpush2.bf16.msra.mxu0 %v636
    %773 = vmatprep.subr.bf16.mxu0 0
    %774 = vmatpush2.bf16.msra.mxu0 %v635
    %775 = vmatprep.subr.bf16.mxu0 0
    %776 = vmatpush2.bf16.msra.mxu0 %v634
    %777 = vmatprep.subr.bf16.mxu0 0
    %778 = vmatpush2.bf16.msra.mxu0 %v633
    %779 = vmatprep.mubr.bf16.mxu0 %v350
    %780 = vmatmul.mubr.bf16.gmra.mxu0 %v349
    %v781 = vpop.f32.mrf.mxu0
    %v782 = vadd.f32 %v215, %v781
    %v783 = vpop.f32.mrf.mxu0
    %v784 = vpop.f32.mrf.mxu0
    %v785 = vadd.f32 %v215, %v784
    %v786 = vpop.f32.mrf.mxu0
    %787 = vmatprep.mubr.bf16.mxu0 %v357
    %788 = vmatmul.mubr.bf16.gmra.mxu0 %v356
    %v789 = vpop.f32.mrf.mxu0
    %v790 = vadd.f32 %v215, %v789
    %v791 = vpop.f32.mrf.mxu0
    %v792 = vpop.f32.mrf.mxu0
    %v793 = vadd.f32 %v215, %v792
    %v794 = vpop.f32.mrf.mxu0
    %795 = vmatprep.mubr.bf16.mxu0 %v364
    %796 = vmatmul.mubr.bf16.gmra.mxu0 %v363
    %v797 = vpop.f32.mrf.mxu0
    %v798 = vadd.f32 %v215, %v797
    %v799 = vpop.f32.mrf.mxu0
    %v800 = vpop.f32.mrf.mxu0
    %v801 = vadd.f32 %v215, %v800
    %v802 = vpop.f32.mrf.mxu0
    %803 = vmatprep.mubr.bf16.mxu0 %v371
    %804 = vmatmul.mubr.bf16.gmra.mxu0 %v370
    %v805 = vpop.f32.mrf.mxu0
    %v806 = vadd.f32 %v215, %v805
    %v807 = vpop.f32.mrf.mxu0
    %v808 = vpop.f32.mrf.mxu0
    %v809 = vadd.f32 %v215, %v808
    %v810 = vpop.f32.mrf.mxu0
    %811 = vmatprep.mubr.bf16.mxu0 %v378
    %812 = vmatmul.mubr.bf16.gmra.mxu0 %v377
    %v813 = vpop.f32.mrf.mxu0
    %v814 = vadd.f32 %v215, %v813
    %v815 = vpop.f32.mrf.mxu0
    %v816 = vpop.f32.mrf.mxu0
    %v817 = vadd.f32 %v215, %v816
    %v818 = vpop.f32.mrf.mxu0
    %819 = vmatprep.mubr.bf16.mxu0 %v385
    %820 = vmatmul.mubr.bf16.gmra.mxu0 %v384
    %v821 = vpop.f32.mrf.mxu0
    %v822 = vadd.f32 %v215, %v821
    %v823 = vpop.f32.mrf.mxu0
    %v824 = vpop.f32.mrf.mxu0
    %v825 = vadd.f32 %v215, %v824
    %v826 = vpop.f32.mrf.mxu0
    %827 = vdwg.mxu0
    %828 = vmatprep.subr.bf16.mxu0 0
    %829 = vmatpush1.bf16.msra.mxu0 %v648
    %830 = vmatprep.subr.bf16.mxu0 0
    %831 = vmatpush1.bf16.msra.mxu0 %v647
    %832 = vmatprep.subr.bf16.mxu0 0
    %833 = vmatpush1.bf16.msra.mxu0 %v646
    %834 = vmatprep.subr.bf16.mxu0 0
    %835 = vmatpush1.bf16.msra.mxu0 %v645
    %836 = vmatprep.subr.bf16.mxu0 0
    %837 = vmatpush1.bf16.msra.mxu0 %v644
    %838 = vmatprep.subr.bf16.mxu0 0
    %839 = vmatpush1.bf16.msra.mxu0 %v643
    %840 = vmatprep.subr.bf16.mxu0 0
    %841 = vmatpush1.bf16.msra.mxu0 %v642
    %842 = vmatprep.subr.bf16.mxu0 0
    %843 = vmatpush1.bf16.msra.mxu0 %v641
    %844 = vmatprep.subr.bf16.mxu0 0
    %845 = vmatpush2.bf16.msra.mxu0 %v656
    %846 = vmatprep.subr.bf16.mxu0 0
    %847 = vmatpush2.bf16.msra.mxu0 %v655
    %848 = vmatprep.subr.bf16.mxu0 0
    %849 = vmatpush2.bf16.msra.mxu0 %v654
    %850 = vmatprep.subr.bf16.mxu0 0
    %851 = vmatpush2.bf16.msra.mxu0 %v653
    %852 = vmatprep.subr.bf16.mxu0 0
    %853 = vmatpush2.bf16.msra.mxu0 %v652
    %854 = vmatprep.subr.bf16.mxu0 0
    %855 = vmatpush2.bf16.msra.mxu0 %v651
    %856 = vmatprep.subr.bf16.mxu0 0
    %857 = vmatpush2.bf16.msra.mxu0 %v650
    %858 = vmatprep.subr.bf16.mxu0 0
    %859 = vmatpush2.bf16.msra.mxu0 %v649
    %860 = vmatprep.mubr.bf16.mxu0 %v352
    %861 = vmatmul.mubr.bf16.gmra.mxu0 %v351
    %v862 = vpop.f32.mrf.mxu0
    %v863 = vadd.f32 %v782, %v862
    %v864 = vpop.f32.mrf.mxu0
    %v865 = vpop.f32.mrf.mxu0
    %v866 = vadd.f32 %v785, %v865
    %v867 = vpop.f32.mrf.mxu0
    %868 = vmatprep.mubr.bf16.mxu0 %v359
    %869 = vmatmul.mubr.bf16.gmra.mxu0 %v358
    %v870 = vpop.f32.mrf.mxu0
    %v871 = vadd.f32 %v790, %v870
    %v872 = vpop.f32.mrf.mxu0
    %v873 = vpop.f32.mrf.mxu0
    %v874 = vadd.f32 %v793, %v873
    %v875 = vpop.f32.mrf.mxu0
    %876 = vmatprep.mubr.bf16.mxu0 %v366
    %877 = vmatmul.mubr.bf16.gmra.mxu0 %v365
    %v878 = vpop.f32.mrf.mxu0
    %v879 = vadd.f32 %v798, %v878
    %v880 = vpop.f32.mrf.mxu0
    %v881 = vpop.f32.mrf.mxu0
    %v882 = vadd.f32 %v801, %v881
    %v883 = vpop.f32.mrf.mxu0
    %884 = vmatprep.mubr.bf16.mxu0 %v373
    %885 = vmatmul.mubr.bf16.gmra.mxu0 %v372
    %v886 = vpop.f32.mrf.mxu0
    %v887 = vadd.f32 %v806, %v886
    %v888 = vpop.f32.mrf.mxu0
    %v889 = vpop.f32.mrf.mxu0
    %v890 = vadd.f32 %v809, %v889
    %v891 = vpop.f32.mrf.mxu0
    %892 = vmatprep.mubr.bf16.mxu0 %v380
    %893 = vmatmul.mubr.bf16.gmra.mxu0 %v379
    %v894 = vpop.f32.mrf.mxu0
    %v895 = vadd.f32 %v814, %v894
    %v896 = vpop.f32.mrf.mxu0
    %v897 = vpop.f32.mrf.mxu0
    %v898 = vadd.f32 %v817, %v897
    %v899 = vpop.f32.mrf.mxu0
    %900 = vmatprep.mubr.bf16.mxu0 %v387
    %901 = vmatmul.mubr.bf16.gmra.mxu0 %v386
    %v902 = vpop.f32.mrf.mxu0
    %v903 = vadd.f32 %v822, %v902
    %v904 = vpop.f32.mrf.mxu0
    %v905 = vpop.f32.mrf.mxu0
    %v906 = vadd.f32 %v825, %v905
    %v907 = vpop.f32.mrf.mxu0
    %908 = vdwg.mxu0
    %909 = vmatprep.subr.bf16.mxu0 0
    %910 = vmatpush1.bf16.msra.mxu0 %v664
    %911 = vmatprep.subr.bf16.mxu0 0
    %912 = vmatpush1.bf16.msra.mxu0 %v663
    %913 = vmatprep.subr.bf16.mxu0 0
    %914 = vmatpush1.bf16.msra.mxu0 %v662
    %915 = vmatprep.subr.bf16.mxu0 0
    %916 = vmatpush1.bf16.msra.mxu0 %v661
    %917 = vmatprep.subr.bf16.mxu0 0
    %918 = vmatpush1.bf16.msra.mxu0 %v660
    %919 = vmatprep.subr.bf16.mxu0 0
    %920 = vmatpush1.bf16.msra.mxu0 %v659
    %921 = vmatprep.subr.bf16.mxu0 0
    %922 = vmatpush1.bf16.msra.mxu0 %v658
    %923 = vmatprep.subr.bf16.mxu0 0
    %924 = vmatpush1.bf16.msra.mxu0 %v657
    %925 = vmatprep.subr.bf16.mxu0 0
    %926 = vmatpush2.bf16.msra.mxu0 %v672
    %927 = vmatprep.subr.bf16.mxu0 0
    %928 = vmatpush2.bf16.msra.mxu0 %v671
    %929 = vmatprep.subr.bf16.mxu0 0
    %930 = vmatpush2.bf16.msra.mxu0 %v670
    %931 = vmatprep.subr.bf16.mxu0 0
    %932 = vmatpush2.bf16.msra.mxu0 %v669
    %933 = vmatprep.subr.bf16.mxu0 0
    %934 = vmatpush2.bf16.msra.mxu0 %v668
    %935 = vmatprep.subr.bf16.mxu0 0
    %936 = vmatpush2.bf16.msra.mxu0 %v667
    %937 = vmatprep.subr.bf16.mxu0 0
    %938 = vmatpush2.bf16.msra.mxu0 %v666
    %939 = vmatprep.subr.bf16.mxu0 0
    %940 = vmatpush2.bf16.msra.mxu0 %v665
    %941 = vmatprep.mubr.bf16.mxu0 %v354
    %942 = vmatmul.mubr.bf16.gmra.mxu0 %v353
    %v943 = vpop.f32.mrf.mxu0
    %v944 = vadd.f32 %v863, %v943
    %v945 = vpop.f32.mrf.mxu0
    %v946 = vpop.f32.mrf.mxu0
    %v947 = vadd.f32 %v866, %v946
    %v948 = vpop.f32.mrf.mxu0
    %949 = vmatprep.mubr.bf16.mxu0 %v361
    %950 = vmatmul.mubr.bf16.gmra.mxu0 %v360
    %v951 = vpop.f32.mrf.mxu0
    %v952 = vadd.f32 %v871, %v951
    %v953 = vpop.f32.mrf.mxu0
    %v954 = vpop.f32.mrf.mxu0
    %v955 = vadd.f32 %v874, %v954
    %v956 = vpop.f32.mrf.mxu0
    %957 = vmatprep.mubr.bf16.mxu0 %v368
    %958 = vmatmul.mubr.bf16.gmra.mxu0 %v367
    %v959 = vpop.f32.mrf.mxu0
    %v960 = vadd.f32 %v879, %v959
    %v961 = vpop.f32.mrf.mxu0
    %v962 = vpop.f32.mrf.mxu0
    %v963 = vadd.f32 %v882, %v962
    %v964 = vpop.f32.mrf.mxu0
    %965 = vmatprep.mubr.bf16.mxu0 %v375
    %966 = vmatmul.mubr.bf16.gmra.mxu0 %v374
    %v967 = vpop.f32.mrf.mxu0
    %v968 = vadd.f32 %v887, %v967
    %v969 = vpop.f32.mrf.mxu0
    %v970 = vpop.f32.mrf.mxu0
    %v971 = vadd.f32 %v890, %v970
    %v972 = vpop.f32.mrf.mxu0
    %973 = vmatprep.mubr.bf16.mxu0 %v382
    %974 = vmatmul.mubr.bf16.gmra.mxu0 %v381
    %v975 = vpop.f32.mrf.mxu0
    %v976 = vadd.f32 %v895, %v975
    %v977 = vpop.f32.mrf.mxu0
    %v978 = vpop.f32.mrf.mxu0
    %v979 = vadd.f32 %v898, %v978
    %v980 = vpop.f32.mrf.mxu0
    %981 = vmatprep.mubr.bf16.mxu0 %v389
    %982 = vmatmul.mubr.bf16.gmra.mxu0 %v388
    %v983 = vpop.f32.mrf.mxu0
    %v984 = vadd.f32 %v903, %v983
    %v985 = vpop.f32.mrf.mxu0
    %v986 = vpop.f32.mrf.mxu0
    %v987 = vadd.f32 %v906, %v986
    %v988 = vpop.f32.mrf.mxu0
    %989 = vdwg.mxu0
    %990 = vmatprep.subr.bf16.mxu0 0
    %991 = vmatpush1.bf16.msra.mxu0 0
    %992 = vmatprep.subr.bf16.mxu0 0
    %993 = vmatpush1.bf16.msra.mxu0 0
    %994 = vmatprep.subr.bf16.mxu0 0
    %995 = vmatpush1.bf16.msra.mxu0 0
    %996 = vmatprep.subr.bf16.mxu0 0
    %997 = vmatpush1.bf16.msra.mxu0 0
    %998 = vmatprep.subr.bf16.mxu0 0
    %999 = vmatpush1.bf16.msra.mxu0 0
    %1000 = vmatprep.subr.bf16.mxu0 0
    %1001 = vmatpush1.bf16.msra.mxu0 0
    %1002 = vmatprep.subr.bf16.mxu0 0
    %1003 = vmatpush1.bf16.msra.mxu0 %v745
    %1004 = vmatprep.subr.bf16.mxu0 0
    %1005 = vmatpush1.bf16.msra.mxu0 %v673
    %1006 = vmatprep.subr.bf16.mxu0 0
    %1007 = vmatpush2.bf16.msra.mxu0 0
    %1008 = vmatprep.subr.bf16.mxu0 0
    %1009 = vmatpush2.bf16.msra.mxu0 0
    %1010 = vmatprep.subr.bf16.mxu0 0
    %1011 = vmatpush2.bf16.msra.mxu0 0
    %1012 = vmatprep.subr.bf16.mxu0 0
    %1013 = vmatpush2.bf16.msra.mxu0 0
    %1014 = vmatprep.subr.bf16.mxu0 0
    %1015 = vmatpush2.bf16.msra.mxu0 0
    %1016 = vmatprep.subr.bf16.mxu0 0
    %1017 = vmatpush2.bf16.msra.mxu0 0
    %1018 = vmatprep.subr.bf16.mxu0 0
    %1019 = vmatpush2.bf16.msra.mxu0 0
    %1020 = vmatprep.subr.bf16.mxu0 0
    %1021 = vmatpush2.bf16.msra.mxu0 0
    %1022 = vmatprep.mubr.bf16.mxu0 0
    %1023 = vmatmul.mubr.bf16.gmra.mxu0 %v726
    %v1024 = vpop.f32.mrf.mxu0
    %v1025 = vadd.f32 %v944, %v1024
    %v1026 = vpop.f32.mrf.mxu0
    %v1027 = vpop.f32.mrf.mxu0
    %v1028 = vadd.f32 %v947, %v1027
    %v1029 = vpop.f32.mrf.mxu0
    %1030 = vmatprep.mubr.bf16.mxu0 0
    %1031 = vmatmul.mubr.bf16.gmra.mxu0 %v729
    %v1032 = vpop.f32.mrf.mxu0
    %v1033 = vadd.f32 %v952, %v1032
    %v1034 = vpop.f32.mrf.mxu0
    %v1035 = vpop.f32.mrf.mxu0
    %v1036 = vadd.f32 %v955, %v1035
    %v1037 = vpop.f32.mrf.mxu0
    %1038 = vmatprep.mubr.bf16.mxu0 0
    %1039 = vmatmul.mubr.bf16.gmra.mxu0 %v732
    %v1040 = vpop.f32.mrf.mxu0
    %v1041 = vadd.f32 %v960, %v1040
    %v1042 = vpop.f32.mrf.mxu0
    %v1043 = vpop.f32.mrf.mxu0
    %v1044 = vadd.f32 %v963, %v1043
    %v1045 = vpop.f32.mrf.mxu0
    %1046 = vmatprep.mubr.bf16.mxu0 0
    %1047 = vmatmul.mubr.bf16.gmra.mxu0 %v735
    %v1048 = vpop.f32.mrf.mxu0
    %v1049 = vadd.f32 %v968, %v1048
    %v1050 = vpop.f32.mrf.mxu0
    %v1051 = vpop.f32.mrf.mxu0
    %v1052 = vadd.f32 %v971, %v1051
    %v1053 = vpop.f32.mrf.mxu0
    %1054 = vmatprep.mubr.bf16.mxu0 0
    %1055 = vmatmul.mubr.bf16.gmra.mxu0 %v738
    %v1056 = vpop.f32.mrf.mxu0
    %v1057 = vadd.f32 %v976, %v1056
    %v1058 = vpop.f32.mrf.mxu0
    %v1059 = vpop.f32.mrf.mxu0
    %v1060 = vadd.f32 %v979, %v1059
    %v1061 = vpop.f32.mrf.mxu0
    %1062 = vmatprep.mubr.bf16.mxu0 0
    %1063 = vmatmul.mubr.bf16.gmra.mxu0 %v741
    %v1064 = vpop.f32.mrf.mxu0
    %v1065 = vadd.f32 %v984, %v1064
    %v1066 = vpop.f32.mrf.mxu0
    %v1067 = vpop.f32.mrf.mxu0
    %v1068 = vadd.f32 %v987, %v1067
    %v1069 = vpop.f32.mrf.mxu0
    %1070 = vdwg.mxu0
    %v1071 = vld [vmem:[#allocation7] sm:$0xff]
    %v1072 = vld [vmem:[#allocation7 + $0x8] sm:$0xff]
    %v1073 = vld [vmem:[#allocation7 + $0x10] sm:$0xff]
    %v1074 = vld [vmem:[#allocation7 + $0x18] sm:$0xff]
    %v1075 = vld [vmem:[#allocation7 + $0x20] sm:$0xff]
    %v1076 = vld [vmem:[#allocation7 + $0x28] sm:$0xff]
    %v1077 = vld [vmem:[#allocation7 + $0x30] sm:$0xff]
    %v1078 = vld [vmem:[#allocation7 + $0x38] sm:$0xff]
    %v1079 = vld [vmem:[%s4] sm:$0x1]
    %v1081 = vlaneseq
    %v1082 = vshrl.u32 %v1081, 7
    %v1083 = vsub.s32 0, %v1082
    %v1084 = vrot.slane %v1079, %v1083
    %v1086 = vadd.f32 %v1025, 0.0
    %v1087 = vmul.f32 %v1086, 0.5
    %v1088 = vtanh.pop %v1087
    %v1089 = vmul.f32 %v1088, 0.5
    %v1090 = vadd.f32 %v1089, 0.5
    %v1091 = vtanh.pop %v1086
    %v1092 = vmul.f32 %v1090, 0.0
    %1094 = vrot.lane.b32.xlu0 %v1091, 64
    %v1095 = vpop.permute.xlu0 %1094
    %v1097 = vmul.f32 %v1090, %v1095
    %1099 = vrot.lane.b32.xlu0 %v1097, 32
    %v1100 = vpop.permute.xlu0 %1099
    %v1102 = vadd.f32 %v1092, %v1100
    %v1103 = vtanh.pop %v1102
    %1105 = vrot.lane.b32.xlu0 %v1103, 64
    %v1106 = vpop.permute.xlu0 %1105
    %v1108 = vmul.f32 %v1090, %v1106
    %1110 = vrot.lane.b32.xlu0 %v1108, 32
    %v1111 = vpop.permute.xlu0 %1110
    %vm1113 = vcmask 261120
    %v1114 = vsel %vm1113, %v1111, 0.0
    %v1115 = vpack.c.bf16 %v1114, %v1114
    %v1124 = vunpack.c.l.b16 %v1071
    %v1125 = vunpack.c.h.b16 %v1071
    %v1126 = vunpack.c.l.b16 %v1072
    %v1127 = vunpack.c.h.b16 %v1072
    %v1128 = vunpack.c.l.b16 %v1073
    %v1129 = vunpack.c.h.b16 %v1073
    %v1130 = vunpack.c.l.b16 %v1074
    %v1131 = vunpack.c.h.b16 %v1074
    %v1132 = vunpack.c.l.b16 %v1075
    %v1133 = vunpack.c.h.b16 %v1075
    %v1134 = vunpack.c.l.b16 %v1076
    %v1135 = vunpack.c.h.b16 %v1076
    %v1136 = vunpack.c.l.b16 %v1077
    %v1137 = vunpack.c.h.b16 %v1077
    %v1138 = vunpack.c.l.b16 %v1078
    %v1139 = vunpack.c.h.b16 %v1078
    %v1140 = vpack.c.b16 %v1126, %v1124
    %v1141 = vpack.c.b16 %v1127, %v1125
    %v1142 = vpack.c.b16 %v1130, %v1128
    %v1143 = vpack.c.b16 %v1131, %v1129
    %v1144 = vpack.c.b16 %v1134, %v1132
    %v1145 = vpack.c.b16 %v1135, %v1133
    %v1146 = vpack.c.b16 %v1138, %v1136
    %v1147 = vpack.c.b16 %v1139, %v1137
    %vm1156 = vcmask 523264
    %v1158 = vsel %vm1156, %v1115, 0
    %1160 = vmatprep.subr.bf16.mxu0 0
    %1161 = vmatpush1.bf16.msra.mxu0 0
    %1162 = vmatprep.subr.bf16.mxu0 0
    %1163 = vmatpush1.bf16.msra.mxu0 0
    %1164 = vmatprep.subr.bf16.mxu0 0
    %1165 = vmatpush1.bf16.msra.mxu0 0
    %1166 = vmatprep.subr.bf16.mxu0 0
    %1167 = vmatpush1.bf16.msra.mxu0 0
    %1168 = vmatprep.subr.bf16.mxu0 %v1147
    %1169 = vmatpush1.bf16.msra.mxu0 %v1146
    %1170 = vmatprep.subr.bf16.mxu0 %v1145
    %1171 = vmatpush1.bf16.msra.mxu0 %v1144
    %1172 = vmatprep.subr.bf16.mxu0 %v1143
    %1173 = vmatpush1.bf16.msra.mxu0 %v1142
    %1174 = vmatprep.subr.bf16.mxu0 %v1141
    %1175 = vmatpush1.bf16.msra.mxu0 %v1140
    %1176 = vmatprep.subr.bf16.mxu0 0
    %1177 = vmatpush2.bf16.msra.mxu0 0
    %1178 = vmatprep.subr.bf16.mxu0 0
    %1179 = vmatpush2.bf16.msra.mxu0 0
    %1180 = vmatprep.subr.bf16.mxu0 0
    %1181 = vmatpush2.bf16.msra.mxu0 0
    %1182 = vmatprep.subr.bf16.mxu0 0
    %1183 = vmatpush2.bf16.msra.mxu0 0
    %1184 = vmatprep.subr.bf16.mxu0 0
    %1185 = vmatpush2.bf16.msra.mxu0 0
    %1186 = vmatprep.subr.bf16.mxu0 0
    %1187 = vmatpush2.bf16.msra.mxu0 0
    %1188 = vmatprep.subr.bf16.mxu0 0
    %1189 = vmatpush2.bf16.msra.mxu0 0
    %1190 = vmatprep.subr.bf16.mxu0 0
    %1191 = vmatpush2.bf16.msra.mxu0 0
    %1192 = vmatprep.mubr.bf16.mxu0 0
    %1193 = vmatmul.mubr.bf16.gmra.mxu0 %v1158
    %v1194 = vpop.f32.mrf.mxu0
    %v1195 = vadd.f32 0.0, %v1194
    %v1196 = vpop.f32.mrf.mxu0
    %v1197 = vadd.f32 0.0, %v1196
    %v1198 = vpop.f32.mrf.mxu0
    %v1199 = vpop.f32.mrf.mxu0
    %1200 = vdwg.mxu0
    %v1201 = vadd.f32 %v1195, %v1084
    %v1202 = vmul.f32 %v1201, 0.5
    %v1203 = vtanh.pop %v1202
    %v1204 = vmul.f32 %v1203, 0.5
    %v1205 = vadd.f32 %v1204, 0.5
    %v1206 = vtanh.pop %v1201
    %v1207 = vmul.f32 %v1205, 0.0
    %1209 = vrot.lane.b32.xlu0 %v1206, 64
    %v1210 = vpop.permute.xlu0 %1209
    %v1212 = vmul.f32 %v1205, %v1210
    %1214 = vrot.lane.b32.xlu0 %v1212, 32
    %v1215 = vpop.permute.xlu0 %1214
    %v1217 = vadd.f32 %v1207, %v1215
    %v1218 = vtanh.pop %v1217
    %1220 = vrot.lane.b32.xlu0 %v1218, 64
    %v1221 = vpop.permute.xlu0 %1220
    %v1223 = vmul.f32 %v1205, %v1221
    %1225 = vrot.lane.b32.xlu0 %v1223, 32
    %v1226 = vpop.permute.xlu0 %1225
    %1228 = vst.msk [vmem:[#allocation8] sm:$0xff] %vm1113, %v1226
    %v1229 = vadd.f32 %v1028, %v1197
    %v1230 = vmul.f32 %v1229, 0.5
    %v1231 = vtanh.pop %v1230
    %v1232 = vmul.f32 %v1231, 0.5
    %v1233 = vadd.f32 %v1232, 0.5
    %v1234 = vtanh.pop %v1229
    %v1235 = vmul.f32 %v1233, %v1102
    %1237 = vrot.lane.b32.xlu0 %v1234, 64
    %v1238 = vpop.permute.xlu0 %1237
    %v1240 = vmul.f32 %v1233, %v1238
    %1242 = vrot.lane.b32.xlu0 %v1240, 32
    %v1243 = vpop.permute.xlu0 %1242
    %v1245 = vadd.f32 %v1235, %v1243
    %v1246 = vtanh.pop %v1245
    %1248 = vrot.lane.b32.xlu0 %v1246, 64
    %v1249 = vpop.permute.xlu0 %1248
    %v1251 = vmul.f32 %v1233, %v1249
    %1253 = vrot.lane.b32.xlu0 %v1251, 32
    %v1254 = vpop.permute.xlu0 %1253
    %1256 = vrot.lane.b32.xlu0 %v1223, 64
    %v1257 = vpop.permute.xlu0 %1256
    %v1259 = vsel %vm1113, %v1254, %v1257
    %v1260 = vpack.c.bf16 %v1259, %v1259
    %v1262 = vsel %vm1156, %v1260, 0
    %1264 = vmatprep.subr.bf16.mxu0 0
    %1265 = vmatpush1.bf16.msra.mxu0 0
    %1266 = vmatprep.subr.bf16.mxu0 0
    %1267 = vmatpush1.bf16.msra.mxu0 0
    %1268 = vmatprep.subr.bf16.mxu0 0
    %1269 = vmatpush1.bf16.msra.mxu0 0
    %1270 = vmatprep.subr.bf16.mxu0 0
    %1271 = vmatpush1.bf16.msra.mxu0 0
    %1272 = vmatprep.subr.bf16.mxu0 %v1147
    %1273 = vmatpush1.bf16.msra.mxu0 %v1146
    %1274 = vmatprep.subr.bf16.mxu0 %v1145
    %1275 = vmatpush1.bf16.msra.mxu0 %v1144
    %1276 = vmatprep.subr.bf16.mxu0 %v1143
    %1277 = vmatpush1.bf16.msra.mxu0 %v1142
    %1278 = vmatprep.subr.bf16.mxu0 %v1141
    %1279 = vmatpush1.bf16.msra.mxu0 %v1140
    %1280 = vmatprep.subr.bf16.mxu0 0
    %1281 = vmatpush2.bf16.msra.mxu0 0
    %1282 = vmatprep.subr.bf16.mxu0 0
    %1283 = vmatpush2.bf16.msra.mxu0 0
    %1284 = vmatprep.subr.bf16.mxu0 0
    %1285 = vmatpush2.bf16.msra.mxu0 0
    %1286 = vmatprep.subr.bf16.mxu0 0
    %1287 = vmatpush2.bf16.msra.mxu0 0
    %1288 = vmatprep.subr.bf16.mxu0 0
    %1289 = vmatpush2.bf16.msra.mxu0 0
    %1290 = vmatprep.subr.bf16.mxu0 0
    %1291 = vmatpush2.bf16.msra.mxu0 0
    %1292 = vmatprep.subr.bf16.mxu0 0
    %1293 = vmatpush2.bf16.msra.mxu0 0
    %1294 = vmatprep.subr.bf16.mxu0 0
    %1295 = vmatpush2.bf16.msra.mxu0 0
    %1296 = vmatprep.mubr.bf16.mxu0 0
    %1297 = vmatmul.mubr.bf16.gmra.mxu0 %v1262
    %v1298 = vpop.f32.mrf.mxu0
    %v1299 = vadd.f32 0.0, %v1298
    %v1300 = vpop.f32.mrf.mxu0
    %v1301 = vadd.f32 0.0, %v1300
    %v1302 = vpop.f32.mrf.mxu0
    %v1303 = vpop.f32.mrf.mxu0
    %1304 = vdwg.mxu0
    %v1305 = vadd.f32 %v1299, %v1084
    %v1306 = vmul.f32 %v1305, 0.5
    %v1307 = vtanh.pop %v1306
    %v1308 = vmul.f32 %v1307, 0.5
    %v1309 = vadd.f32 %v1308, 0.5
    %v1310 = vtanh.pop %v1305
    %v1311 = vmul.f32 %v1309, %v1217
    %1313 = vrot.lane.b32.xlu0 %v1310, 64
    %v1314 = vpop.permute.xlu0 %1313
    %v1316 = vmul.f32 %v1309, %v1314
    %1318 = vrot.lane.b32.xlu0 %v1316, 32
    %v1319 = vpop.permute.xlu0 %1318
    %v1321 = vadd.f32 %v1311, %v1319
    %v1322 = vtanh.pop %v1321
    %1324 = vrot.lane.b32.xlu0 %v1322, 64
    %v1325 = vpop.permute.xlu0 %1324
    %v1327 = vmul.f32 %v1309, %v1325
    %1329 = vrot.lane.b32.xlu0 %v1327, 32
    %v1330 = vpop.permute.xlu0 %1329
    %s1332 = scalar_lea.vmem [#allocation8], 8
    %1333 = vst.msk [vmem:[%s1332] sm:$0xff] %vm1113, %v1330
    %v1334 = vadd.f32 %v1033, %v1301
    %v1335 = vmul.f32 %v1334, 0.5
    %v1336 = vtanh.pop %v1335
    %v1337 = vmul.f32 %v1336, 0.5
    %v1338 = vadd.f32 %v1337, 0.5
    %v1339 = vtanh.pop %v1334
    %v1340 = vmul.f32 %v1338, %v1245
    %1342 = vrot.lane.b32.xlu0 %v1339, 64
    %v1343 = vpop.permute.xlu0 %1342
    %v1345 = vmul.f32 %v1338, %v1343
    %1347 = vrot.lane.b32.xlu0 %v1345, 32
    %v1348 = vpop.permute.xlu0 %1347
    %v1350 = vadd.f32 %v1340, %v1348
    %v1351 = vtanh.pop %v1350
    %1353 = vrot.lane.b32.xlu0 %v1351, 64
    %v1354 = vpop.permute.xlu0 %1353
    %v1356 = vmul.f32 %v1338, %v1354
    %1358 = vrot.lane.b32.xlu0 %v1356, 32
    %v1359 = vpop.permute.xlu0 %1358
    %1361 = vrot.lane.b32.xlu0 %v1327, 64
    %v1362 = vpop.permute.xlu0 %1361
    %v1364 = vsel %vm1113, %v1359, %v1362
    %v1365 = vpack.c.bf16 %v1364, %v1364
    %v1367 = vsel %vm1156, %v1365, 0
    %1369 = vmatprep.subr.bf16.mxu0 0
    %1370 = vmatpush1.bf16.msra.mxu0 0
    %1371 = vmatprep.subr.bf16.mxu0 0
    %1372 = vmatpush1.bf16.msra.mxu0 0
    %1373 = vmatprep.subr.bf16.mxu0 0
    %1374 = vmatpush1.bf16.msra.mxu0 0
    %1375 = vmatprep.subr.bf16.mxu0 0
    %1376 = vmatpush1.bf16.msra.mxu0 0
    %1377 = vmatprep.subr.bf16.mxu0 %v1147
    %1378 = vmatpush1.bf16.msra.mxu0 %v1146
    %1379 = vmatprep.subr.bf16.mxu0 %v1145
    %1380 = vmatpush1.bf16.msra.mxu0 %v1144
    %1381 = vmatprep.subr.bf16.mxu0 %v1143
    %1382 = vmatpush1.bf16.msra.mxu0 %v1142
    %1383 = vmatprep.subr.bf16.mxu0 %v1141
    %1384 = vmatpush1.bf16.msra.mxu0 %v1140
    %1385 = vmatprep.subr.bf16.mxu0 0
    %1386 = vmatpush2.bf16.msra.mxu0 0
    %1387 = vmatprep.subr.bf16.mxu0 0
    %1388 = vmatpush2.bf16.msra.mxu0 0
    %1389 = vmatprep.subr.bf16.mxu0 0
    %1390 = vmatpush2.bf16.msra.mxu0 0
    %1391 = vmatprep.subr.bf16.mxu0 0
    %1392 = vmatpush2.bf16.msra.mxu0 0
    %1393 = vmatprep.subr.bf16.mxu0 0
    %1394 = vmatpush2.bf16.msra.mxu0 0
    %1395 = vmatprep.subr.bf16.mxu0 0
    %1396 = vmatpush2.bf16.msra.mxu0 0
    %1397 = vmatprep.subr.bf16.mxu0 0
    %1398 = vmatpush2.bf16.msra.mxu0 0
    %1399 = vmatprep.subr.bf16.mxu0 0
    %1400 = vmatpush2.bf16.msra.mxu0 0
    %1401 = vmatprep.mubr.bf16.mxu0 0
    %1402 = vmatmul.mubr.bf16.gmra.mxu0 %v1367
    %v1403 = vpop.f32.mrf.mxu0
    %v1404 = vadd.f32 0.0, %v1403
    %v1405 = vpop.f32.mrf.mxu0
    %v1406 = vadd.f32 0.0, %v1405
    %v1407 = vpop.f32.mrf.mxu0
    %v1408 = vpop.f32.mrf.mxu0
    %1409 = vdwg.mxu0
    %v1410 = vadd.f32 %v1404, %v1084
    %v1411 = vmul.f32 %v1410, 0.5
    %v1412 = vtanh.pop %v1411
    %v1413 = vmul.f32 %v1412, 0.5
    %v1414 = vadd.f32 %v1413, 0.5
    %v1415 = vtanh.pop %v1410
    %v1416 = vmul.f32 %v1414, %v1321
    %1418 = vrot.lane.b32.xlu0 %v1415, 64
    %v1419 = vpop.permute.xlu0 %1418
    %v1421 = vmul.f32 %v1414, %v1419
    %1423 = vrot.lane.b32.xlu0 %v1421, 32
    %v1424 = vpop.permute.xlu0 %1423
    %v1426 = vadd.f32 %v1416, %v1424
    %v1427 = vtanh.pop %v1426
    %1429 = vrot.lane.b32.xlu0 %v1427, 64
    %v1430 = vpop.permute.xlu0 %1429
    %v1432 = vmul.f32 %v1414, %v1430
    %1434 = vrot.lane.b32.xlu0 %v1432, 32
    %v1435 = vpop.permute.xlu0 %1434
    %s1437 = scalar_lea.vmem [#allocation8], 16
    %1438 = vst.msk [vmem:[%s1437] sm:$0xff] %vm1113, %v1435
    %v1439 = vadd.f32 %v1036, %v1406
    %v1440 = vmul.f32 %v1439, 0.5
    %v1441 = vtanh.pop %v1440
    %v1442 = vmul.f32 %v1441, 0.5
    %v1443 = vadd.f32 %v1442, 0.5
    %v1444 = vtanh.pop %v1439
    %v1445 = vmul.f32 %v1443, %v1350
    %1447 = vrot.lane.b32.xlu0 %v1444, 64
    %v1448 = vpop.permute.xlu0 %1447
    %v1450 = vmul.f32 %v1443, %v1448
    %1452 = vrot.lane.b32.xlu0 %v1450, 32
    %v1453 = vpop.permute.xlu0 %1452
    %v1455 = vadd.f32 %v1445, %v1453
    %v1456 = vtanh.pop %v1455
    %1458 = vrot.lane.b32.xlu0 %v1456, 64
    %v1459 = vpop.permute.xlu0 %1458
    %v1461 = vmul.f32 %v1443, %v1459
    %1463 = vrot.lane.b32.xlu0 %v1461, 32
    %v1464 = vpop.permute.xlu0 %1463
    %1466 = vrot.lane.b32.xlu0 %v1432, 64
    %v1467 = vpop.permute.xlu0 %1466
    %v1469 = vsel %vm1113, %v1464, %v1467
    %v1470 = vpack.c.bf16 %v1469, %v1469
    %v1472 = vsel %vm1156, %v1470, 0
    %1474 = vmatprep.subr.bf16.mxu0 0
    %1475 = vmatpush1.bf16.msra.mxu0 0
    %1476 = vmatprep.subr.bf16.mxu0 0
    %1477 = vmatpush1.bf16.msra.mxu0 0
    %1478 = vmatprep.subr.bf16.mxu0 0
    %1479 = vmatpush1.bf16.msra.mxu0 0
    %1480 = vmatprep.subr.bf16.mxu0 0
    %1481 = vmatpush1.bf16.msra.mxu0 0
    %1482 = vmatprep.subr.bf16.mxu0 %v1147
    %1483 = vmatpush1.bf16.msra.mxu0 %v1146
    %1484 = vmatprep.subr.bf16.mxu0 %v1145
    %1485 = vmatpush1.bf16.msra.mxu0 %v1144
    %1486 = vmatprep.subr.bf16.mxu0 %v1143
    %1487 = vmatpush1.bf16.msra.mxu0 %v1142
    %1488 = vmatprep.subr.bf16.mxu0 %v1141
    %1489 = vmatpush1.bf16.msra.mxu0 %v1140
    %1490 = vmatprep.subr.bf16.mxu0 0
    %1491 = vmatpush2.bf16.msra.mxu0 0
    %1492 = vmatprep.subr.bf16.mxu0 0
    %1493 = vmatpush2.bf16.msra.mxu0 0
    %1494 = vmatprep.subr.bf16.mxu0 0
    %1495 = vmatpush2.bf16.msra.mxu0 0
    %1496 = vmatprep.subr.bf16.mxu0 0
    %1497 = vmatpush2.bf16.msra.mxu0 0
    %1498 = vmatprep.subr.bf16.mxu0 0
    %1499 = vmatpush2.bf16.msra.mxu0 0
    %1500 = vmatprep.subr.bf16.mxu0 0
    %1501 = vmatpush2.bf16.msra.mxu0 0
    %1502 = vmatprep.subr.bf16.mxu0 0
    %1503 = vmatpush2.bf16.msra.mxu0 0
    %1504 = vmatprep.subr.bf16.mxu0 0
    %1505 = vmatpush2.bf16.msra.mxu0 0
    %1506 = vmatprep.mubr.bf16.mxu0 0
    %1507 = vmatmul.mubr.bf16.gmra.mxu0 %v1472
    %v1508 = vpop.f32.mrf.mxu0
    %v1509 = vadd.f32 0.0, %v1508
    %v1510 = vpop.f32.mrf.mxu0
    %v1511 = vadd.f32 0.0, %v1510
    %v1512 = vpop.f32.mrf.mxu0
    %v1513 = vpop.f32.mrf.mxu0
    %1514 = vdwg.mxu0
    %v1515 = vadd.f32 %v1509, %v1084
    %v1516 = vmul.f32 %v1515, 0.5
    %v1517 = vtanh.pop %v1516
    %v1518 = vmul.f32 %v1517, 0.5
    %v1519 = vadd.f32 %v1518, 0.5
    %v1520 = vtanh.pop %v1515
    %v1521 = vmul.f32 %v1519, %v1426
    %1523 = vrot.lane.b32.xlu0 %v1520, 64
    %v1524 = vpop.permute.xlu0 %1523
    %v1526 = vmul.f32 %v1519, %v1524
    %1528 = vrot.lane.b32.xlu0 %v1526, 32
    %v1529 = vpop.permute.xlu0 %1528
    %v1531 = vadd.f32 %v1521, %v1529
    %v1532 = vtanh.pop %v1531
    %1534 = vrot.lane.b32.xlu0 %v1532, 64
    %v1535 = vpop.permute.xlu0 %1534
    %v1537 = vmul.f32 %v1519, %v1535
    %1539 = vrot.lane.b32.xlu0 %v1537, 32
    %v1540 = vpop.permute.xlu0 %1539
    %s1542 = scalar_lea.vmem [#allocation8], 24
    %1543 = vst.msk [vmem:[%s1542] sm:$0xff] %vm1113, %v1540
    %v1544 = vadd.f32 %v1041, %v1511
    %v1545 = vmul.f32 %v1544, 0.5
    %v1546 = vtanh.pop %v1545
    %v1547 = vmul.f32 %v1546, 0.5
    %v1548 = vadd.f32 %v1547, 0.5
    %v1549 = vtanh.pop %v1544
    %v1550 = vmul.f32 %v1548, %v1455
    %1552 = vrot.lane.b32.xlu0 %v1549, 64
    %v1553 = vpop.permute.xlu0 %1552
    %v1555 = vmul.f32 %v1548, %v1553
    %1557 = vrot.lane.b32.xlu0 %v1555, 32
    %v1558 = vpop.permute.xlu0 %1557
    %v1560 = vadd.f32 %v1550, %v1558
    %v1561 = vtanh.pop %v1560
    %1563 = vrot.lane.b32.xlu0 %v1561, 64
    %v1564 = vpop.permute.xlu0 %1563
    %v1566 = vmul.f32 %v1548, %v1564
    %1568 = vrot.lane.b32.xlu0 %v1566, 32
    %v1569 = vpop.permute.xlu0 %1568
    %1571 = vrot.lane.b32.xlu0 %v1537, 64
    %v1572 = vpop.permute.xlu0 %1571
    %v1574 = vsel %vm1113, %v1569, %v1572
    %v1575 = vpack.c.bf16 %v1574, %v1574
    %v1577 = vsel %vm1156, %v1575, 0
    %1579 = vmatprep.subr.bf16.mxu0 0
    %1580 = vmatpush1.bf16.msra.mxu0 0
    %1581 = vmatprep.subr.bf16.mxu0 0
    %1582 = vmatpush1.bf16.msra.mxu0 0
    %1583 = vmatprep.subr.bf16.mxu0 0
    %1584 = vmatpush1.bf16.msra.mxu0 0
    %1585 = vmatprep.subr.bf16.mxu0 0
    %1586 = vmatpush1.bf16.msra.mxu0 0
    %1587 = vmatprep.subr.bf16.mxu0 %v1147
    %1588 = vmatpush1.bf16.msra.mxu0 %v1146
    %1589 = vmatprep.subr.bf16.mxu0 %v1145
    %1590 = vmatpush1.bf16.msra.mxu0 %v1144
    %1591 = vmatprep.subr.bf16.mxu0 %v1143
    %1592 = vmatpush1.bf16.msra.mxu0 %v1142
    %1593 = vmatprep.subr.bf16.mxu0 %v1141
    %1594 = vmatpush1.bf16.msra.mxu0 %v1140
    %1595 = vmatprep.subr.bf16.mxu0 0
    %1596 = vmatpush2.bf16.msra.mxu0 0
    %1597 = vmatprep.subr.bf16.mxu0 0
    %1598 = vmatpush2.bf16.msra.mxu0 0
    %1599 = vmatprep.subr.bf16.mxu0 0
    %1600 = vmatpush2.bf16.msra.mxu0 0
    %1601 = vmatprep.subr.bf16.mxu0 0
    %1602 = vmatpush2.bf16.msra.mxu0 0
    %1603 = vmatprep.subr.bf16.mxu0 0
    %1604 = vmatpush2.bf16.msra.mxu0 0
    %1605 = vmatprep.subr.bf16.mxu0 0
    %1606 = vmatpush2.bf16.msra.mxu0 0
    %1607 = vmatprep.subr.bf16.mxu0 0
    %1608 = vmatpush2.bf16.msra.mxu0 0
    %1609 = vmatprep.subr.bf16.mxu0 0
    %1610 = vmatpush2.bf16.msra.mxu0 0
    %1611 = vmatprep.mubr.bf16.mxu0 0
    %1612 = vmatmul.mubr.bf16.gmra.mxu0 %v1577
    %v1613 = vpop.f32.mrf.mxu0
    %v1614 = vadd.f32 0.0, %v1613
    %v1615 = vpop.f32.mrf.mxu0
    %v1616 = vadd.f32 0.0, %v1615
    %v1617 = vpop.f32.mrf.mxu0
    %v1618 = vpop.f32.mrf.mxu0
    %1619 = vdwg.mxu0
    %v1620 = vadd.f32 %v1614, %v1084
    %v1621 = vmul.f32 %v1620, 0.5
    %v1622 = vtanh.pop %v1621
    %v1623 = vmul.f32 %v1622, 0.5
    %v1624 = vadd.f32 %v1623, 0.5
    %v1625 = vtanh.pop %v1620
    %v1626 = vmul.f32 %v1624, %v1531
    %1628 = vrot.lane.b32.xlu0 %v1625, 64
    %v1629 = vpop.permute.xlu0 %1628
    %v1631 = vmul.f32 %v1624, %v1629
    %1633 = vrot.lane.b32.xlu0 %v1631, 32
    %v1634 = vpop.permute.xlu0 %1633
    %v1636 = vadd.f32 %v1626, %v1634
    %v1637 = vtanh.pop %v1636
    %1639 = vrot.lane.b32.xlu0 %v1637, 64
    %v1640 = vpop.permute.xlu0 %1639
    %v1642 = vmul.f32 %v1624, %v1640
    %1644 = vrot.lane.b32.xlu0 %v1642, 32
    %v1645 = vpop.permute.xlu0 %1644
    %s1647 = scalar_lea.vmem [#allocation8], 32
    %1648 = vst.msk [vmem:[%s1647] sm:$0xff] %vm1113, %v1645
    %v1649 = vadd.f32 %v1044, %v1616
    %v1650 = vmul.f32 %v1649, 0.5
    %v1651 = vtanh.pop %v1650
    %v1652 = vmul.f32 %v1651, 0.5
    %v1653 = vadd.f32 %v1652, 0.5
    %v1654 = vtanh.pop %v1649
    %v1655 = vmul.f32 %v1653, %v1560
    %1657 = vrot.lane.b32.xlu0 %v1654, 64
    %v1658 = vpop.permute.xlu0 %1657
    %v1660 = vmul.f32 %v1653, %v1658
    %1662 = vrot.lane.b32.xlu0 %v1660, 32
    %v1663 = vpop.permute.xlu0 %1662
    %v1665 = vadd.f32 %v1655, %v1663
    %v1666 = vtanh.pop %v1665
    %1668 = vrot.lane.b32.xlu0 %v1666, 64
    %v1669 = vpop.permute.xlu0 %1668
    %v1671 = vmul.f32 %v1653, %v1669
    %1673 = vrot.lane.b32.xlu0 %v1671, 32
    %v1674 = vpop.permute.xlu0 %1673
    %1676 = vrot.lane.b32.xlu0 %v1642, 64
    %v1677 = vpop.permute.xlu0 %1676
    %v1679 = vsel %vm1113, %v1674, %v1677
    %v1680 = vpack.c.bf16 %v1679, %v1679
    %v1682 = vsel %vm1156, %v1680, 0
    %1684 = vmatprep.subr.bf16.mxu0 0
    %1685 = vmatpush1.bf16.msra.mxu0 0
    %1686 = vmatprep.subr.bf16.mxu0 0
    %1687 = vmatpush1.bf16.msra.mxu0 0
    %1688 = vmatprep.subr.bf16.mxu0 0
    %1689 = vmatpush1.bf16.msra.mxu0 0
    %1690 = vmatprep.subr.bf16.mxu0 0
    %1691 = vmatpush1.bf16.msra.mxu0 0
    %1692 = vmatprep.subr.bf16.mxu0 %v1147
    %1693 = vmatpush1.bf16.msra.mxu0 %v1146
    %1694 = vmatprep.subr.bf16.mxu0 %v1145
    %1695 = vmatpush1.bf16.msra.mxu0 %v1144
    %1696 = vmatprep.subr.bf16.mxu0 %v1143
    %1697 = vmatpush1.bf16.msra.mxu0 %v1142
    %1698 = vmatprep.subr.bf16.mxu0 %v1141
    %1699 = vmatpush1.bf16.msra.mxu0 %v1140
    %1700 = vmatprep.subr.bf16.mxu0 0
    %1701 = vmatpush2.bf16.msra.mxu0 0
    %1702 = vmatprep.subr.bf16.mxu0 0
    %1703 = vmatpush2.bf16.msra.mxu0 0
    %1704 = vmatprep.subr.bf16.mxu0 0
    %1705 = vmatpush2.bf16.msra.mxu0 0
    %1706 = vmatprep.subr.bf16.mxu0 0
    %1707 = vmatpush2.bf16.msra.mxu0 0
    %1708 = vmatprep.subr.bf16.mxu0 0
    %1709 = vmatpush2.bf16.msra.mxu0 0
    %1710 = vmatprep.subr.bf16.mxu0 0
    %1711 = vmatpush2.bf16.msra.mxu0 0
    %1712 = vmatprep.subr.bf16.mxu0 0
    %1713 = vmatpush2.bf16.msra.mxu0 0
    %1714 = vmatprep.subr.bf16.mxu0 0
    %1715 = vmatpush2.bf16.msra.mxu0 0
    %1716 = vmatprep.mubr.bf16.mxu0 0
    %1717 = vmatmul.mubr.bf16.gmra.mxu0 %v1682
    %v1718 = vpop.f32.mrf.mxu0
    %v1719 = vadd.f32 0.0, %v1718
    %v1720 = vpop.f32.mrf.mxu0
    %v1721 = vadd.f32 0.0, %v1720
    %v1722 = vpop.f32.mrf.mxu0
    %v1723 = vpop.f32.mrf.mxu0
    %1724 = vdwg.mxu0
    %v1725 = vadd.f32 %v1719, %v1084
    %v1726 = vmul.f32 %v1725, 0.5
    %v1727 = vtanh.pop %v1726
    %v1728 = vmul.f32 %v1727, 0.5
    %v1729 = vadd.f32 %v1728, 0.5
    %v1730 = vtanh.pop %v1725
    %v1731 = vmul.f32 %v1729, %v1636
    %1733 = vrot.lane.b32.xlu0 %v1730, 64
    %v1734 = vpop.permute.xlu0 %1733
    %v1736 = vmul.f32 %v1729, %v1734
    %1738 = vrot.lane.b32.xlu0 %v1736, 32
    %v1739 = vpop.permute.xlu0 %1738
    %v1741 = vadd.f32 %v1731, %v1739
    %v1742 = vtanh.pop %v1741
    %1744 = vrot.lane.b32.xlu0 %v1742, 64
    %v1745 = vpop.permute.xlu0 %1744
    %v1747 = vmul.f32 %v1729, %v1745
    %1749 = vrot.lane.b32.xlu0 %v1747, 32
    %v1750 = vpop.permute.xlu0 %1749
    %s1752 = scalar_lea.vmem [#allocation8], 40
    %1753 = vst.msk [vmem:[%s1752] sm:$0xff] %vm1113, %v1750
    %v1754 = vadd.f32 %v1049, %v1721
    %v1755 = vmul.f32 %v1754, 0.5
    %v1756 = vtanh.pop %v1755
    %v1757 = vmul.f32 %v1756, 0.5
    %v1758 = vadd.f32 %v1757, 0.5
    %v1759 = vtanh.pop %v1754
    %v1760 = vmul.f32 %v1758, %v1665
    %1762 = vrot.lane.b32.xlu0 %v1759, 64
    %v1763 = vpop.permute.xlu0 %1762
    %v1765 = vmul.f32 %v1758, %v1763
    %1767 = vrot.lane.b32.xlu0 %v1765, 32
    %v1768 = vpop.permute.xlu0 %1767
    %v1770 = vadd.f32 %v1760, %v1768
    %v1771 = vtanh.pop %v1770
    %1773 = vrot.lane.b32.xlu0 %v1771, 64
    %v1774 = vpop.permute.xlu0 %1773
    %v1776 = vmul.f32 %v1758, %v1774
    %1778 = vrot.lane.b32.xlu0 %v1776, 32
    %v1779 = vpop.permute.xlu0 %1778
    %1781 = vrot.lane.b32.xlu0 %v1747, 64
    %v1782 = vpop.permute.xlu0 %1781
    %v1784 = vsel %vm1113, %v1779, %v1782
    %v1785 = vpack.c.bf16 %v1784, %v1784
    %v1787 = vsel %vm1156, %v1785, 0
    %1789 = vmatprep.subr.bf16.mxu0 0
    %1790 = vmatpush1.bf16.msra.mxu0 0
    %1791 = vmatprep.subr.bf16.mxu0 0
    %1792 = vmatpush1.bf16.msra.mxu0 0
    %1793 = vmatprep.subr.bf16.mxu0 0
    %1794 = vmatpush1.bf16.msra.mxu0 0
    %1795 = vmatprep.subr.bf16.mxu0 0
    %1796 = vmatpush1.bf16.msra.mxu0 0
    %1797 = vmatprep.subr.bf16.mxu0 %v1147
    %1798 = vmatpush1.bf16.msra.mxu0 %v1146
    %1799 = vmatprep.subr.bf16.mxu0 %v1145
    %1800 = vmatpush1.bf16.msra.mxu0 %v1144
    %1801 = vmatprep.subr.bf16.mxu0 %v1143
    %1802 = vmatpush1.bf16.msra.mxu0 %v1142
    %1803 = vmatprep.subr.bf16.mxu0 %v1141
    %1804 = vmatpush1.bf16.msra.mxu0 %v1140
    %1805 = vmatprep.subr.bf16.mxu0 0
    %1806 = vmatpush2.bf16.msra.mxu0 0
    %1807 = vmatprep.subr.bf16.mxu0 0
    %1808 = vmatpush2.bf16.msra.mxu0 0
    %1809 = vmatprep.subr.bf16.mxu0 0
    %1810 = vmatpush2.bf16.msra.mxu0 0
    %1811 = vmatprep.subr.bf16.mxu0 0
    %1812 = vmatpush2.bf16.msra.mxu0 0
    %1813 = vmatprep.subr.bf16.mxu0 0
    %1814 = vmatpush2.bf16.msra.mxu0 0
    %1815 = vmatprep.subr.bf16.mxu0 0
    %1816 = vmatpush2.bf16.msra.mxu0 0
    %1817 = vmatprep.subr.bf16.mxu0 0
    %1818 = vmatpush2.bf16.msra.mxu0 0
    %1819 = vmatprep.subr.bf16.mxu0 0
    %1820 = vmatpush2.bf16.msra.mxu0 0
    %1821 = vmatprep.mubr.bf16.mxu0 0
    %1822 = vmatmul.mubr.bf16.gmra.mxu0 %v1787
    %v1823 = vpop.f32.mrf.mxu0
    %v1824 = vadd.f32 0.0, %v1823
    %v1825 = vpop.f32.mrf.mxu0
    %v1826 = vadd.f32 0.0, %v1825
    %v1827 = vpop.f32.mrf.mxu0
    %v1828 = vpop.f32.mrf.mxu0
    %1829 = vdwg.mxu0
    %v1830 = vadd.f32 %v1824, %v1084
    %v1831 = vmul.f32 %v1830, 0.5
    %v1832 = vtanh.pop %v1831
    %v1833 = vmul.f32 %v1832, 0.5
    %v1834 = vadd.f32 %v1833, 0.5
    %v1835 = vtanh.pop %v1830
    %v1836 = vmul.f32 %v1834, %v1741
    %1838 = vrot.lane.b32.xlu0 %v1835, 64
    %v1839 = vpop.permute.xlu0 %1838
    %v1841 = vmul.f32 %v1834, %v1839
    %1843 = vrot.lane.b32.xlu0 %v1841, 32
    %v1844 = vpop.permute.xlu0 %1843
    %v1846 = vadd.f32 %v1836, %v1844
    %v1847 = vtanh.pop %v1846
    %1849 = vrot.lane.b32.xlu0 %v1847, 64
    %v1850 = vpop.permute.xlu0 %1849
    %v1852 = vmul.f32 %v1834, %v1850
    %1854 = vrot.lane.b32.xlu0 %v1852, 32
    %v1855 = vpop.permute.xlu0 %1854
    %s1857 = scalar_lea.vmem [#allocation8], 48
    %1858 = vst.msk [vmem:[%s1857] sm:$0xff] %vm1113, %v1855
    %v1859 = vadd.f32 %v1052, %v1826
    %v1860 = vmul.f32 %v1859, 0.5
    %v1861 = vtanh.pop %v1860
    %v1862 = vmul.f32 %v1861, 0.5
    %v1863 = vadd.f32 %v1862, 0.5
    %v1864 = vtanh.pop %v1859
    %v1865 = vmul.f32 %v1863, %v1770
    %1867 = vrot.lane.b32.xlu0 %v1864, 64
    %v1868 = vpop.permute.xlu0 %1867
    %v1870 = vmul.f32 %v1863, %v1868
    %1872 = vrot.lane.b32.xlu0 %v1870, 32
    %v1873 = vpop.permute.xlu0 %1872
    %v1875 = vadd.f32 %v1865, %v1873
    %v1876 = vtanh.pop %v1875
    %1878 = vrot.lane.b32.xlu0 %v1876, 64
    %v1879 = vpop.permute.xlu0 %1878
    %v1881 = vmul.f32 %v1863, %v1879
    %1883 = vrot.lane.b32.xlu0 %v1881, 32
    %v1884 = vpop.permute.xlu0 %1883
    %1886 = vrot.lane.b32.xlu0 %v1852, 64
    %v1887 = vpop.permute.xlu0 %1886
    %v1889 = vsel %vm1113, %v1884, %v1887
    %v1890 = vpack.c.bf16 %v1889, %v1889
    %v1892 = vsel %vm1156, %v1890, 0
    %1894 = vmatprep.subr.bf16.mxu0 0
    %1895 = vmatpush1.bf16.msra.mxu0 0
    %1896 = vmatprep.subr.bf16.mxu0 0
    %1897 = vmatpush1.bf16.msra.mxu0 0
    %1898 = vmatprep.subr.bf16.mxu0 0
    %1899 = vmatpush1.bf16.msra.mxu0 0
    %1900 = vmatprep.subr.bf16.mxu0 0
    %1901 = vmatpush1.bf16.msra.mxu0 0
    %1902 = vmatprep.subr.bf16.mxu0 %v1147
    %1903 = vmatpush1.bf16.msra.mxu0 %v1146
    %1904 = vmatprep.subr.bf16.mxu0 %v1145
    %1905 = vmatpush1.bf16.msra.mxu0 %v1144
    %1906 = vmatprep.subr.bf16.mxu0 %v1143
    %1907 = vmatpush1.bf16.msra.mxu0 %v1142
    %1908 = vmatprep.subr.bf16.mxu0 %v1141
    %1909 = vmatpush1.bf16.msra.mxu0 %v1140
    %1910 = vmatprep.subr.bf16.mxu0 0
    %1911 = vmatpush2.bf16.msra.mxu0 0
    %1912 = vmatprep.subr.bf16.mxu0 0
    %1913 = vmatpush2.bf16.msra.mxu0 0
    %1914 = vmatprep.subr.bf16.mxu0 0
    %1915 = vmatpush2.bf16.msra.mxu0 0
    %1916 = vmatprep.subr.bf16.mxu0 0
    %1917 = vmatpush2.bf16.msra.mxu0 0
    %1918 = vmatprep.subr.bf16.mxu0 0
    %1919 = vmatpush2.bf16.msra.mxu0 0
    %1920 = vmatprep.subr.bf16.mxu0 0
    %1921 = vmatpush2.bf16.msra.mxu0 0
    %1922 = vmatprep.subr.bf16.mxu0 0
    %1923 = vmatpush2.bf16.msra.mxu0 0
    %1924 = vmatprep.subr.bf16.mxu0 0
    %1925 = vmatpush2.bf16.msra.mxu0 0
    %1926 = vmatprep.mubr.bf16.mxu0 0
    %1927 = vmatmul.mubr.bf16.gmra.mxu0 %v1892
    %v1928 = vpop.f32.mrf.mxu0
    %v1929 = vadd.f32 0.0, %v1928
    %v1930 = vpop.f32.mrf.mxu0
    %v1931 = vadd.f32 0.0, %v1930
    %v1932 = vpop.f32.mrf.mxu0
    %v1933 = vpop.f32.mrf.mxu0
    %1934 = vdwg.mxu0
    %v1935 = vadd.f32 %v1929, %v1084
    %v1936 = vmul.f32 %v1935, 0.5
    %v1937 = vtanh.pop %v1936
    %v1938 = vmul.f32 %v1937, 0.5
    %v1939 = vadd.f32 %v1938, 0.5
    %v1940 = vtanh.pop %v1935
    %v1941 = vmul.f32 %v1939, %v1846
    %1943 = vrot.lane.b32.xlu0 %v1940, 64
    %v1944 = vpop.permute.xlu0 %1943
    %v1946 = vmul.f32 %v1939, %v1944
    %1948 = vrot.lane.b32.xlu0 %v1946, 32
    %v1949 = vpop.permute.xlu0 %1948
    %v1951 = vadd.f32 %v1941, %v1949
    %v1952 = vtanh.pop %v1951
    %1954 = vrot.lane.b32.xlu0 %v1952, 64
    %v1955 = vpop.permute.xlu0 %1954
    %v1957 = vmul.f32 %v1939, %v1955
    %1959 = vrot.lane.b32.xlu0 %v1957, 32
    %v1960 = vpop.permute.xlu0 %1959
    %s1962 = scalar_lea.vmem [#allocation8], 56
    %1963 = vst.msk [vmem:[%s1962] sm:$0xff] %vm1113, %v1960
    %v1964 = vadd.f32 %v1057, %v1931
    %v1965 = vmul.f32 %v1964, 0.5
    %v1966 = vtanh.pop %v1965
    %v1967 = vmul.f32 %v1966, 0.5
    %v1968 = vadd.f32 %v1967, 0.5
    %v1969 = vtanh.pop %v1964
    %v1970 = vmul.f32 %v1968, %v1875
    %1972 = vrot.lane.b32.xlu0 %v1969, 64
    %v1973 = vpop.permute.xlu0 %1972
    %v1975 = vmul.f32 %v1968, %v1973
    %1977 = vrot.lane.b32.xlu0 %v1975, 32
    %v1978 = vpop.permute.xlu0 %1977
    %v1980 = vadd.f32 %v1970, %v1978
    %v1981 = vtanh.pop %v1980
    %1983 = vrot.lane.b32.xlu0 %v1981, 64
    %v1984 = vpop.permute.xlu0 %1983
    %v1986 = vmul.f32 %v1968, %v1984
    %1988 = vrot.lane.b32.xlu0 %v1986, 32
    %v1989 = vpop.permute.xlu0 %1988
    %1991 = vrot.lane.b32.xlu0 %v1957, 64
    %v1992 = vpop.permute.xlu0 %1991
    %v1994 = vsel %vm1113, %v1989, %v1992
    %v1995 = vpack.c.bf16 %v1994, %v1994
    %v1997 = vsel %vm1156, %v1995, 0
    %1999 = vmatprep.subr.bf16.mxu0 0
    %2000 = vmatpush1.bf16.msra.mxu0 0
    %2001 = vmatprep.subr.bf16.mxu0 0
    %2002 = vmatpush1.bf16.msra.mxu0 0
    %2003 = vmatprep.subr.bf16.mxu0 0
    %2004 = vmatpush1.bf16.msra.mxu0 0
    %2005 = vmatprep.subr.bf16.mxu0 0
    %2006 = vmatpush1.bf16.msra.mxu0 0
    %2007 = vmatprep.subr.bf16.mxu0 %v1147
    %2008 = vmatpush1.bf16.msra.mxu0 %v1146
    %2009 = vmatprep.subr.bf16.mxu0 %v1145
    %2010 = vmatpush1.bf16.msra.mxu0 %v1144
    %2011 = vmatprep.subr.bf16.mxu0 %v1143
    %2012 = vmatpush1.bf16.msra.mxu0 %v1142
    %2013 = vmatprep.subr.bf16.mxu0 %v1141
    %2014 = vmatpush1.bf16.msra.mxu0 %v1140
    %2015 = vmatprep.subr.bf16.mxu0 0
    %2016 = vmatpush2.bf16.msra.mxu0 0
    %2017 = vmatprep.subr.bf16.mxu0 0
    %2018 = vmatpush2.bf16.msra.mxu0 0
    %2019 = vmatprep.subr.bf16.mxu0 0
    %2020 = vmatpush2.bf16.msra.mxu0 0
    %2021 = vmatprep.subr.bf16.mxu0 0
    %2022 = vmatpush2.bf16.msra.mxu0 0
    %2023 = vmatprep.subr.bf16.mxu0 0
    %2024 = vmatpush2.bf16.msra.mxu0 0
    %2025 = vmatprep.subr.bf16.mxu0 0
    %2026 = vmatpush2.bf16.msra.mxu0 0
    %2027 = vmatprep.subr.bf16.mxu0 0
    %2028 = vmatpush2.bf16.msra.mxu0 0
    %2029 = vmatprep.subr.bf16.mxu0 0
    %2030 = vmatpush2.bf16.msra.mxu0 0
    %2031 = vmatprep.mubr.bf16.mxu0 0
    %2032 = vmatmul.mubr.bf16.gmra.mxu0 %v1997
    %v2033 = vpop.f32.mrf.mxu0
    %v2034 = vadd.f32 0.0, %v2033
    %v2035 = vpop.f32.mrf.mxu0
    %v2036 = vadd.f32 0.0, %v2035
    %v2037 = vpop.f32.mrf.mxu0
    %v2038 = vpop.f32.mrf.mxu0
    %2039 = vdwg.mxu0
    %v2040 = vadd.f32 %v2034, %v1084
    %v2041 = vmul.f32 %v2040, 0.5
    %v2042 = vtanh.pop %v2041
    %v2043 = vmul.f32 %v2042, 0.5
    %v2044 = vadd.f32 %v2043, 0.5
    %v2045 = vtanh.pop %v2040
    %v2046 = vmul.f32 %v2044, %v1951
    %2048 = vrot.lane.b32.xlu0 %v2045, 64
    %v2049 = vpop.permute.xlu0 %2048
    %v2051 = vmul.f32 %v2044, %v2049
    %2053 = vrot.lane.b32.xlu0 %v2051, 32
    %v2054 = vpop.permute.xlu0 %2053
    %v2056 = vadd.f32 %v2046, %v2054
    %v2057 = vtanh.pop %v2056
    %2059 = vrot.lane.b32.xlu0 %v2057, 64
    %v2060 = vpop.permute.xlu0 %2059
    %v2062 = vmul.f32 %v2044, %v2060
    %2064 = vrot.lane.b32.xlu0 %v2062, 32
    %v2065 = vpop.permute.xlu0 %2064
    %s2067 = scalar_lea.vmem [#allocation8], 64
    %2068 = vst.msk [vmem:[%s2067] sm:$0xff] %vm1113, %v2065
    %v2069 = vadd.f32 %v1060, %v2036
    %v2070 = vmul.f32 %v2069, 0.5
    %v2071 = vtanh.pop %v2070
    %v2072 = vmul.f32 %v2071, 0.5
    %v2073 = vadd.f32 %v2072, 0.5
    %v2074 = vtanh.pop %v2069
    %v2075 = vmul.f32 %v2073, %v1980
    %2077 = vrot.lane.b32.xlu0 %v2074, 64
    %v2078 = vpop.permute.xlu0 %2077
    %v2080 = vmul.f32 %v2073, %v2078
    %2082 = vrot.lane.b32.xlu0 %v2080, 32
    %v2083 = vpop.permute.xlu0 %2082
    %v2085 = vadd.f32 %v2075, %v2083
    %v2086 = vtanh.pop %v2085
    %2088 = vrot.lane.b32.xlu0 %v2086, 64
    %v2089 = vpop.permute.xlu0 %2088
    %v2091 = vmul.f32 %v2073, %v2089
    %2093 = vrot.lane.b32.xlu0 %v2091, 32
    %v2094 = vpop.permute.xlu0 %2093
    %2096 = vrot.lane.b32.xlu0 %v2062, 64
    %v2097 = vpop.permute.xlu0 %2096
    %v2099 = vsel %vm1113, %v2094, %v2097
    %v2100 = vpack.c.bf16 %v2099, %v2099
    %v2102 = vsel %vm1156, %v2100, 0
    %2104 = vmatprep.subr.bf16.mxu0 0
    %2105 = vmatpush1.bf16.msra.mxu0 0
    %2106 = vmatprep.subr.bf16.mxu0 0
    %2107 = vmatpush1.bf16.msra.mxu0 0
    %2108 = vmatprep.subr.bf16.mxu0 0
    %2109 = vmatpush1.bf16.msra.mxu0 0
    %2110 = vmatprep.subr.bf16.mxu0 0
    %2111 = vmatpush1.bf16.msra.mxu0 0
    %2112 = vmatprep.subr.bf16.mxu0 %v1147
    %2113 = vmatpush1.bf16.msra.mxu0 %v1146
    %2114 = vmatprep.subr.bf16.mxu0 %v1145
    %2115 = vmatpush1.bf16.msra.mxu0 %v1144
    %2116 = vmatprep.subr.bf16.mxu0 %v1143
    %2117 = vmatpush1.bf16.msra.mxu0 %v1142
    %2118 = vmatprep.subr.bf16.mxu0 %v1141
    %2119 = vmatpush1.bf16.msra.mxu0 %v1140
    %2120 = vmatprep.subr.bf16.mxu0 0
    %2121 = vmatpush2.bf16.msra.mxu0 0
    %2122 = vmatprep.subr.bf16.mxu0 0
    %2123 = vmatpush2.bf16.msra.mxu0 0
    %2124 = vmatprep.subr.bf16.mxu0 0
    %2125 = vmatpush2.bf16.msra.mxu0 0
    %2126 = vmatprep.subr.bf16.mxu0 0
    %2127 = vmatpush2.bf16.msra.mxu0 0
    %2128 = vmatprep.subr.bf16.mxu0 0
    %2129 = vmatpush2.bf16.msra.mxu0 0
    %2130 = vmatprep.subr.bf16.mxu0 0
    %2131 = vmatpush2.bf16.msra.mxu0 0
    %2132 = vmatprep.subr.bf16.mxu0 0
    %2133 = vmatpush2.bf16.msra.mxu0 0
    %2134 = vmatprep.subr.bf16.mxu0 0
    %2135 = vmatpush2.bf16.msra.mxu0 0
    %2136 = vmatprep.mubr.bf16.mxu0 0
    %2137 = vmatmul.mubr.bf16.gmra.mxu0 %v2102
    %v2138 = vpop.f32.mrf.mxu0
    %v2139 = vadd.f32 0.0, %v2138
    %v2140 = vpop.f32.mrf.mxu0
    %v2141 = vadd.f32 0.0, %v2140
    %v2142 = vpop.f32.mrf.mxu0
    %v2143 = vpop.f32.mrf.mxu0
    %2144 = vdwg.mxu0
    %v2145 = vadd.f32 %v2139, %v1084
    %v2146 = vmul.f32 %v2145, 0.5
    %v2147 = vtanh.pop %v2146
    %v2148 = vmul.f32 %v2147, 0.5
    %v2149 = vadd.f32 %v2148, 0.5
    %v2150 = vtanh.pop %v2145
    %v2151 = vmul.f32 %v2149, %v2056
    %2153 = vrot.lane.b32.xlu0 %v2150, 64
    %v2154 = vpop.permute.xlu0 %2153
    %v2156 = vmul.f32 %v2149, %v2154
    %2158 = vrot.lane.b32.xlu0 %v2156, 32
    %v2159 = vpop.permute.xlu0 %2158
    %v2161 = vadd.f32 %v2151, %v2159
    %v2162 = vtanh.pop %v2161
    %2164 = vrot.lane.b32.xlu0 %v2162, 64
    %v2165 = vpop.permute.xlu0 %2164
    %v2167 = vmul.f32 %v2149, %v2165
    %2169 = vrot.lane.b32.xlu0 %v2167, 32
    %v2170 = vpop.permute.xlu0 %2169
    %s2172 = scalar_lea.vmem [#allocation8], 72
    %2173 = vst.msk [vmem:[%s2172] sm:$0xff] %vm1113, %v2170
    %v2174 = vadd.f32 %v1065, %v2141
    %v2175 = vmul.f32 %v2174, 0.5
    %v2176 = vtanh.pop %v2175
    %v2177 = vmul.f32 %v2176, 0.5
    %v2178 = vadd.f32 %v2177, 0.5
    %v2179 = vtanh.pop %v2174
    %v2180 = vmul.f32 %v2178, %v2085
    %2182 = vrot.lane.b32.xlu0 %v2179, 64
    %v2183 = vpop.permute.xlu0 %2182
    %v2185 = vmul.f32 %v2178, %v2183
    %2187 = vrot.lane.b32.xlu0 %v2185, 32
    %v2188 = vpop.permute.xlu0 %2187
    %v2190 = vadd.f32 %v2180, %v2188
    %v2191 = vtanh.pop %v2190
    %2193 = vrot.lane.b32.xlu0 %v2191, 64
    %v2194 = vpop.permute.xlu0 %2193
    %v2196 = vmul.f32 %v2178, %v2194
    %2198 = vrot.lane.b32.xlu0 %v2196, 32
    %v2199 = vpop.permute.xlu0 %2198
    %2201 = vrot.lane.b32.xlu0 %v2167, 64
    %v2202 = vpop.permute.xlu0 %2201
    %v2204 = vsel %vm1113, %v2199, %v2202
    %v2205 = vpack.c.bf16 %v2204, %v2204
    %v2207 = vsel %vm1156, %v2205, 0
    %2209 = vmatprep.subr.bf16.mxu0 0
    %2210 = vmatpush1.bf16.msra.mxu0 0
    %2211 = vmatprep.subr.bf16.mxu0 0
    %2212 = vmatpush1.bf16.msra.mxu0 0
    %2213 = vmatprep.subr.bf16.mxu0 0
    %2214 = vmatpush1.bf16.msra.mxu0 0
    %2215 = vmatprep.subr.bf16.mxu0 0
    %2216 = vmatpush1.bf16.msra.mxu0 0
    %2217 = vmatprep.subr.bf16.mxu0 %v1147
    %2218 = vmatpush1.bf16.msra.mxu0 %v1146
    %2219 = vmatprep.subr.bf16.mxu0 %v1145
    %2220 = vmatpush1.bf16.msra.mxu0 %v1144
    %2221 = vmatprep.subr.bf16.mxu0 %v1143
    %2222 = vmatpush1.bf16.msra.mxu0 %v1142
    %2223 = vmatprep.subr.bf16.mxu0 %v1141
    %2224 = vmatpush1.bf16.msra.mxu0 %v1140
    %2225 = vmatprep.subr.bf16.mxu0 0
    %2226 = vmatpush2.bf16.msra.mxu0 0
    %2227 = vmatprep.subr.bf16.mxu0 0
    %2228 = vmatpush2.bf16.msra.mxu0 0
    %2229 = vmatprep.subr.bf16.mxu0 0
    %2230 = vmatpush2.bf16.msra.mxu0 0
    %2231 = vmatprep.subr.bf16.mxu0 0
    %2232 = vmatpush2.bf16.msra.mxu0 0
    %2233 = vmatprep.subr.bf16.mxu0 0
    %2234 = vmatpush2.bf16.msra.mxu0 0
    %2235 = vmatprep.subr.bf16.mxu0 0
    %2236 = vmatpush2.bf16.msra.mxu0 0
    %2237 = vmatprep.subr.bf16.mxu0 0
    %2238 = vmatpush2.bf16.msra.mxu0 0
    %2239 = vmatprep.subr.bf16.mxu0 0
    %2240 = vmatpush2.bf16.msra.mxu0 0
    %2241 = vmatprep.mubr.bf16.mxu0 0
    %2242 = vmatmul.mubr.bf16.gmra.mxu0 %v2207
    %v2243 = vpop.f32.mrf.mxu0
    %v2244 = vadd.f32 0.0, %v2243
    %v2245 = vpop.f32.mrf.mxu0
    %v2246 = vadd.f32 0.0, %v2245
    %v2247 = vpop.f32.mrf.mxu0
    %v2248 = vpop.f32.mrf.mxu0
    %2249 = vdwg.mxu0
    %v2250 = vadd.f32 %v2244, %v1084
    %v2251 = vmul.f32 %v2250, 0.5
    %v2252 = vtanh.pop %v2251
    %v2253 = vmul.f32 %v2252, 0.5
    %v2254 = vadd.f32 %v2253, 0.5
    %v2255 = vtanh.pop %v2250
    %v2256 = vmul.f32 %v2254, %v2161
    %2258 = vrot.lane.b32.xlu0 %v2255, 64
    %v2259 = vpop.permute.xlu0 %2258
    %v2261 = vmul.f32 %v2254, %v2259
    %2263 = vrot.lane.b32.xlu0 %v2261, 32
    %v2264 = vpop.permute.xlu0 %2263
    %v2266 = vadd.f32 %v2256, %v2264
    %v2267 = vtanh.pop %v2266
    %2269 = vrot.lane.b32.xlu0 %v2267, 64
    %v2270 = vpop.permute.xlu0 %2269
    %v2272 = vmul.f32 %v2254, %v2270
    %2274 = vrot.lane.b32.xlu0 %v2272, 32
    %v2275 = vpop.permute.xlu0 %2274
    %s2277 = scalar_lea.vmem [#allocation8], 80
    %2278 = vst.msk [vmem:[%s2277] sm:$0xff] %vm1113, %v2275
    %v2279 = vadd.f32 %v1068, %v2246
    %v2280 = vmul.f32 %v2279, 0.5
    %v2281 = vtanh.pop %v2280
    %v2282 = vmul.f32 %v2281, 0.5
    %v2283 = vadd.f32 %v2282, 0.5
    %v2284 = vtanh.pop %v2279
    %v2285 = vmul.f32 %v2283, %v2190
    %2287 = vrot.lane.b32.xlu0 %v2284, 64
    %v2288 = vpop.permute.xlu0 %2287
    %v2290 = vmul.f32 %v2283, %v2288
    %2292 = vrot.lane.b32.xlu0 %v2290, 32
    %v2293 = vpop.permute.xlu0 %2292
    %v2295 = vadd.f32 %v2285, %v2293
    %v2296 = vtanh.pop %v2295
    %2298 = vrot.lane.b32.xlu0 %v2296, 64
    %v2299 = vpop.permute.xlu0 %2298
    %v2301 = vmul.f32 %v2283, %v2299
    %2303 = vrot.lane.b32.xlu0 %v2301, 32
    %v2304 = vpop.permute.xlu0 %2303
    %2306 = vrot.lane.b32.xlu0 %v2272, 64
    %v2307 = vpop.permute.xlu0 %2306
    %v2309 = vsel %vm1113, %v2304, %v2307
    %v2310 = vpack.c.bf16 %v2309, %v2309
    %v2312 = vsel %vm1156, %v2310, 0
    %2314 = vmatprep.subr.bf16.mxu0 0
    %2315 = vmatpush1.bf16.msra.mxu0 0
    %2316 = vmatprep.subr.bf16.mxu0 0
    %2317 = vmatpush1.bf16.msra.mxu0 0
    %2318 = vmatprep.subr.bf16.mxu0 0
    %2319 = vmatpush1.bf16.msra.mxu0 0
    %2320 = vmatprep.subr.bf16.mxu0 0
    %2321 = vmatpush1.bf16.msra.mxu0 0
    %2322 = vmatprep.subr.bf16.mxu0 %v1147
    %2323 = vmatpush1.bf16.msra.mxu0 %v1146
    %2324 = vmatprep.subr.bf16.mxu0 %v1145
    %2325 = vmatpush1.bf16.msra.mxu0 %v1144
    %2326 = vmatprep.subr.bf16.mxu0 %v1143
    %2327 = vmatpush1.bf16.msra.mxu0 %v1142
    %2328 = vmatprep.subr.bf16.mxu0 %v1141
    %2329 = vmatpush1.bf16.msra.mxu0 %v1140
    %2330 = vmatprep.subr.bf16.mxu0 0
    %2331 = vmatpush2.bf16.msra.mxu0 0
    %2332 = vmatprep.subr.bf16.mxu0 0
    %2333 = vmatpush2.bf16.msra.mxu0 0
    %2334 = vmatprep.subr.bf16.mxu0 0
    %2335 = vmatpush2.bf16.msra.mxu0 0
    %2336 = vmatprep.subr.bf16.mxu0 0
    %2337 = vmatpush2.bf16.msra.mxu0 0
    %2338 = vmatprep.subr.bf16.mxu0 0
    %2339 = vmatpush2.bf16.msra.mxu0 0
    %2340 = vmatprep.subr.bf16.mxu0 0
    %2341 = vmatpush2.bf16.msra.mxu0 0
    %2342 = vmatprep.subr.bf16.mxu0 0
    %2343 = vmatpush2.bf16.msra.mxu0 0
    %2344 = vmatprep.subr.bf16.mxu0 0
    %2345 = vmatpush2.bf16.msra.mxu0 0
    %2346 = vmatprep.mubr.bf16.mxu0 0
    %2347 = vmatmul.mubr.bf16.gmra.mxu0 %v2312
    %v2348 = vpop.f32.mrf.mxu0
    %v2349 = vadd.f32 0.0, %v2348
    %v2350 = vpop.f32.mrf.mxu0
    %v2351 = vpop.f32.mrf.mxu0
    %v2352 = vpop.f32.mrf.mxu0
    %2353 = vdwg.mxu0
    %v2354 = vadd.f32 %v2349, %v1084
    %v2355 = vmul.f32 %v2354, 0.5
    %v2356 = vtanh.pop %v2355
    %v2357 = vmul.f32 %v2356, 0.5
    %v2358 = vadd.f32 %v2357, 0.5
    %v2359 = vtanh.pop %v2354
    %v2360 = vmul.f32 %v2358, %v2266
    %2362 = vrot.lane.b32.xlu0 %v2359, 64
    %v2363 = vpop.permute.xlu0 %2362
    %v2365 = vmul.f32 %v2358, %v2363
    %2367 = vrot.lane.b32.xlu0 %v2365, 32
    %v2368 = vpop.permute.xlu0 %2367
    %v2370 = vadd.f32 %v2360, %v2368
    %v2371 = vtanh.pop %v2370
    %2373 = vrot.lane.b32.xlu0 %v2371, 64
    %v2374 = vpop.permute.xlu0 %2373
    %v2376 = vmul.f32 %v2358, %v2374
    %2378 = vrot.lane.b32.xlu0 %v2376, 32
    %v2379 = vpop.permute.xlu0 %2378
    %s2381 = scalar_lea.vmem [#allocation8], 88
    %2382 = vst.msk [vmem:[%s2381] sm:$0xff] %vm1113, %v2379
    // Predicated region
    $region34: #{tpu_custom_call.1} parent=1 // pred_check
      _
    $region35: #{tpu_custom_call.1} parent=1 // pred_check_branch
      %2384 = sbr.rel (0) target = $region37
    $region36: #{tpu_custom_call.1} parent=1 // pred_region
      %s2386 = ssub.s32 1536, 1536
      %2387 = vsyncadd [#allocation4], %s2386
      %s2388 = sshll.u32 [#allocation8], 4
      %s2389 = int_to_ptr.vmem [resolvable:$true] %s2388
      %2394 = dma.vmem_to_hbm [thread:$0]  %s2389, 1536, %s5, [#allocation4], 128, 128, 8
    $region37: #{tpu_custom_call.1} parent=1 // pred_fallthru
      _
    // Predicated region
    $region38: #{tpu_custom_call.1} parent=1 // pred_check
      _
    $region39: #{tpu_custom_call.1} parent=1 // pred_check_branch
      %2396 = sbr.rel (0) target = $region41
    $region40: #{tpu_custom_call.1} parent=1 // pred_region
      %2397 = dma.done [#allocation4], 1536
    $region41: #{tpu_custom_call.1} parent=1 // pred_fallthru
      _
    %2398 = vsyncpa [#allocation3], 1
    %2399 = vsyncpa [#allocation6], 1
    %2400 = vsyncpa [#allocation4], 1

</llo_original>
